<compile_context>
chip_gen: v7x
topology: tpu7x:2x2x1
jax: 0.10.0
libtpu: 0.0.40
codegen_flags: <defaults>
</compile_context>

<pallas_src>
import functools

import numpy as np
import jax
import jax.numpy as jnp
from jax.experimental import pallas as pl
from jax.experimental.pallas import tpu as pltpu


# ----------------------------------------------------------------------------
# Pallas kernels
# ----------------------------------------------------------------------------
def _mm_bn_act_kernel(x_ref, w_ref, scale_ref, shift_ref, o_ref, *, relu):
    """Single-K-step: y = (x @ w) * scale + shift (+ReLU), direct store."""
    y = jnp.dot(x_ref[...], w_ref[...], preferred_element_type=jnp.float32)
    y = y * scale_ref[...] + shift_ref[...]          # (1, N) broadcasts
    if relu:
        y = jnp.maximum(y, 0.0)
    o_ref[...] = y.astype(o_ref.dtype)


def _mm2_bn_act_kernel(x1_ref, x2_ref, w1_ref, w2_ref, scale_ref, shift_ref,
                       o_ref, *, relu):
    """Dual-source (fused channel concat): y = x1@w1 + x2@w2, BN/ReLU epilogue."""
    y = jnp.dot(x1_ref[...], w1_ref[...], preferred_element_type=jnp.float32)
    y = y + jnp.dot(x2_ref[...], w2_ref[...], preferred_element_type=jnp.float32)
    y = y * scale_ref[...] + shift_ref[...]
    if relu:
        y = jnp.maximum(y, 0.0)
    o_ref[...] = y.astype(o_ref.dtype)


def _mm_bn_act_acc_kernel(x_ref, w_ref, scale_ref, shift_ref, o_ref, acc_ref,
                          *, relu):
    """K-tiled path (only for K > _TK): grid (m_tiles, k_tiles), f32 acc."""
    @pl.when(pl.program_id(1) == 0)
    def _():
        acc_ref[...] = jnp.zeros_like(acc_ref)

    acc_ref[...] += jnp.dot(x_ref[...], w_ref[...],
                            preferred_element_type=jnp.float32)

    @pl.when(pl.program_id(1) == pl.num_programs(1) - 1)
    def _():
        y = acc_ref[...] * scale_ref[...] + shift_ref[...]
        if relu:
            y = jnp.maximum(y, 0.0)
        o_ref[...] = y.astype(o_ref.dtype)


def _resize_pass_kernel(a_ref, x_ref, o_ref):
    """One (row-tile, lane-tile) block of one batch element: out = A_tile @ X[b]."""
    o_ref[0] = jnp.dot(a_ref[...], x_ref[0],
                       preferred_element_type=jnp.float32).astype(o_ref.dtype)


# ----------------------------------------------------------------------------
# Pallas wrappers
# ----------------------------------------------------------------------------
_TM = 512    # max M tile for the conv/matmul kernels
_TK = 512    # single-K-step threshold; K grid axis only beyond this
_TR = 256    # output-row tile for the resize passes
_TL = 2048   # lane-dimension tile for the resize passes


def _round_up(v, m):
    return ((v + m - 1) // m) * m


def _choose_tm(m):
    """One big tile per layer (single-TC v5e/v6e); 16-aligned for bf16 packing.

    TODO(synk): on v7x (2 TensorCores) split into two balanced 16-aligned
                tiles so the 'parallel' M axis can shard across cores.
    """
    if m >= _TM:
        return _TM
    if m % 16 == 0 or m < 16:
        return m
    return _round_up(m, 16)


def _pad_bn(scale, shift, N, n_pad):
    sc = jnp.pad(scale.astype(jnp.float32), (0, n_pad - N),
                 constant_values=1.0).reshape(1, n_pad)
    sh = jnp.pad(shift.astype(jnp.float32), (0, n_pad - N)).reshape(1, n_pad)
    return sc, sh


def matmul_bn_act(patches, w2d, scale, shift, relu, out_dtype=jnp.float32):
    """patches: (M, K)  w2d: (K, N)  scale/shift: (N,)  -> (M, N) out_dtype."""
    M, K = patches.shape
    N = w2d.shape[1]
    n_pad = _round_up(N, 128)                 # lane-dense output stores

    xp = patches.astype(jnp.bfloat16)
    wp = w2d.astype(jnp.bfloat16)
    if n_pad != N:
        wp = jnp.pad(wp, ((0, 0), (0, n_pad - N)))
    sc, sh = _pad_bn(scale, shift, N, n_pad)

    tm = _choose_tm(M)
    n_m = pl.cdiv(M, tm)

    if K <= _TK:
        # Single K step: no accumulator scratch, direct fused store.
        out = pl.pallas_call(
            functools.partial(_mm_bn_act_kernel, relu=relu),
            out_shape=jax.ShapeDtypeStruct((M, n_pad), out_dtype),
            grid=(n_m,),
            in_specs=[
                pl.BlockSpec((tm, K), lambda i: (i, 0)),
                pl.BlockSpec((K, n_pad), lambda i: (0, 0)),
                pl.BlockSpec((1, n_pad), lambda i: (0, 0)),
                pl.BlockSpec((1, n_pad), lambda i: (0, 0)),
            ],
            out_specs=pl.BlockSpec((tm, n_pad), lambda i: (i, 0)),
            compiler_params=pltpu.CompilerParams(
                dimension_semantics=("parallel",)),
        )(xp, wp, sc, sh)
    else:
        # K-tiled reduction with f32 VMEM accumulator; tk is 128-aligned and
        # chosen to minimize zero-pad FLOPs (e.g. K=600 -> tk=384, pad=768).
        n_k0 = pl.cdiv(K, _TK)
        tk = min(_round_up(pl.cdiv(K, n_k0), 128), _TK)
        k_pad = pl.cdiv(K, tk) * tk
        n_k = k_pad // tk
        if k_pad != K:
            xp = jnp.pad(xp, ((0, 0), (0, k_pad - K)))
            wp = jnp.pad(wp, ((0, k_pad - K), (0, 0)))
        out = pl.pallas_call(
            functools.partial(_mm_bn_act_acc_kernel, relu=relu),
            out_shape=jax.ShapeDtypeStruct((M, n_pad), out_dtype),
            grid=(n_m, n_k),
            in_specs=[
                pl.BlockSpec((tm, tk), lambda i, k: (i, k)),
                pl.BlockSpec((tk, n_pad), lambda i, k: (k, 0)),
                pl.BlockSpec((1, n_pad), lambda i, k: (0, 0)),
                pl.BlockSpec((1, n_pad), lambda i, k: (0, 0)),
            ],
            out_specs=pl.BlockSpec((tm, n_pad), lambda i, k: (i, 0)),
            scratch_shapes=[pltpu.VMEM((tm, n_pad), jnp.float32)],
            compiler_params=pltpu.CompilerParams(
                dimension_semantics=("parallel", "arbitrary")),
        )(xp, wp, sc, sh)
    return out[:, :N] if n_pad != N else out


def matmul2_bn_act(x1, x2, w1, w2, scale, shift, relu, out_dtype=jnp.float32):
    """Fused channel-concat matmul: y = [x1|x2] @ [w1;w2] * scale + shift."""
    M, K1 = x1.shape
    K2 = x2.shape[1]
    N = w1.shape[1]
    if K1 > _TK or K2 > _TK:
        # TODO(synk): dual-source K-tiled path; fall back to concat for huge K.
        return matmul_bn_act(jnp.concatenate([x1, x2], axis=1),
                             jnp.concatenate([w1, w2], axis=0),
                             scale, shift, relu, out_dtype)
    n_pad = _round_up(N, 128)

    x1p = x1.astype(jnp.bfloat16)
    x2p = x2.astype(jnp.bfloat16)
    w1p = w1.astype(jnp.bfloat16)
    w2p = w2.astype(jnp.bfloat16)
    if n_pad != N:
        w1p = jnp.pad(w1p, ((0, 0), (0, n_pad - N)))
        w2p = jnp.pad(w2p, ((0, 0), (0, n_pad - N)))
    sc, sh = _pad_bn(scale, shift, N, n_pad)

    tm = _choose_tm(M)
    out = pl.pallas_call(
        functools.partial(_mm2_bn_act_kernel, relu=relu),
        out_shape=jax.ShapeDtypeStruct((M, n_pad), out_dtype),
        grid=(pl.cdiv(M, tm),),
        in_specs=[
            pl.BlockSpec((tm, K1), lambda i: (i, 0)),
            pl.BlockSpec((tm, K2), lambda i: (i, 0)),
            pl.BlockSpec((K1, n_pad), lambda i: (0, 0)),
            pl.BlockSpec((K2, n_pad), lambda i: (0, 0)),
            pl.BlockSpec((1, n_pad), lambda i: (0, 0)),
            pl.BlockSpec((1, n_pad), lambda i: (0, 0)),
        ],
        out_specs=pl.BlockSpec((tm, n_pad), lambda i: (i, 0)),
        compiler_params=pltpu.CompilerParams(
            dimension_semantics=("parallel",)),
    )(x1p, x2p, w1p, w2p, sc, sh)
    return out[:, :N] if n_pad != N else out


def _interp_matrix(out_size, in_size):
    """Row-interpolation matrix for bilinear, align_corners=True (PyTorch)."""
    m = np.zeros((out_size, in_size), dtype=np.float32)
    if in_size == 1 or out_size == 1:
        m[:, 0] = 1.0
        return jnp.asarray(m)
    scale = (in_size - 1) / (out_size - 1)
    for o in range(out_size):
        src = o * scale
        i0 = min(int(np.floor(src)), in_size - 1)
        i1 = min(i0 + 1, in_size - 1)
        frac = src - i0
        m[o, i0] += 1.0 - frac
        m[o, i1] += frac
    return jnp.asarray(m)


def _resize_pass(a, x, out_dtype):
    """x: (B, S, L), a: (T, S)  ->  (B, T, L) with out[b] = a @ x[b].

    Grid (B, row-tiles, lane-tiles); the lane dimension L is tiled so VMEM
    blocks stay bounded at real DeepLab sizes.
    """
    B, S, L = x.shape
    T = a.shape[0]
    tr = T if T <= _TR else _TR
    tl = L if L <= _TL else _TL
    return pl.pallas_call(
        _resize_pass_kernel,
        out_shape=jax.ShapeDtypeStruct((B, T, L), out_dtype),
        grid=(B, pl.cdiv(T, tr), pl.cdiv(L, tl)),
        in_specs=[
            pl.BlockSpec((tr, S), lambda b, i, l: (i, 0)),
            pl.BlockSpec((1, S, tl), lambda b, i, l: (b, 0, l)),
        ],
        out_specs=pl.BlockSpec((1, tr, tl), lambda b, i, l: (b, i, l)),
        compiler_params=pltpu.CompilerParams(
            dimension_semantics=("parallel", "parallel", "parallel")),
    )(a, x)


def bilinear_resize(x, out_h, out_w):
    """x: (B, H, W, C) NHWC -> (B, out_h, out_w, C), align_corners=True.

    Two lane-dense MXU dots (column pass then row pass) on bf16 inputs with
    f32 accumulation; the one transpose happens on the small intermediate.
    """
    B, H, W, C = x.shape
    dt = x.dtype
    R = _interp_matrix(out_h, H).astype(jnp.bfloat16)    # (out_h, H)
    Cm = _interp_matrix(out_w, W).astype(jnp.bfloat16)   # (out_w, W)
    xb = x.astype(jnp.bfloat16)

    # column pass (lane dim = H*C): cols[b, ow, h*C + c]
    xt = jnp.transpose(xb, (0, 2, 1, 3)).reshape(B, W, H * C)
    cols = _resize_pass(Cm, xt, jnp.bfloat16)                      # (B, out_w, H*C)

    # rearrange small intermediate, then row pass (lane dim = out_w*C)
    ct = jnp.transpose(cols.reshape(B, out_w, H, C),
                       (0, 2, 1, 3)).reshape(B, H, out_w * C)
    rows = _resize_pass(R, ct, dt)                                 # (B, out_h, out_w*C)
    return rows.reshape(B, out_h, out_w, C)


# ----------------------------------------------------------------------------
# Plain-JAX glue: im2col, conv helpers, parameter construction
# ----------------------------------------------------------------------------
def im2col(x, kh, kw, stride, dilation, padding):
    """x: (B, H, W, C) -> (B*Ho*Wo, kh*kw*C), patch order (kh, kw, cin)."""
    B, H, W, C = x.shape
    xp = jnp.pad(x, ((0, 0), (padding, padding), (padding, padding), (0, 0)))
    Ho = (H + 2 * padding - dilation * (kh - 1) - 1) // stride + 1
    Wo = (W + 2 * padding - dilation * (kw - 1) - 1) // stride + 1
    cols = []
    for i in range(kh):
        for j in range(kw):
            sl = xp[:, i * dilation: i * dilation + stride * (Ho - 1) + 1: stride,
                       j * dilation: j * dilation + stride * (Wo - 1) + 1: stride, :]
            cols.append(sl)
    patches = jnp.concatenate(cols, axis=-1)            # (B, Ho, Wo, kh*kw*C)
    return patches.reshape(B * Ho * Wo, kh * kw * C), (B, Ho, Wo)


def conv_block(x, p, kh, kw, stride, dilation, padding, relu=True,
               out_dtype=jnp.bfloat16):
    """Conv (im2col glue) + fused BN/bias + optional ReLU (Pallas kernel)."""
    x = x.astype(jnp.bfloat16)
    cin = x.shape[-1]
    patches, (B, Ho, Wo) = im2col(x, kh, kw, stride, dilation, padding)
    w2d = p['w'].reshape(kh * kw * cin, -1)
    y = matmul_bn_act(patches, w2d, p['scale'], p['shift'], relu, out_dtype)
    return y.reshape(B, Ho, Wo, -1)


def conv_block2(x1, x2, p, kh, kw, stride, dilation, padding, relu=True,
                out_dtype=jnp.bfloat16):
    """Conv over the channel concat [x1 | x2] WITHOUT materializing the concat:
    the K reduction is split per source inside the dual-input Pallas kernel."""
    c1 = x1.shape[-1]
    c2 = x2.shape[-1]
    p1, (B, Ho, Wo) = im2col(x1.astype(jnp.bfloat16), kh, kw, stride, dilation, padding)
    p2, _ = im2col(x2.astype(jnp.bfloat16), kh, kw, stride, dilation, padding)
    w = p['w']                                           # (kh, kw, c1+c2, cout)
    w1 = w[:, :, :c1, :].reshape(kh * kw * c1, -1)
    w2 = w[:, :, c1:c1 + c2, :].reshape(kh * kw * c2, -1)
    y = matmul2_bn_act(p1, p2, w1, w2, p['scale'], p['shift'], relu, out_dtype)
    return y.reshape(B, Ho, Wo, -1)


def make_conv_bn(key, kh, kw, cin, cout):
    k1, k2, k3, k4, k5 = jax.random.split(key, 5)
    w = jax.random.normal(k1, (kh, kw, cin, cout), jnp.float32)
    w = w * (1.0 / np.sqrt(kh * kw * cin))
    gamma = 1.0 + 0.1 * jax.random.normal(k2, (cout,), jnp.float32)
    beta = 0.1 * jax.random.normal(k3, (cout,), jnp.float32)
    mean = 0.1 * jax.random.normal(k4, (cout,), jnp.float32)
    var = jnp.abs(jax.random.normal(k5, (cout,), jnp.float32)) + 1.0
    eps = 1e-5
    scale = gamma / jnp.sqrt(var + eps)     # BN folded (inference/eval semantics)
    shift = beta - mean * scale
    return {'w': w, 'scale': scale, 'shift': shift}


def make_conv_bias(key, kh, kw, cin, cout):
    k1, k2 = jax.random.split(key)
    w = jax.random.normal(k1, (kh, kw, cin, cout), jnp.float32)
    w = w * (1.0 / np.sqrt(kh * kw * cin))
    b = 0.1 * jax.random.normal(k2, (cout,), jnp.float32)
    return {'w': w, 'scale': jnp.ones((cout,), jnp.float32), 'shift': b}


def build_params(key, cin=4, num_classes=21):
    keys = jax.random.split(key, 10)
    return {
        # encoder (scaled-down backbone, returns (x, low_level_feat))
        'enc1': make_conv_bn(keys[0], 3, 3, cin, 16),    # stride 2 -> low_level_feat
        'enc2': make_conv_bn(keys[1], 3, 3, 16, 32),     # stride 2
        'enc3': make_conv_bn(keys[2], 3, 3, 32, 32),     # dilation 2 (output-stride style)
        # ASPP
        'aspp0': make_conv_bn(keys[3], 1, 1, 32, 32),
        'aspp1': make_conv_bn(keys[4], 3, 3, 32, 32),    # dilated 3x3
        'aspp_pool': make_conv_bn(keys[5], 1, 1, 32, 32),
        'aspp_proj': make_conv_bn(keys[6], 1, 1, 96, 32),
        # decoder
        'dec_low': make_conv_bn(keys[7], 1, 1, 16, 8),
        'dec_conv': make_conv_bn(keys[8], 3, 3, 40, 32),
        'cls': make_conv_bias(keys[9], 1, 1, 32, num_classes),
    }


# ----------------------------------------------------------------------------
# DeepLab forward (tta=False path)
# ----------------------------------------------------------------------------
def deeplab_forward(x_nchw, params):
    x = jnp.transpose(x_nchw, (0, 2, 3, 1)).astype(jnp.float32)   # NCHW -> NHWC
    B, H, W, _ = x.shape

    # ---- encoder: returns (high-level x, low_level_feat) ----
    low = conv_block(x, params['enc1'], 3, 3, stride=2, dilation=1, padding=1)
    h = conv_block(low, params['enc2'], 3, 3, stride=2, dilation=1, padding=1)
    h = conv_block(h, params['enc3'], 3, 3, stride=1, dilation=2, padding=2)

    # ---- ASPP ----
    b0 = conv_block(h, params['aspp0'], 1, 1, 1, 1, 0)
    b1 = conv_block(h, params['aspp1'], 3, 3, 1, 2, 2)

    # global-average-pool branch: M = B rows only -> plain JAX (no pallas_call).
    pooled = h.astype(jnp.float32).mean(axis=(1, 2))               # (B, C)
    pw = params['aspp_pool']['w'].reshape(h.shape[-1], -1)
    p = jnp.maximum(pooled @ pw * params['aspp_pool']['scale']
                    + params['aspp_pool']['shift'], 0.0)           # (B, 32)

    # ASPP projection: concat [b0 | b1 | pool] -> 1x1 conv + BN + ReLU.
    # The b0/b1 halves are fused in the dual-input kernel; the pool branch is
    # spatially constant per batch, so its contribution is a per-batch bias.
    cpw = params['aspp_proj']
    c0, c1 = b0.shape[-1], b1.shape[-1]
    wproj = cpw['w'].reshape(c0 + c1 + p.shape[-1], -1)            # (96, 32)
    pc = (p @ wproj[c0 + c1:, :]) * cpw['scale']                   # (B, 32)
    core = conv_block2(b0, b1,
                       {'w': cpw['w'][:, :, :c0 + c1, :],
                        'scale': cpw['scale'], 'shift': cpw['shift']},
                       1, 1, 1, 1, 0, relu=False, out_dtype=jnp.float32)
    aspp = jnp.maximum(core + pc[:, None, None, :], 0.0).astype(jnp.bfloat16)

    # ---- decoder ----
    up = bilinear_resize(aspp, low.shape[1], low.shape[2])
    low_r = conv_block(low, params['dec_low'], 1, 1, 1, 1, 0)
    d = conv_block2(up, low_r, params['dec_conv'], 3, 3, 1, 1, 1)  # fused concat
    logits = conv_block(d, params['cls'], 1, 1, 1, 1, 0, relu=False,
                        out_dtype=jnp.float32)

    # ---- final bilinear upsample to input size (align_corners=True) ----
    y = bilinear_resize(logits, H, W)
    return jnp.transpose(y, (0, 3, 1, 2))                          # NHWC -> NCHW


# ----------------------------------------------------------------------------
if __name__ == "__main__":
    key = jax.random.PRNGKey(0)
    k_in, k_par = jax.random.split(key)

    B, C, H, W = 2, 4, 16, 16
    num_classes = 21
    x = jax.random.normal(k_in, (B, C, H, W), jnp.float32)
    params = build_params(k_par, cin=C, num_classes=num_classes)

    fwd = jax.jit(deeplab_forward)
    out = fwd(x, params)
    out = jax.block_until_ready(out)

    assert out.shape == (B, num_classes, H, W), out.shape
    assert out.dtype == jnp.float32
    assert bool(jnp.all(jnp.isfinite(out)))
    print("KERNEL_OK")
</pallas_src>

<mosaic_0001>
module attributes {stable_mosaic.version = 11 : i64} {
  func.func @_mm_bn_act_kernel(%arg0: i32, %arg1: memref<128x36xbf16, #tpu.memory_space<vmem>>, %arg2: memref<36x128xbf16, #tpu.memory_space<vmem>>, %arg3: memref<1x128xf32, #tpu.memory_space<vmem>>, %arg4: memref<1x128xf32, #tpu.memory_space<vmem>>, %arg5: memref<128x128xbf16, #tpu.memory_space<vmem>>) attributes {dimension_semantics = [#tpu.dimension_semantics<parallel>], iteration_bounds = array<i64: 1>, scalar_prefetch = 0 : i64, scratch_operands = 0 : i64, tpu.core_type = #tpu.core_type<tc>, window_params = [{transform_indices = @transform_0, window_bounds = array<i64: 128, 36>}, {pipeline_mode = #tpu.pipeline_mode<synchronous>, transform_indices = @transform_1, window_bounds = array<i64: 36, 128>}, {pipeline_mode = #tpu.pipeline_mode<synchronous>, transform_indices = @transform_2, window_bounds = array<i64: 1, 128>}, {pipeline_mode = #tpu.pipeline_mode<synchronous>, transform_indices = @transform_3, window_bounds = array<i64: 1, 128>}, {transform_indices = @transform_4, window_bounds = array<i64: 128, 128>}]} {
    %c0 = arith.constant 0 : index
    %c0_0 = arith.constant 0 : index
    %0 = vector.load %arg1[%c0, %c0_0] : memref<128x36xbf16, #tpu.memory_space<vmem>>, vector<128x36xbf16>
    %c0_1 = arith.constant 0 : index
    %c0_2 = arith.constant 0 : index
    %1 = vector.load %arg2[%c0_1, %c0_2] : memref<36x128xbf16, #tpu.memory_space<vmem>>, vector<36x128xbf16>
    %cst = arith.constant dense<0.000000e+00> : vector<128x128xf32>
    %2 = tpu.matmul %0, %1, %cst {dimension_numbers = #tpu.dot_dimension_numbers<[1], [0], [0], [1], [0, 0, 1, 1], [], []>} : vector<128x36xbf16>, vector<36x128xbf16>, vector<128x128xf32> -> vector<128x128xf32>
    %c0_3 = arith.constant 0 : index
    %c0_4 = arith.constant 0 : index
    %3 = vector.load %arg3[%c0_3, %c0_4] : memref<1x128xf32, #tpu.memory_space<vmem>>, vector<1x128xf32>
    %4 = vector.broadcast %3 : vector<1x128xf32> to vector<128x128xf32>
    %5 = arith.mulf %2, %4 : vector<128x128xf32>
    %c0_5 = arith.constant 0 : index
    %c0_6 = arith.constant 0 : index
    %6 = vector.load %arg4[%c0_5, %c0_6] : memref<1x128xf32, #tpu.memory_space<vmem>>, vector<1x128xf32>
    %7 = vector.broadcast %6 : vector<1x128xf32> to vector<128x128xf32>
    %8 = arith.addf %5, %7 : vector<128x128xf32>
    %cst_7 = arith.constant 0.000000e+00 : f32
    %9 = vector.broadcast %cst_7 : f32 to vector<128x128xf32>
    %10 = arith.maximumf %8, %9 : vector<128x128xf32>
    %11 = arith.truncf %10 : vector<128x128xf32> to vector<128x128xbf16>
    %c0_8 = arith.constant 0 : index
    %c0_9 = arith.constant 0 : index
    %12 = vector.load %arg5[%c0_8, %c0_9] : memref<128x128xbf16, #tpu.memory_space<vmem>>, vector<128x128xbf16>
    tpu.vector_store %arg5[%c0_8, %c0_9], %11 {strides = array<i32>} : memref<128x128xbf16, #tpu.memory_space<vmem>>, vector<128x128xbf16>,
    return
  }
  func.func @transform_0(%arg0: i32) -> (i32, i32) {
    %c0_i32 = arith.constant 0 : i32
    %c0_i32_0 = arith.constant 0 : i32
    return %arg0, %c0_i32 : i32, i32
  }
  func.func @transform_1(%arg0: i32) -> (i32, i32) {
    %c0_i32 = arith.constant 0 : i32
    %c0_i32_0 = arith.constant 0 : i32
    %c0_i32_1 = arith.constant 0 : i32
    return %c0_i32, %c0_i32_0 : i32, i32
  }
  func.func @transform_2(%arg0: i32) -> (i32, i32) {
    %c0_i32 = arith.constant 0 : i32
    %c0_i32_0 = arith.constant 0 : i32
    %c0_i32_1 = arith.constant 0 : i32
    return %c0_i32, %c0_i32_0 : i32, i32
  }
  func.func @transform_3(%arg0: i32) -> (i32, i32) {
    %c0_i32 = arith.constant 0 : i32
    %c0_i32_0 = arith.constant 0 : i32
    %c0_i32_1 = arith.constant 0 : i32
    return %c0_i32, %c0_i32_0 : i32, i32
  }
  func.func @transform_4(%arg0: i32) -> (i32, i32) {
    %c0_i32 = arith.constant 0 : i32
    %c0_i32_0 = arith.constant 0 : i32
    return %arg0, %c0_i32 : i32, i32
  }
}

module attributes {stable_mosaic.version = 11 : i64} {
  func.func @_mm_bn_act_kernel(%arg0: i32, %arg1: memref<128x16xbf16, #tpu.memory_space<vmem>>, %arg2: memref<16x128xbf16, #tpu.memory_space<vmem>>, %arg3: memref<1x128xf32, #tpu.memory_space<vmem>>, %arg4: memref<1x128xf32, #tpu.memory_space<vmem>>, %arg5: memref<128x128xbf16, #tpu.memory_space<vmem>>) attributes {dimension_semantics = [#tpu.dimension_semantics<parallel>], iteration_bounds = array<i64: 1>, scalar_prefetch = 0 : i64, scratch_operands = 0 : i64, tpu.core_type = #tpu.core_type<tc>, window_params = [{transform_indices = @transform_0, window_bounds = array<i64: 128, 16>}, {pipeline_mode = #tpu.pipeline_mode<synchronous>, transform_indices = @transform_1, window_bounds = array<i64: 16, 128>}, {pipeline_mode = #tpu.pipeline_mode<synchronous>, transform_indices = @transform_2, window_bounds = array<i64: 1, 128>}, {pipeline_mode = #tpu.pipeline_mode<synchronous>, transform_indices = @transform_3, window_bounds = array<i64: 1, 128>}, {transform_indices = @transform_4, window_bounds = array<i64: 128, 128>}]} {
    %c0 = arith.constant 0 : index
    %c0_0 = arith.constant 0 : index
    %0 = vector.load %arg1[%c0, %c0_0] : memref<128x16xbf16, #tpu.memory_space<vmem>>, vector<128x16xbf16>
    %c0_1 = arith.constant 0 : index
    %c0_2 = arith.constant 0 : index
    %1 = vector.load %arg2[%c0_1, %c0_2] : memref<16x128xbf16, #tpu.memory_space<vmem>>, vector<16x128xbf16>
    %cst = arith.constant dense<0.000000e+00> : vector<128x128xf32>
    %2 = tpu.matmul %0, %1, %cst {dimension_numbers = #tpu.dot_dimension_numbers<[1], [0], [0], [1], [0, 0, 1, 1], [], []>} : vector<128x16xbf16>, vector<16x128xbf16>, vector<128x128xf32> -> vector<128x128xf32>
    %c0_3 = arith.constant 0 : index
    %c0_4 = arith.constant 0 : index
    %3 = vector.load %arg3[%c0_3, %c0_4] : memref<1x128xf32, #tpu.memory_space<vmem>>, vector<1x128xf32>
    %4 = vector.broadcast %3 : vector<1x128xf32> to vector<128x128xf32>
    %5 = arith.mulf %2, %4 : vector<128x128xf32>
    %c0_5 = arith.constant 0 : index
    %c0_6 = arith.constant 0 : index
    %6 = vector.load %arg4[%c0_5, %c0_6] : memref<1x128xf32, #tpu.memory_space<vmem>>, vector<1x128xf32>
    %7 = vector.broadcast %6 : vector<1x128xf32> to vector<128x128xf32>
    %8 = arith.addf %5, %7 : vector<128x128xf32>
    %cst_7 = arith.constant 0.000000e+00 : f32
    %9 = vector.broadcast %cst_7 : f32 to vector<128x128xf32>
    %10 = arith.maximumf %8, %9 : vector<128x128xf32>
    %11 = arith.truncf %10 : vector<128x128xf32> to vector<128x128xbf16>
    %c0_8 = arith.constant 0 : index
    %c0_9 = arith.constant 0 : index
    %12 = vector.load %arg5[%c0_8, %c0_9] : memref<128x128xbf16, #tpu.memory_space<vmem>>, vector<128x128xbf16>
    tpu.vector_store %arg5[%c0_8, %c0_9], %11 {strides = array<i32>} : memref<128x128xbf16, #tpu.memory_space<vmem>>, vector<128x128xbf16>,
    return
  }
  func.func @transform_0(%arg0: i32) -> (i32, i32) {
    %c0_i32 = arith.constant 0 : i32
    %c0_i32_0 = arith.constant 0 : i32
    return %arg0, %c0_i32 : i32, i32
  }
  func.func @transform_1(%arg0: i32) -> (i32, i32) {
    %c0_i32 = arith.constant 0 : i32
    %c0_i32_0 = arith.constant 0 : i32
    %c0_i32_1 = arith.constant 0 : i32
    return %c0_i32, %c0_i32_0 : i32, i32
  }
  func.func @transform_2(%arg0: i32) -> (i32, i32) {
    %c0_i32 = arith.constant 0 : i32
    %c0_i32_0 = arith.constant 0 : i32
    %c0_i32_1 = arith.constant 0 : i32
    return %c0_i32, %c0_i32_0 : i32, i32
  }
  func.func @transform_3(%arg0: i32) -> (i32, i32) {
    %c0_i32 = arith.constant 0 : i32
    %c0_i32_0 = arith.constant 0 : i32
    %c0_i32_1 = arith.constant 0 : i32
    return %c0_i32, %c0_i32_0 : i32, i32
  }
  func.func @transform_4(%arg0: i32) -> (i32, i32) {
    %c0_i32 = arith.constant 0 : i32
    %c0_i32_0 = arith.constant 0 : i32
    return %arg0, %c0_i32 : i32, i32
  }
}

module attributes {stable_mosaic.version = 11 : i64} {
  func.func @_mm_bn_act_kernel(%arg0: i32, %arg1: memref<32x144xbf16, #tpu.memory_space<vmem>>, %arg2: memref<144x128xbf16, #tpu.memory_space<vmem>>, %arg3: memref<1x128xf32, #tpu.memory_space<vmem>>, %arg4: memref<1x128xf32, #tpu.memory_space<vmem>>, %arg5: memref<32x128xbf16, #tpu.memory_space<vmem>>) attributes {dimension_semantics = [#tpu.dimension_semantics<parallel>], iteration_bounds = array<i64: 1>, scalar_prefetch = 0 : i64, scratch_operands = 0 : i64, tpu.core_type = #tpu.core_type<tc>, window_params = [{transform_indices = @transform_0, window_bounds = array<i64: 32, 144>}, {pipeline_mode = #tpu.pipeline_mode<synchronous>, transform_indices = @transform_1, window_bounds = array<i64: 144, 128>}, {pipeline_mode = #tpu.pipeline_mode<synchronous>, transform_indices = @transform_2, window_bounds = array<i64: 1, 128>}, {pipeline_mode = #tpu.pipeline_mode<synchronous>, transform_indices = @transform_3, window_bounds = array<i64: 1, 128>}, {transform_indices = @transform_4, window_bounds = array<i64: 32, 128>}]} {
    %c0 = arith.constant 0 : index
    %c0_0 = arith.constant 0 : index
    %0 = vector.load %arg1[%c0, %c0_0] : memref<32x144xbf16, #tpu.memory_space<vmem>>, vector<32x144xbf16>
    %c0_1 = arith.constant 0 : index
    %c0_2 = arith.constant 0 : index
    %1 = vector.load %arg2[%c0_1, %c0_2] : memref<144x128xbf16, #tpu.memory_space<vmem>>, vector<144x128xbf16>
    %cst = arith.constant dense<0.000000e+00> : vector<32x128xf32>
    %2 = tpu.matmul %0, %1, %cst {dimension_numbers = #tpu.dot_dimension_numbers<[1], [0], [0], [1], [0, 0, 1, 1], [], []>} : vector<32x144xbf16>, vector<144x128xbf16>, vector<32x128xf32> -> vector<32x128xf32>
    %c0_3 = arith.constant 0 : index
    %c0_4 = arith.constant 0 : index
    %3 = vector.load %arg3[%c0_3, %c0_4] : memref<1x128xf32, #tpu.memory_space<vmem>>, vector<1x128xf32>
    %4 = vector.broadcast %3 : vector<1x128xf32> to vector<32x128xf32>
    %5 = arith.mulf %2, %4 : vector<32x128xf32>
    %c0_5 = arith.constant 0 : index
    %c0_6 = arith.constant 0 : index
    %6 = vector.load %arg4[%c0_5, %c0_6] : memref<1x128xf32, #tpu.memory_space<vmem>>, vector<1x128xf32>
    %7 = vector.broadcast %6 : vector<1x128xf32> to vector<32x128xf32>
    %8 = arith.addf %5, %7 : vector<32x128xf32>
    %cst_7 = arith.constant 0.000000e+00 : f32
    %9 = vector.broadcast %cst_7 : f32 to vector<32x128xf32>
    %10 = arith.maximumf %8, %9 : vector<32x128xf32>
    %11 = arith.truncf %10 : vector<32x128xf32> to vector<32x128xbf16>
    %c0_8 = arith.constant 0 : index
    %c0_9 = arith.constant 0 : index
    %12 = vector.load %arg5[%c0_8, %c0_9] : memref<32x128xbf16, #tpu.memory_space<vmem>>, vector<32x128xbf16>
    tpu.vector_store %arg5[%c0_8, %c0_9], %11 {strides = array<i32>} : memref<32x128xbf16, #tpu.memory_space<vmem>>, vector<32x128xbf16>,
    return
  }
  func.func @transform_0(%arg0: i32) -> (i32, i32) {
    %c0_i32 = arith.constant 0 : i32
    %c0_i32_0 = arith.constant 0 : i32
    return %arg0, %c0_i32 : i32, i32
  }
  func.func @transform_1(%arg0: i32) -> (i32, i32) {
    %c0_i32 = arith.constant 0 : i32
    %c0_i32_0 = arith.constant 0 : i32
    %c0_i32_1 = arith.constant 0 : i32
    return %c0_i32, %c0_i32_0 : i32, i32
  }
  func.func @transform_2(%arg0: i32) -> (i32, i32) {
    %c0_i32 = arith.constant 0 : i32
    %c0_i32_0 = arith.constant 0 : i32
    %c0_i32_1 = arith.constant 0 : i32
    return %c0_i32, %c0_i32_0 : i32, i32
  }
  func.func @transform_3(%arg0: i32) -> (i32, i32) {
    %c0_i32 = arith.constant 0 : i32
    %c0_i32_0 = arith.constant 0 : i32
    %c0_i32_1 = arith.constant 0 : i32
    return %c0_i32, %c0_i32_0 : i32, i32
  }
  func.func @transform_4(%arg0: i32) -> (i32, i32) {
    %c0_i32 = arith.constant 0 : i32
    %c0_i32_0 = arith.constant 0 : i32
    return %arg0, %c0_i32 : i32, i32
  }
}

module attributes {stable_mosaic.version = 11 : i64} {
  func.func @_mm_bn_act_kernel(%arg0: i32, %arg1: memref<32x288xbf16, #tpu.memory_space<vmem>>, %arg2: memref<288x128xbf16, #tpu.memory_space<vmem>>, %arg3: memref<1x128xf32, #tpu.memory_space<vmem>>, %arg4: memref<1x128xf32, #tpu.memory_space<vmem>>, %arg5: memref<32x128xbf16, #tpu.memory_space<vmem>>) attributes {dimension_semantics = [#tpu.dimension_semantics<parallel>], iteration_bounds = array<i64: 1>, scalar_prefetch = 0 : i64, scratch_operands = 0 : i64, tpu.core_type = #tpu.core_type<tc>, window_params = [{transform_indices = @transform_0, window_bounds = array<i64: 32, 288>}, {pipeline_mode = #tpu.pipeline_mode<synchronous>, transform_indices = @transform_1, window_bounds = array<i64: 288, 128>}, {pipeline_mode = #tpu.pipeline_mode<synchronous>, transform_indices = @transform_2, window_bounds = array<i64: 1, 128>}, {pipeline_mode = #tpu.pipeline_mode<synchronous>, transform_indices = @transform_3, window_bounds = array<i64: 1, 128>}, {transform_indices = @transform_4, window_bounds = array<i64: 32, 128>}]} {
    %c0 = arith.constant 0 : index
    %c0_0 = arith.constant 0 : index
    %0 = vector.load %arg1[%c0, %c0_0] : memref<32x288xbf16, #tpu.memory_space<vmem>>, vector<32x288xbf16>
    %c0_1 = arith.constant 0 : index
    %c0_2 = arith.constant 0 : index
    %1 = vector.load %arg2[%c0_1, %c0_2] : memref<288x128xbf16, #tpu.memory_space<vmem>>, vector<288x128xbf16>
    %cst = arith.constant dense<0.000000e+00> : vector<32x128xf32>
    %2 = tpu.matmul %0, %1, %cst {dimension_numbers = #tpu.dot_dimension_numbers<[1], [0], [0], [1], [0, 0, 1, 1], [], []>} : vector<32x288xbf16>, vector<288x128xbf16>, vector<32x128xf32> -> vector<32x128xf32>
    %c0_3 = arith.constant 0 : index
    %c0_4 = arith.constant 0 : index
    %3 = vector.load %arg3[%c0_3, %c0_4] : memref<1x128xf32, #tpu.memory_space<vmem>>, vector<1x128xf32>
    %4 = vector.broadcast %3 : vector<1x128xf32> to vector<32x128xf32>
    %5 = arith.mulf %2, %4 : vector<32x128xf32>
    %c0_5 = arith.constant 0 : index
    %c0_6 = arith.constant 0 : index
    %6 = vector.load %arg4[%c0_5, %c0_6] : memref<1x128xf32, #tpu.memory_space<vmem>>, vector<1x128xf32>
    %7 = vector.broadcast %6 : vector<1x128xf32> to vector<32x128xf32>
    %8 = arith.addf %5, %7 : vector<32x128xf32>
    %cst_7 = arith.constant 0.000000e+00 : f32
    %9 = vector.broadcast %cst_7 : f32 to vector<32x128xf32>
    %10 = arith.maximumf %8, %9 : vector<32x128xf32>
    %11 = arith.truncf %10 : vector<32x128xf32> to vector<32x128xbf16>
    %c0_8 = arith.constant 0 : index
    %c0_9 = arith.constant 0 : index
    %12 = vector.load %arg5[%c0_8, %c0_9] : memref<32x128xbf16, #tpu.memory_space<vmem>>, vector<32x128xbf16>
    tpu.vector_store %arg5[%c0_8, %c0_9], %11 {strides = array<i32>} : memref<32x128xbf16, #tpu.memory_space<vmem>>, vector<32x128xbf16>,
    return
  }
  func.func @transform_0(%arg0: i32) -> (i32, i32) {
    %c0_i32 = arith.constant 0 : i32
    %c0_i32_0 = arith.constant 0 : i32
    return %arg0, %c0_i32 : i32, i32
  }
  func.func @transform_1(%arg0: i32) -> (i32, i32) {
    %c0_i32 = arith.constant 0 : i32
    %c0_i32_0 = arith.constant 0 : i32
    %c0_i32_1 = arith.constant 0 : i32
    return %c0_i32, %c0_i32_0 : i32, i32
  }
  func.func @transform_2(%arg0: i32) -> (i32, i32) {
    %c0_i32 = arith.constant 0 : i32
    %c0_i32_0 = arith.constant 0 : i32
    %c0_i32_1 = arith.constant 0 : i32
    return %c0_i32, %c0_i32_0 : i32, i32
  }
  func.func @transform_3(%arg0: i32) -> (i32, i32) {
    %c0_i32 = arith.constant 0 : i32
    %c0_i32_0 = arith.constant 0 : i32
    %c0_i32_1 = arith.constant 0 : i32
    return %c0_i32, %c0_i32_0 : i32, i32
  }
  func.func @transform_4(%arg0: i32) -> (i32, i32) {
    %c0_i32 = arith.constant 0 : i32
    %c0_i32_0 = arith.constant 0 : i32
    return %arg0, %c0_i32 : i32, i32
  }
}

module attributes {stable_mosaic.version = 11 : i64} {
  func.func @_mm_bn_act_kernel(%arg0: i32, %arg1: memref<32x32xbf16, #tpu.memory_space<vmem>>, %arg2: memref<32x128xbf16, #tpu.memory_space<vmem>>, %arg3: memref<1x128xf32, #tpu.memory_space<vmem>>, %arg4: memref<1x128xf32, #tpu.memory_space<vmem>>, %arg5: memref<32x128xbf16, #tpu.memory_space<vmem>>) attributes {dimension_semantics = [#tpu.dimension_semantics<parallel>], iteration_bounds = array<i64: 1>, scalar_prefetch = 0 : i64, scratch_operands = 0 : i64, tpu.core_type = #tpu.core_type<tc>, window_params = [{transform_indices = @transform_0, window_bounds = array<i64: 32, 32>}, {pipeline_mode = #tpu.pipeline_mode<synchronous>, transform_indices = @transform_1, window_bounds = array<i64: 32, 128>}, {pipeline_mode = #tpu.pipeline_mode<synchronous>, transform_indices = @transform_2, window_bounds = array<i64: 1, 128>}, {pipeline_mode = #tpu.pipeline_mode<synchronous>, transform_indices = @transform_3, window_bounds = array<i64: 1, 128>}, {transform_indices = @transform_4, window_bounds = array<i64: 32, 128>}]} {
    %c0 = arith.constant 0 : index
    %c0_0 = arith.constant 0 : index
    %0 = vector.load %arg1[%c0, %c0_0] : memref<32x32xbf16, #tpu.memory_space<vmem>>, vector<32x32xbf16>
    %c0_1 = arith.constant 0 : index
    %c0_2 = arith.constant 0 : index
    %1 = vector.load %arg2[%c0_1, %c0_2] : memref<32x128xbf16, #tpu.memory_space<vmem>>, vector<32x128xbf16>
    %cst = arith.constant dense<0.000000e+00> : vector<32x128xf32>
    %2 = tpu.matmul %0, %1, %cst {dimension_numbers = #tpu.dot_dimension_numbers<[1], [0], [0], [1], [0, 0, 1, 1], [], []>} : vector<32x32xbf16>, vector<32x128xbf16>, vector<32x128xf32> -> vector<32x128xf32>
    %c0_3 = arith.constant 0 : index
    %c0_4 = arith.constant 0 : index
    %3 = vector.load %arg3[%c0_3, %c0_4] : memref<1x128xf32, #tpu.memory_space<vmem>>, vector<1x128xf32>
    %4 = vector.broadcast %3 : vector<1x128xf32> to vector<32x128xf32>
    %5 = arith.mulf %2, %4 : vector<32x128xf32>
    %c0_5 = arith.constant 0 : index
    %c0_6 = arith.constant 0 : index
    %6 = vector.load %arg4[%c0_5, %c0_6] : memref<1x128xf32, #tpu.memory_space<vmem>>, vector<1x128xf32>
    %7 = vector.broadcast %6 : vector<1x128xf32> to vector<32x128xf32>
    %8 = arith.addf %5, %7 : vector<32x128xf32>
    %cst_7 = arith.constant 0.000000e+00 : f32
    %9 = vector.broadcast %cst_7 : f32 to vector<32x128xf32>
    %10 = arith.maximumf %8, %9 : vector<32x128xf32>
    %11 = arith.truncf %10 : vector<32x128xf32> to vector<32x128xbf16>
    %c0_8 = arith.constant 0 : index
    %c0_9 = arith.constant 0 : index
    %12 = vector.load %arg5[%c0_8, %c0_9] : memref<32x128xbf16, #tpu.memory_space<vmem>>, vector<32x128xbf16>
    tpu.vector_store %arg5[%c0_8, %c0_9], %11 {strides = array<i32>} : memref<32x128xbf16, #tpu.memory_space<vmem>>, vector<32x128xbf16>,
    return
  }
  func.func @transform_0(%arg0: i32) -> (i32, i32) {
    %c0_i32 = arith.constant 0 : i32
    %c0_i32_0 = arith.constant 0 : i32
    return %arg0, %c0_i32 : i32, i32
  }
  func.func @transform_1(%arg0: i32) -> (i32, i32) {
    %c0_i32 = arith.constant 0 : i32
    %c0_i32_0 = arith.constant 0 : i32
    %c0_i32_1 = arith.constant 0 : i32
    return %c0_i32, %c0_i32_0 : i32, i32
  }
  func.func @transform_2(%arg0: i32) -> (i32, i32) {
    %c0_i32 = arith.constant 0 : i32
    %c0_i32_0 = arith.constant 0 : i32
    %c0_i32_1 = arith.constant 0 : i32
    return %c0_i32, %c0_i32_0 : i32, i32
  }
  func.func @transform_3(%arg0: i32) -> (i32, i32) {
    %c0_i32 = arith.constant 0 : i32
    %c0_i32_0 = arith.constant 0 : i32
    %c0_i32_1 = arith.constant 0 : i32
    return %c0_i32, %c0_i32_0 : i32, i32
  }
  func.func @transform_4(%arg0: i32) -> (i32, i32) {
    %c0_i32 = arith.constant 0 : i32
    %c0_i32_0 = arith.constant 0 : i32
    return %arg0, %c0_i32 : i32, i32
  }
}

module attributes {stable_mosaic.version = 11 : i64} {
  func.func @_mm2_bn_act_kernel(%arg0: i32, %arg1: memref<32x32xbf16, #tpu.memory_space<vmem>>, %arg2: memref<32x32xbf16, #tpu.memory_space<vmem>>, %arg3: memref<32x128xbf16, #tpu.memory_space<vmem>>, %arg4: memref<32x128xbf16, #tpu.memory_space<vmem>>, %arg5: memref<1x128xf32, #tpu.memory_space<vmem>>, %arg6: memref<1x128xf32, #tpu.memory_space<vmem>>, %arg7: memref<32x128xf32, #tpu.memory_space<vmem>>) attributes {dimension_semantics = [#tpu.dimension_semantics<parallel>], iteration_bounds = array<i64: 1>, scalar_prefetch = 0 : i64, scratch_operands = 0 : i64, tpu.core_type = #tpu.core_type<tc>, window_params = [{transform_indices = @transform_0, window_bounds = array<i64: 32, 32>}, {transform_indices = @transform_1, window_bounds = array<i64: 32, 32>}, {pipeline_mode = #tpu.pipeline_mode<synchronous>, transform_indices = @transform_2, window_bounds = array<i64: 32, 128>}, {pipeline_mode = #tpu.pipeline_mode<synchronous>, transform_indices = @transform_3, window_bounds = array<i64: 32, 128>}, {pipeline_mode = #tpu.pipeline_mode<synchronous>, transform_indices = @transform_4, window_bounds = array<i64: 1, 128>}, {pipeline_mode = #tpu.pipeline_mode<synchronous>, transform_indices = @transform_5, window_bounds = array<i64: 1, 128>}, {transform_indices = @transform_6, window_bounds = array<i64: 32, 128>}]} {
    %c0 = arith.constant 0 : index
    %c0_0 = arith.constant 0 : index
    %0 = vector.load %arg1[%c0, %c0_0] : memref<32x32xbf16, #tpu.memory_space<vmem>>, vector<32x32xbf16>
    %c0_1 = arith.constant 0 : index
    %c0_2 = arith.constant 0 : index
    %1 = vector.load %arg3[%c0_1, %c0_2] : memref<32x128xbf16, #tpu.memory_space<vmem>>, vector<32x128xbf16>
    %cst = arith.constant dense<0.000000e+00> : vector<32x128xf32>
    %2 = tpu.matmul %0, %1, %cst {dimension_numbers = #tpu.dot_dimension_numbers<[1], [0], [0], [1], [0, 0, 1, 1], [], []>} : vector<32x32xbf16>, vector<32x128xbf16>, vector<32x128xf32> -> vector<32x128xf32>
    %c0_3 = arith.constant 0 : index
    %c0_4 = arith.constant 0 : index
    %3 = vector.load %arg2[%c0_3, %c0_4] : memref<32x32xbf16, #tpu.memory_space<vmem>>, vector<32x32xbf16>
    %c0_5 = arith.constant 0 : index
    %c0_6 = arith.constant 0 : index
    %4 = vector.load %arg4[%c0_5, %c0_6] : memref<32x128xbf16, #tpu.memory_space<vmem>>, vector<32x128xbf16>
    %cst_7 = arith.constant dense<0.000000e+00> : vector<32x128xf32>
    %5 = tpu.matmul %3, %4, %cst_7 {dimension_numbers = #tpu.dot_dimension_numbers<[1], [0], [0], [1], [0, 0, 1, 1], [], []>} : vector<32x32xbf16>, vector<32x128xbf16>, vector<32x128xf32> -> vector<32x128xf32>
    %6 = arith.addf %2, %5 : vector<32x128xf32>
    %c0_8 = arith.constant 0 : index
    %c0_9 = arith.constant 0 : index
    %7 = vector.load %arg5[%c0_8, %c0_9] : memref<1x128xf32, #tpu.memory_space<vmem>>, vector<1x128xf32>
    %8 = vector.broadcast %7 : vector<1x128xf32> to vector<32x128xf32>
    %9 = arith.mulf %6, %8 : vector<32x128xf32>
    %c0_10 = arith.constant 0 : index
    %c0_11 = arith.constant 0 : index
    %10 = vector.load %arg6[%c0_10, %c0_11] : memref<1x128xf32, #tpu.memory_space<vmem>>, vector<1x128xf32>
    %11 = vector.broadcast %10 : vector<1x128xf32> to vector<32x128xf32>
    %12 = arith.addf %9, %11 : vector<32x128xf32>
    %c0_12 = arith.constant 0 : index
    %c0_13 = arith.constant 0 : index
    %13 = vector.load %arg7[%c0_12, %c0_13] : memref<32x128xf32, #tpu.memory_space<vmem>>, vector<32x128xf32>
    tpu.vector_store %arg7[%c0_12, %c0_13], %12 {strides = array<i32>} : memref<32x128xf32, #tpu.memory_space<vmem>>, vector<32x128xf32>,
    return
  }
  func.func @transform_0(%arg0: i32) -> (i32, i32) {
    %c0_i32 = arith.constant 0 : i32
    %c0_i32_0 = arith.constant 0 : i32
    return %arg0, %c0_i32 : i32, i32
  }
  func.func @transform_1(%arg0: i32) -> (i32, i32) {
    %c0_i32 = arith.constant 0 : i32
    %c0_i32_0 = arith.constant 0 : i32
    return %arg0, %c0_i32 : i32, i32
  }
  func.func @transform_2(%arg0: i32) -> (i32, i32) {
    %c0_i32 = arith.constant 0 : i32
    %c0_i32_0 = arith.constant 0 : i32
    %c0_i32_1 = arith.constant 0 : i32
    return %c0_i32, %c0_i32_0 : i32, i32
  }
  func.func @transform_3(%arg0: i32) -> (i32, i32) {
    %c0_i32 = arith.constant 0 : i32
    %c0_i32_0 = arith.constant 0 : i32
    %c0_i32_1 = arith.constant 0 : i32
    return %c0_i32, %c0_i32_0 : i32, i32
  }
  func.func @transform_4(%arg0: i32) -> (i32, i32) {
    %c0_i32 = arith.constant 0 : i32
    %c0_i32_0 = arith.constant 0 : i32
    %c0_i32_1 = arith.constant 0 : i32
    return %c0_i32, %c0_i32_0 : i32, i32
  }
  func.func @transform_5(%arg0: i32) -> (i32, i32) {
    %c0_i32 = arith.constant 0 : i32
    %c0_i32_0 = arith.constant 0 : i32
    %c0_i32_1 = arith.constant 0 : i32
    return %c0_i32, %c0_i32_0 : i32, i32
  }
  func.func @transform_6(%arg0: i32) -> (i32, i32) {
    %c0_i32 = arith.constant 0 : i32
    %c0_i32_0 = arith.constant 0 : i32
    return %arg0, %c0_i32 : i32, i32
  }
}

module attributes {stable_mosaic.version = 11 : i64} {
  func.func @_resize_pass_kernel(%arg0: i32, %arg1: i32, %arg2: i32, %arg3: memref<8x4xbf16, #tpu.memory_space<vmem>>, %arg4: memref<1x4x128xbf16, #tpu.memory_space<vmem>>, %arg5: memref<1x8x128xbf16, #tpu.memory_space<vmem>>) attributes {dimension_semantics = [#tpu.dimension_semantics<parallel>, #tpu.dimension_semantics<parallel>, #tpu.dimension_semantics<parallel>], iteration_bounds = array<i64: 2, 1, 1>, scalar_prefetch = 0 : i64, scratch_operands = 0 : i64, tpu.core_type = #tpu.core_type<tc>, window_params = [{transform_indices = @transform_0, window_bounds = array<i64: 8, 4>}, {transform_indices = @transform_1, window_bounds = array<i64: 1, 4, 128>}, {transform_indices = @transform_2, window_bounds = array<i64: 1, 8, 128>}]} {
    %c0 = arith.constant 0 : index
    %c0_0 = arith.constant 0 : index
    %0 = vector.load %arg3[%c0, %c0_0] : memref<8x4xbf16, #tpu.memory_space<vmem>>, vector<8x4xbf16>
    %c0_1 = arith.constant 0 : index
    %c0_2 = arith.constant 0 : index
    %c0_3 = arith.constant 0 : index
    %1 = vector.load %arg4[%c0_1, %c0_2, %c0_3] : memref<1x4x128xbf16, #tpu.memory_space<vmem>>, vector<1x4x128xbf16>
    %2 = vector.shape_cast %1 : vector<1x4x128xbf16> to vector<4x128xbf16>
    %cst = arith.constant dense<0.000000e+00> : vector<8x128xf32>
    %3 = tpu.matmul %0, %2, %cst {dimension_numbers = #tpu.dot_dimension_numbers<[1], [0], [0], [1], [0, 0, 1, 1], [], []>} : vector<8x4xbf16>, vector<4x128xbf16>, vector<8x128xf32> -> vector<8x128xf32>
    %4 = arith.truncf %3 : vector<8x128xf32> to vector<8x128xbf16>
    %c0_4 = arith.constant 0 : index
    %c0_5 = arith.constant 0 : index
    %c0_6 = arith.constant 0 : index
    %5 = vector.load %arg5[%c0_4, %c0_5, %c0_6] : memref<1x8x128xbf16, #tpu.memory_space<vmem>>, vector<1x8x128xbf16>
    %6 = vector.shape_cast %5 : vector<1x8x128xbf16> to vector<8x128xbf16>
    %7 = vector.shape_cast %4 : vector<8x128xbf16> to vector<1x8x128xbf16>
    tpu.vector_store %arg5[%c0_4, %c0_5, %c0_6], %7 {strides = array<i32>} : memref<1x8x128xbf16, #tpu.memory_space<vmem>>, vector<1x8x128xbf16>,
    return
  }
  func.func @transform_0(%arg0: i32, %arg1: i32, %arg2: i32) -> (i32, i32) {
    %c0_i32 = arith.constant 0 : i32
    %c0_i32_0 = arith.constant 0 : i32
    return %arg1, %c0_i32 : i32, i32
  }
  func.func @transform_1(%arg0: i32, %arg1: i32, %arg2: i32) -> (i32, i32, i32) {
    %c0_i32 = arith.constant 0 : i32
    %c0_i32_0 = arith.constant 0 : i32
    return %arg0, %c0_i32, %arg2 : i32, i32, i32
  }
  func.func @transform_2(%arg0: i32, %arg1: i32, %arg2: i32) -> (i32, i32, i32) {
    %c0_i32 = arith.constant 0 : i32
    return %arg0, %arg1, %arg2 : i32, i32, i32
  }
}

module attributes {stable_mosaic.version = 11 : i64} {
  func.func @_resize_pass_kernel(%arg0: i32, %arg1: i32, %arg2: i32, %arg3: memref<8x4xbf16, #tpu.memory_space<vmem>>, %arg4: memref<1x4x256xbf16, #tpu.memory_space<vmem>>, %arg5: memref<1x8x256xbf16, #tpu.memory_space<vmem>>) attributes {dimension_semantics = [#tpu.dimension_semantics<parallel>, #tpu.dimension_semantics<parallel>, #tpu.dimension_semantics<parallel>], iteration_bounds = array<i64: 2, 1, 1>, scalar_prefetch = 0 : i64, scratch_operands = 0 : i64, tpu.core_type = #tpu.core_type<tc>, window_params = [{transform_indices = @transform_0, window_bounds = array<i64: 8, 4>}, {transform_indices = @transform_1, window_bounds = array<i64: 1, 4, 256>}, {transform_indices = @transform_2, window_bounds = array<i64: 1, 8, 256>}]} {
    %c0 = arith.constant 0 : index
    %c0_0 = arith.constant 0 : index
    %0 = vector.load %arg3[%c0, %c0_0] : memref<8x4xbf16, #tpu.memory_space<vmem>>, vector<8x4xbf16>
    %c0_1 = arith.constant 0 : index
    %c0_2 = arith.constant 0 : index
    %c0_3 = arith.constant 0 : index
    %1 = vector.load %arg4[%c0_1, %c0_2, %c0_3] : memref<1x4x256xbf16, #tpu.memory_space<vmem>>, vector<1x4x256xbf16>
    %2 = vector.shape_cast %1 : vector<1x4x256xbf16> to vector<4x256xbf16>
    %cst = arith.constant dense<0.000000e+00> : vector<8x256xf32>
    %3 = tpu.matmul %0, %2, %cst {dimension_numbers = #tpu.dot_dimension_numbers<[1], [0], [0], [1], [0, 0, 1, 1], [], []>} : vector<8x4xbf16>, vector<4x256xbf16>, vector<8x256xf32> -> vector<8x256xf32>
    %4 = arith.truncf %3 : vector<8x256xf32> to vector<8x256xbf16>
    %c0_4 = arith.constant 0 : index
    %c0_5 = arith.constant 0 : index
    %c0_6 = arith.constant 0 : index
    %5 = vector.load %arg5[%c0_4, %c0_5, %c0_6] : memref<1x8x256xbf16, #tpu.memory_space<vmem>>, vector<1x8x256xbf16>
    %6 = vector.shape_cast %5 : vector<1x8x256xbf16> to vector<8x256xbf16>
    %7 = vector.shape_cast %4 : vector<8x256xbf16> to vector<1x8x256xbf16>
    tpu.vector_store %arg5[%c0_4, %c0_5, %c0_6], %7 {strides = array<i32>} : memref<1x8x256xbf16, #tpu.memory_space<vmem>>, vector<1x8x256xbf16>,
    return
  }
  func.func @transform_0(%arg0: i32, %arg1: i32, %arg2: i32) -> (i32, i32) {
    %c0_i32 = arith.constant 0 : i32
    %c0_i32_0 = arith.constant 0 : i32
    return %arg1, %c0_i32 : i32, i32
  }
  func.func @transform_1(%arg0: i32, %arg1: i32, %arg2: i32) -> (i32, i32, i32) {
    %c0_i32 = arith.constant 0 : i32
    %c0_i32_0 = arith.constant 0 : i32
    return %arg0, %c0_i32, %arg2 : i32, i32, i32
  }
  func.func @transform_2(%arg0: i32, %arg1: i32, %arg2: i32) -> (i32, i32, i32) {
    %c0_i32 = arith.constant 0 : i32
    return %arg0, %arg1, %arg2 : i32, i32, i32
  }
}

module attributes {stable_mosaic.version = 11 : i64} {
  func.func @_mm2_bn_act_kernel(%arg0: i32, %arg1: memref<128x288xbf16, #tpu.memory_space<vmem>>, %arg2: memref<128x72xbf16, #tpu.memory_space<vmem>>, %arg3: memref<288x128xbf16, #tpu.memory_space<vmem>>, %arg4: memref<72x128xbf16, #tpu.memory_space<vmem>>, %arg5: memref<1x128xf32, #tpu.memory_space<vmem>>, %arg6: memref<1x128xf32, #tpu.memory_space<vmem>>, %arg7: memref<128x128xbf16, #tpu.memory_space<vmem>>) attributes {dimension_semantics = [#tpu.dimension_semantics<parallel>], iteration_bounds = array<i64: 1>, scalar_prefetch = 0 : i64, scratch_operands = 0 : i64, tpu.core_type = #tpu.core_type<tc>, window_params = [{transform_indices = @transform_0, window_bounds = array<i64: 128, 288>}, {transform_indices = @transform_1, window_bounds = array<i64: 128, 72>}, {pipeline_mode = #tpu.pipeline_mode<synchronous>, transform_indices = @transform_2, window_bounds = array<i64: 288, 128>}, {pipeline_mode = #tpu.pipeline_mode<synchronous>, transform_indices = @transform_3, window_bounds = array<i64: 72, 128>}, {pipeline_mode = #tpu.pipeline_mode<synchronous>, transform_indices = @transform_4, window_bounds = array<i64: 1, 128>}, {pipeline_mode = #tpu.pipeline_mode<synchronous>, transform_indices = @transform_5, window_bounds = array<i64: 1, 128>}, {transform_indices = @transform_6, window_bounds = array<i64: 128, 128>}]} {
    %c0 = arith.constant 0 : index
    %c0_0 = arith.constant 0 : index
    %0 = vector.load %arg1[%c0, %c0_0] : memref<128x288xbf16, #tpu.memory_space<vmem>>, vector<128x288xbf16>
    %c0_1 = arith.constant 0 : index
    %c0_2 = arith.constant 0 : index
    %1 = vector.load %arg3[%c0_1, %c0_2] : memref<288x128xbf16, #tpu.memory_space<vmem>>, vector<288x128xbf16>
    %cst = arith.constant dense<0.000000e+00> : vector<128x128xf32>
    %2 = tpu.matmul %0, %1, %cst {dimension_numbers = #tpu.dot_dimension_numbers<[1], [0], [0], [1], [0, 0, 1, 1], [], []>} : vector<128x288xbf16>, vector<288x128xbf16>, vector<128x128xf32> -> vector<128x128xf32>
    %c0_3 = arith.constant 0 : index
    %c0_4 = arith.constant 0 : index
    %3 = vector.load %arg2[%c0_3, %c0_4] : memref<128x72xbf16, #tpu.memory_space<vmem>>, vector<128x72xbf16>
    %c0_5 = arith.constant 0 : index
    %c0_6 = arith.constant 0 : index
    %4 = vector.load %arg4[%c0_5, %c0_6] : memref<72x128xbf16, #tpu.memory_space<vmem>>, vector<72x128xbf16>
    %cst_7 = arith.constant dense<0.000000e+00> : vector<128x128xf32>
    %5 = tpu.matmul %3, %4, %cst_7 {dimension_numbers = #tpu.dot_dimension_numbers<[1], [0], [0], [1], [0, 0, 1, 1], [], []>} : vector<128x72xbf16>, vector<72x128xbf16>, vector<128x128xf32> -> vector<128x128xf32>
    %6 = arith.addf %2, %5 : vector<128x128xf32>
    %c0_8 = arith.constant 0 : index
    %c0_9 = arith.constant 0 : index
    %7 = vector.load %arg5[%c0_8, %c0_9] : memref<1x128xf32, #tpu.memory_space<vmem>>, vector<1x128xf32>
    %8 = vector.broadcast %7 : vector<1x128xf32> to vector<128x128xf32>
    %9 = arith.mulf %6, %8 : vector<128x128xf32>
    %c0_10 = arith.constant 0 : index
    %c0_11 = arith.constant 0 : index
    %10 = vector.load %arg6[%c0_10, %c0_11] : memref<1x128xf32, #tpu.memory_space<vmem>>, vector<1x128xf32>
    %11 = vector.broadcast %10 : vector<1x128xf32> to vector<128x128xf32>
    %12 = arith.addf %9, %11 : vector<128x128xf32>
    %cst_12 = arith.constant 0.000000e+00 : f32
    %13 = vector.broadcast %cst_12 : f32 to vector<128x128xf32>
    %14 = arith.maximumf %12, %13 : vector<128x128xf32>
    %15 = arith.truncf %14 : vector<128x128xf32> to vector<128x128xbf16>
    %c0_13 = arith.constant 0 : index
    %c0_14 = arith.constant 0 : index
    %16 = vector.load %arg7[%c0_13, %c0_14] : memref<128x128xbf16, #tpu.memory_space<vmem>>, vector<128x128xbf16>
    tpu.vector_store %arg7[%c0_13, %c0_14], %15 {strides = array<i32>} : memref<128x128xbf16, #tpu.memory_space<vmem>>, vector<128x128xbf16>,
    return
  }
  func.func @transform_0(%arg0: i32) -> (i32, i32) {
    %c0_i32 = arith.constant 0 : i32
    %c0_i32_0 = arith.constant 0 : i32
    return %arg0, %c0_i32 : i32, i32
  }
  func.func @transform_1(%arg0: i32) -> (i32, i32) {
    %c0_i32 = arith.constant 0 : i32
    %c0_i32_0 = arith.constant 0 : i32
    return %arg0, %c0_i32 : i32, i32
  }
  func.func @transform_2(%arg0: i32) -> (i32, i32) {
    %c0_i32 = arith.constant 0 : i32
    %c0_i32_0 = arith.constant 0 : i32
    %c0_i32_1 = arith.constant 0 : i32
    return %c0_i32, %c0_i32_0 : i32, i32
  }
  func.func @transform_3(%arg0: i32) -> (i32, i32) {
    %c0_i32 = arith.constant 0 : i32
    %c0_i32_0 = arith.constant 0 : i32
    %c0_i32_1 = arith.constant 0 : i32
    return %c0_i32, %c0_i32_0 : i32, i32
  }
  func.func @transform_4(%arg0: i32) -> (i32, i32) {
    %c0_i32 = arith.constant 0 : i32
    %c0_i32_0 = arith.constant 0 : i32
    %c0_i32_1 = arith.constant 0 : i32
    return %c0_i32, %c0_i32_0 : i32, i32
  }
  func.func @transform_5(%arg0: i32) -> (i32, i32) {
    %c0_i32 = arith.constant 0 : i32
    %c0_i32_0 = arith.constant 0 : i32
    %c0_i32_1 = arith.constant 0 : i32
    return %c0_i32, %c0_i32_0 : i32, i32
  }
  func.func @transform_6(%arg0: i32) -> (i32, i32) {
    %c0_i32 = arith.constant 0 : i32
    %c0_i32_0 = arith.constant 0 : i32
    return %arg0, %c0_i32 : i32, i32
  }
}

module attributes {stable_mosaic.version = 11 : i64} {
  func.func @_mm_bn_act_kernel(%arg0: i32, %arg1: memref<128x32xbf16, #tpu.memory_space<vmem>>, %arg2: memref<32x128xbf16, #tpu.memory_space<vmem>>, %arg3: memref<1x128xf32, #tpu.memory_space<vmem>>, %arg4: memref<1x128xf32, #tpu.memory_space<vmem>>, %arg5: memref<128x128xf32, #tpu.memory_space<vmem>>) attributes {dimension_semantics = [#tpu.dimension_semantics<parallel>], iteration_bounds = array<i64: 1>, scalar_prefetch = 0 : i64, scratch_operands = 0 : i64, tpu.core_type = #tpu.core_type<tc>, window_params = [{transform_indices = @transform_0, window_bounds = array<i64: 128, 32>}, {pipeline_mode = #tpu.pipeline_mode<synchronous>, transform_indices = @transform_1, window_bounds = array<i64: 32, 128>}, {pipeline_mode = #tpu.pipeline_mode<synchronous>, transform_indices = @transform_2, window_bounds = array<i64: 1, 128>}, {pipeline_mode = #tpu.pipeline_mode<synchronous>, transform_indices = @transform_3, window_bounds = array<i64: 1, 128>}, {transform_indices = @transform_4, window_bounds = array<i64: 128, 128>}]} {
    %c0 = arith.constant 0 : index
    %c0_0 = arith.constant 0 : index
    %0 = vector.load %arg1[%c0, %c0_0] : memref<128x32xbf16, #tpu.memory_space<vmem>>, vector<128x32xbf16>
    %c0_1 = arith.constant 0 : index
    %c0_2 = arith.constant 0 : index
    %1 = vector.load %arg2[%c0_1, %c0_2] : memref<32x128xbf16, #tpu.memory_space<vmem>>, vector<32x128xbf16>
    %cst = arith.constant dense<0.000000e+00> : vector<128x128xf32>
    %2 = tpu.matmul %0, %1, %cst {dimension_numbers = #tpu.dot_dimension_numbers<[1], [0], [0], [1], [0, 0, 1, 1], [], []>} : vector<128x32xbf16>, vector<32x128xbf16>, vector<128x128xf32> -> vector<128x128xf32>
    %c0_3 = arith.constant 0 : index
    %c0_4 = arith.constant 0 : index
    %3 = vector.load %arg3[%c0_3, %c0_4] : memref<1x128xf32, #tpu.memory_space<vmem>>, vector<1x128xf32>
    %4 = vector.broadcast %3 : vector<1x128xf32> to vector<128x128xf32>
    %5 = arith.mulf %2, %4 : vector<128x128xf32>
    %c0_5 = arith.constant 0 : index
    %c0_6 = arith.constant 0 : index
    %6 = vector.load %arg4[%c0_5, %c0_6] : memref<1x128xf32, #tpu.memory_space<vmem>>, vector<1x128xf32>
    %7 = vector.broadcast %6 : vector<1x128xf32> to vector<128x128xf32>
    %8 = arith.addf %5, %7 : vector<128x128xf32>
    %c0_7 = arith.constant 0 : index
    %c0_8 = arith.constant 0 : index
    %9 = vector.load %arg5[%c0_7, %c0_8] : memref<128x128xf32, #tpu.memory_space<vmem>>, vector<128x128xf32>
    tpu.vector_store %arg5[%c0_7, %c0_8], %8 {strides = array<i32>} : memref<128x128xf32, #tpu.memory_space<vmem>>, vector<128x128xf32>,
    return
  }
  func.func @transform_0(%arg0: i32) -> (i32, i32) {
    %c0_i32 = arith.constant 0 : i32
    %c0_i32_0 = arith.constant 0 : i32
    return %arg0, %c0_i32 : i32, i32
  }
  func.func @transform_1(%arg0: i32) -> (i32, i32) {
    %c0_i32 = arith.constant 0 : i32
    %c0_i32_0 = arith.constant 0 : i32
    %c0_i32_1 = arith.constant 0 : i32
    return %c0_i32, %c0_i32_0 : i32, i32
  }
  func.func @transform_2(%arg0: i32) -> (i32, i32) {
    %c0_i32 = arith.constant 0 : i32
    %c0_i32_0 = arith.constant 0 : i32
    %c0_i32_1 = arith.constant 0 : i32
    return %c0_i32, %c0_i32_0 : i32, i32
  }
  func.func @transform_3(%arg0: i32) -> (i32, i32) {
    %c0_i32 = arith.constant 0 : i32
    %c0_i32_0 = arith.constant 0 : i32
    %c0_i32_1 = arith.constant 0 : i32
    return %c0_i32, %c0_i32_0 : i32, i32
  }
  func.func @transform_4(%arg0: i32) -> (i32, i32) {
    %c0_i32 = arith.constant 0 : i32
    %c0_i32_0 = arith.constant 0 : i32
    return %arg0, %c0_i32 : i32, i32
  }
}

module attributes {stable_mosaic.version = 11 : i64} {
  func.func @_resize_pass_kernel(%arg0: i32, %arg1: i32, %arg2: i32, %arg3: memref<16x8xbf16, #tpu.memory_space<vmem>>, %arg4: memref<1x8x168xbf16, #tpu.memory_space<vmem>>, %arg5: memref<1x16x168xbf16, #tpu.memory_space<vmem>>) attributes {dimension_semantics = [#tpu.dimension_semantics<parallel>, #tpu.dimension_semantics<parallel>, #tpu.dimension_semantics<parallel>], iteration_bounds = array<i64: 2, 1, 1>, scalar_prefetch = 0 : i64, scratch_operands = 0 : i64, tpu.core_type = #tpu.core_type<tc>, window_params = [{transform_indices = @transform_0, window_bounds = array<i64: 16, 8>}, {transform_indices = @transform_1, window_bounds = array<i64: 1, 8, 168>}, {transform_indices = @transform_2, window_bounds = array<i64: 1, 16, 168>}]} {
    %c0 = arith.constant 0 : index
    %c0_0 = arith.constant 0 : index
    %0 = vector.load %arg3[%c0, %c0_0] : memref<16x8xbf16, #tpu.memory_space<vmem>>, vector<16x8xbf16>
    %c0_1 = arith.constant 0 : index
    %c0_2 = arith.constant 0 : index
    %c0_3 = arith.constant 0 : index
    %1 = vector.load %arg4[%c0_1, %c0_2, %c0_3] : memref<1x8x168xbf16, #tpu.memory_space<vmem>>, vector<1x8x168xbf16>
    %2 = vector.shape_cast %1 : vector<1x8x168xbf16> to vector<8x168xbf16>
    %cst = arith.constant dense<0.000000e+00> : vector<16x168xf32>
    %3 = tpu.matmul %0, %2, %cst {dimension_numbers = #tpu.dot_dimension_numbers<[1], [0], [0], [1], [0, 0, 1, 1], [], []>} : vector<16x8xbf16>, vector<8x168xbf16>, vector<16x168xf32> -> vector<16x168xf32>
    %4 = arith.truncf %3 : vector<16x168xf32> to vector<16x168xbf16>
    %c0_4 = arith.constant 0 : index
    %c0_5 = arith.constant 0 : index
    %c0_6 = arith.constant 0 : index
    %5 = vector.load %arg5[%c0_4, %c0_5, %c0_6] : memref<1x16x168xbf16, #tpu.memory_space<vmem>>, vector<1x16x168xbf16>
    %6 = vector.shape_cast %5 : vector<1x16x168xbf16> to vector<16x168xbf16>
    %7 = vector.shape_cast %4 : vector<16x168xbf16> to vector<1x16x168xbf16>
    tpu.vector_store %arg5[%c0_4, %c0_5, %c0_6], %7 {strides = array<i32>} : memref<1x16x168xbf16, #tpu.memory_space<vmem>>, vector<1x16x168xbf16>,
    return
  }
  func.func @transform_0(%arg0: i32, %arg1: i32, %arg2: i32) -> (i32, i32) {
    %c0_i32 = arith.constant 0 : i32
    %c0_i32_0 = arith.constant 0 : i32
    return %arg1, %c0_i32 : i32, i32
  }
  func.func @transform_1(%arg0: i32, %arg1: i32, %arg2: i32) -> (i32, i32, i32) {
    %c0_i32 = arith.constant 0 : i32
    %c0_i32_0 = arith.constant 0 : i32
    return %arg0, %c0_i32, %arg2 : i32, i32, i32
  }
  func.func @transform_2(%arg0: i32, %arg1: i32, %arg2: i32) -> (i32, i32, i32) {
    %c0_i32 = arith.constant 0 : i32
    return %arg0, %arg1, %arg2 : i32, i32, i32
  }
}

module attributes {stable_mosaic.version = 11 : i64} {
  func.func @_resize_pass_kernel(%arg0: i32, %arg1: i32, %arg2: i32, %arg3: memref<16x8xbf16, #tpu.memory_space<vmem>>, %arg4: memref<1x8x336xbf16, #tpu.memory_space<vmem>>, %arg5: memref<1x16x336xf32, #tpu.memory_space<vmem>>) attributes {dimension_semantics = [#tpu.dimension_semantics<parallel>, #tpu.dimension_semantics<parallel>, #tpu.dimension_semantics<parallel>], iteration_bounds = array<i64: 2, 1, 1>, scalar_prefetch = 0 : i64, scratch_operands = 0 : i64, tpu.core_type = #tpu.core_type<tc>, window_params = [{transform_indices = @transform_0, window_bounds = array<i64: 16, 8>}, {transform_indices = @transform_1, window_bounds = array<i64: 1, 8, 336>}, {transform_indices = @transform_2, window_bounds = array<i64: 1, 16, 336>}]} {
    %c0 = arith.constant 0 : index
    %c0_0 = arith.constant 0 : index
    %0 = vector.load %arg3[%c0, %c0_0] : memref<16x8xbf16, #tpu.memory_space<vmem>>, vector<16x8xbf16>
    %c0_1 = arith.constant 0 : index
    %c0_2 = arith.constant 0 : index
    %c0_3 = arith.constant 0 : index
    %1 = vector.load %arg4[%c0_1, %c0_2, %c0_3] : memref<1x8x336xbf16, #tpu.memory_space<vmem>>, vector<1x8x336xbf16>
    %2 = vector.shape_cast %1 : vector<1x8x336xbf16> to vector<8x336xbf16>
    %cst = arith.constant dense<0.000000e+00> : vector<16x336xf32>
    %3 = tpu.matmul %0, %2, %cst {dimension_numbers = #tpu.dot_dimension_numbers<[1], [0], [0], [1], [0, 0, 1, 1], [], []>} : vector<16x8xbf16>, vector<8x336xbf16>, vector<16x336xf32> -> vector<16x336xf32>
    %c0_4 = arith.constant 0 : index
    %c0_5 = arith.constant 0 : index
    %c0_6 = arith.constant 0 : index
    %4 = vector.load %arg5[%c0_4, %c0_5, %c0_6] : memref<1x16x336xf32, #tpu.memory_space<vmem>>, vector<1x16x336xf32>
    %5 = vector.shape_cast %4 : vector<1x16x336xf32> to vector<16x336xf32>
    %6 = vector.shape_cast %3 : vector<16x336xf32> to vector<1x16x336xf32>
    tpu.vector_store %arg5[%c0_4, %c0_5, %c0_6], %6 {strides = array<i32>} : memref<1x16x336xf32, #tpu.memory_space<vmem>>, vector<1x16x336xf32>,
    return
  }
  func.func @transform_0(%arg0: i32, %arg1: i32, %arg2: i32) -> (i32, i32) {
    %c0_i32 = arith.constant 0 : i32
    %c0_i32_0 = arith.constant 0 : i32
    return %arg1, %c0_i32 : i32, i32
  }
  func.func @transform_1(%arg0: i32, %arg1: i32, %arg2: i32) -> (i32, i32, i32) {
    %c0_i32 = arith.constant 0 : i32
    %c0_i32_0 = arith.constant 0 : i32
    return %arg0, %c0_i32, %arg2 : i32, i32, i32
  }
  func.func @transform_2(%arg0: i32, %arg1: i32, %arg2: i32) -> (i32, i32, i32) {
    %c0_i32 = arith.constant 0 : i32
    return %arg0, %arg1, %arg2 : i32, i32, i32
  }
}

</mosaic_0001>

<llo_original>
// kernel: deeplab_forward.21
$region0: #{deeplab_forward.21}
  #allocation0 [shape = 'u32[]', space=smem, size = 0x4, offset = 0x4, fixed_abs, tag = 'smem constant byte address 0x4 - core index']
  #allocation1 [shape = 'u32[144,128]{1,0:T(1,128)}', space=vmem, size = 0x12000, scoped, tag = 'internal scratch']
  %s0 = inlined_call_operand.vmem [shape: bf16[128,16], index: 0, kind: input, shape index: {}]
  %s1 = inlined_call_operand.vmem [shape: bf16[16,128], index: 1, kind: input, shape index: {}]
  %s2 = inlined_call_operand.vmem [shape: f32[1,128], index: 2, kind: input, shape index: {}]
  %s3 = inlined_call_operand.vmem [shape: f32[1,128], index: 3, kind: input, shape index: {}]
  %s4 = inlined_call_operand.vmem [shape: bf16[128,128], index: 4, kind: output, shape index: {}]
  %s5 = sld [smem:[#allocation0]]
  $region26: #{deeplab_forward.21} parent=0
    _
  %s7 = ssub.s32 1, %s5
  %s8 = scalar_select 0, %s7, %s5
  // Predicated region
  $region2: #{deeplab_forward.21} parent=0 // pred_check
    _
  $region3: #{deeplab_forward.21} parent=0 // pred_check_branch
    %10 = sbr.rel (0) target = $region5
  $region4: #{deeplab_forward.21} parent=0 // pred_region
    _
  $region5: #{deeplab_forward.21} parent=0 // pred_fallthru
    _
  // Predicated region
  $region6: #{deeplab_forward.21} parent=0 // pred_check
    _
  $region7: #{deeplab_forward.21} parent=0 // pred_check_branch
    %12 = sbr.rel (0) target = $region9
  $region8: #{deeplab_forward.21} parent=0 // pred_region
    _
  $region9: #{deeplab_forward.21} parent=0 // pred_fallthru
    _
  // Predicated region
  $region10: #{deeplab_forward.21} parent=0 // pred_check
    _
  $region11: #{deeplab_forward.21} parent=0 // pred_check_branch
    %14 = sbr.rel (0) target = $region13
  $region12: #{deeplab_forward.21} parent=0 // pred_region
    _
  $region13: #{deeplab_forward.21} parent=0 // pred_fallthru
    _
  // Predicated region
  $region14: #{deeplab_forward.21} parent=0 // pred_check
    _
  $region15: #{deeplab_forward.21} parent=0 // pred_check_branch
    %16 = sbr.rel (0) target = $region17
  $region16: #{deeplab_forward.21} parent=0 // pred_region
    _
  $region17: #{deeplab_forward.21} parent=0 // pred_fallthru
    _
  %v18 = vld [vmem:[%s0] sm:$0xf]
  %v19 = vld [vmem:[%s0 + $0x4] sm:$0xf]
  %v20 = vld [vmem:[%s0 + $0x8] sm:$0xf]
  %v21 = vld [vmem:[%s0 + $0xc] sm:$0xf]
  %v22 = vld [vmem:[%s0 + $0x10] sm:$0xf]
  %v23 = vld [vmem:[%s0 + $0x14] sm:$0xf]
  %v24 = vld [vmem:[%s0 + $0x18] sm:$0xf]
  %v25 = vld [vmem:[%s0 + $0x1c] sm:$0xf]
  %v26 = vld [vmem:[%s0 + $0x20] sm:$0xf]
  %v27 = vld [vmem:[%s0 + $0x24] sm:$0xf]
  %v28 = vld [vmem:[%s0 + $0x28] sm:$0xf]
  %v29 = vld [vmem:[%s0 + $0x2c] sm:$0xf]
  %v30 = vld [vmem:[%s0 + $0x30] sm:$0xf]
  %v31 = vld [vmem:[%s0 + $0x34] sm:$0xf]
  %v32 = vld [vmem:[%s0 + $0x38] sm:$0xf]
  %v33 = vld [vmem:[%s0 + $0x3c] sm:$0xf]
  %v34 = vld [vmem:[%s1] sm:$0xf]
  %v35 = vld [vmem:[%s1 + $0x4] sm:$0xf]
  %v52 = vunpack.c.l.b16 %v18
  %v53 = vunpack.c.l.b16 %v19
  %v54 = vunpack.c.l.b16 %v20
  %v55 = vunpack.c.l.b16 %v21
  %v56 = vunpack.c.l.b16 %v22
  %v57 = vunpack.c.l.b16 %v23
  %v58 = vunpack.c.l.b16 %v24
  %v59 = vunpack.c.l.b16 %v25
  %v60 = vunpack.c.l.b16 %v26
  %v61 = vunpack.c.l.b16 %v27
  %v62 = vunpack.c.l.b16 %v28
  %v63 = vunpack.c.l.b16 %v29
  %v64 = vunpack.c.l.b16 %v30
  %v65 = vunpack.c.l.b16 %v31
  %v66 = vunpack.c.l.b16 %v32
  %v67 = vunpack.c.l.b16 %v33
  %v68 = vpack.c.b16 %v53, %v52
  %v69 = vpack.c.b16 %v55, %v54
  %v70 = vpack.c.b16 %v57, %v56
  %v71 = vpack.c.b16 %v59, %v58
  %v72 = vpack.c.b16 %v61, %v60
  %v73 = vpack.c.b16 %v63, %v62
  %v74 = vpack.c.b16 %v65, %v64
  %v75 = vpack.c.b16 %v67, %v66
  %v78 = vunpack.c.l.b16 %v34
  %v79 = vunpack.c.l.b16 %v35
  %v80 = vpack.c.b16 %v79, %v78
  %vm82 = vcmask 130048
  %v84 = vsel %vm82, %v68, 0
  %v87 = vsel %vm82, %v69, 0
  %v90 = vsel %vm82, %v70, 0
  %v93 = vsel %vm82, %v71, 0
  %v96 = vsel %vm82, %v72, 0
  %v99 = vsel %vm82, %v73, 0
  %v102 = vsel %vm82, %v74, 0
  %v105 = vsel %vm82, %v75, 0
  %107 = vmatprep.subr.bf16.mxu0 0
  %108 = vmatpush1.bf16.msra.mxu0 %v80
  %109 = vmatprep.subr.bf16.mxu0 0
  %110 = vmatpush1.bf16.msra.mxu0 0
  %111 = vmatprep.subr.bf16.mxu0 0
  %112 = vmatpush1.bf16.msra.mxu0 0
  %113 = vmatprep.subr.bf16.mxu0 0
  %114 = vmatpush1.bf16.msra.mxu0 0
  %115 = vmatprep.subr.bf16.mxu0 0
  %116 = vmatpush1.bf16.msra.mxu0 0
  %117 = vmatprep.subr.bf16.mxu0 0
  %118 = vmatpush1.bf16.msra.mxu0 0
  %119 = vmatprep.subr.bf16.mxu0 0
  %120 = vmatpush1.bf16.msra.mxu0 0
  %121 = vmatprep.subr.bf16.mxu0 0
  %122 = vmatpush1.bf16.msra.mxu0 0
  %123 = vmatprep.subr.bf16.mxu0 0
  %124 = vmatpush1.bf16.msra.mxu0 0
  %125 = vmatprep.subr.bf16.mxu0 0
  %126 = vmatpush1.bf16.msra.mxu0 0
  %127 = vmatprep.subr.bf16.mxu0 0
  %128 = vmatpush1.bf16.msra.mxu0 0
  %129 = vmatprep.subr.bf16.mxu0 0
  %130 = vmatpush1.bf16.msra.mxu0 0
  %131 = vmatprep.subr.bf16.mxu0 0
  %132 = vmatpush1.bf16.msra.mxu0 0
  %133 = vmatprep.subr.bf16.mxu0 0
  %134 = vmatpush1.bf16.msra.mxu0 0
  %135 = vmatprep.subr.bf16.mxu0 0
  %136 = vmatpush1.bf16.msra.mxu0 0
  %137 = vmatprep.subr.bf16.mxu0 0
  %138 = vmatpush1.bf16.msra.mxu0 0
  %139 = vmatprep.mubr.bf16.mxu0 0
  %140 = vmatmul.mubr.bf16.gmra.mrb[0].mxu0 %v84
  %v141 = vpop.f32.mrb[0].mxu0
  %v142 = vadd.f32 0.0, %v141
  %v143 = vpop.f32.mrb[0].mxu0
  %v144 = vpop.f32.mrb[0].mxu0
  %v145 = vadd.f32 0.0, %v144
  %v146 = vpop.f32.mrb[0].mxu0
  %147 = vmatprep.mubr.bf16.mxu0 0
  %148 = vmatmul.mubr.bf16.gmra.mrb[0].mxu0 %v87
  %v149 = vpop.f32.mrb[0].mxu0
  %v150 = vadd.f32 0.0, %v149
  %v151 = vpop.f32.mrb[0].mxu0
  %v152 = vpop.f32.mrb[0].mxu0
  %v153 = vadd.f32 0.0, %v152
  %v154 = vpop.f32.mrb[0].mxu0
  %155 = vmatprep.mubr.bf16.mxu0 0
  %156 = vmatmul.mubr.bf16.gmra.mrb[0].mxu0 %v90
  %v157 = vpop.f32.mrb[0].mxu0
  %v158 = vadd.f32 0.0, %v157
  %v159 = vpop.f32.mrb[0].mxu0
  %v160 = vpop.f32.mrb[0].mxu0
  %v161 = vadd.f32 0.0, %v160
  %v162 = vpop.f32.mrb[0].mxu0
  %163 = vmatprep.mubr.bf16.mxu0 0
  %164 = vmatmul.mubr.bf16.gmra.mrb[0].mxu0 %v93
  %v165 = vpop.f32.mrb[0].mxu0
  %v166 = vadd.f32 0.0, %v165
  %v167 = vpop.f32.mrb[0].mxu0
  %v168 = vpop.f32.mrb[0].mxu0
  %v169 = vadd.f32 0.0, %v168
  %v170 = vpop.f32.mrb[0].mxu0
  %171 = vmatprep.mubr.bf16.mxu0 0
  %172 = vmatmul.mubr.bf16.gmra.mrb[0].mxu0 %v96
  %v173 = vpop.f32.mrb[0].mxu0
  %v174 = vadd.f32 0.0, %v173
  %v175 = vpop.f32.mrb[0].mxu0
  %v176 = vpop.f32.mrb[0].mxu0
  %v177 = vadd.f32 0.0, %v176
  %v178 = vpop.f32.mrb[0].mxu0
  %179 = vmatprep.mubr.bf16.mxu0 0
  %180 = vmatmul.mubr.bf16.gmra.mrb[0].mxu0 %v99
  %v181 = vpop.f32.mrb[0].mxu0
  %v182 = vadd.f32 0.0, %v181
  %v183 = vpop.f32.mrb[0].mxu0
  %v184 = vpop.f32.mrb[0].mxu0
  %v185 = vadd.f32 0.0, %v184
  %v186 = vpop.f32.mrb[0].mxu0
  %187 = vmatprep.mubr.bf16.mxu0 0
  %188 = vmatmul.mubr.bf16.gmra.mrb[0].mxu0 %v102
  %v189 = vpop.f32.mrb[0].mxu0
  %v190 = vadd.f32 0.0, %v189
  %v191 = vpop.f32.mrb[0].mxu0
  %v192 = vpop.f32.mrb[0].mxu0
  %v193 = vadd.f32 0.0, %v192
  %v194 = vpop.f32.mrb[0].mxu0
  %195 = vmatprep.mubr.bf16.mxu0 0
  %196 = vmatmul.mubr.bf16.gmra.mrb[0].mxu0 %v105
  %v197 = vpop.f32.mrb[0].mxu0
  %v198 = vadd.f32 0.0, %v197
  %v199 = vpop.f32.mrb[0].mxu0
  %v200 = vpop.f32.mrb[0].mxu0
  %v201 = vadd.f32 0.0, %v200
  %v202 = vpop.f32.mrb[0].mxu0
  %203 = vdwg.mxu0
  %v204 = vld [vmem:[%s2] sm:$0x1]
  %v206 = vlaneseq
  %v207 = vshrl.u32 %v206, 7
  %v208 = vsub.s32 0, %v207
  %v209 = vrot.slane %v204, %v208
  %v211 = vmul.f32 %v142, %v209
  %v212 = vmul.f32 %v145, %v209
  %v213 = vmul.f32 %v150, %v209
  %v214 = vmul.f32 %v153, %v209
  %v215 = vmul.f32 %v158, %v209
  %v216 = vmul.f32 %v161, %v209
  %v217 = vmul.f32 %v166, %v209
  %v218 = vmul.f32 %v169, %v209
  %v219 = vmul.f32 %v174, %v209
  %v220 = vmul.f32 %v177, %v209
  %v221 = vmul.f32 %v182, %v209
  %v222 = vmul.f32 %v185, %v209
  %v223 = vmul.f32 %v190, %v209
  %v224 = vmul.f32 %v193, %v209
  %v225 = vmul.f32 %v198, %v209
  %v226 = vmul.f32 %v201, %v209
  %v227 = vld [vmem:[%s3] sm:$0x1]
  %v229 = vlaneseq
  %v230 = vshrl.u32 %v229, 7
  %v231 = vsub.s32 0, %v230
  %v232 = vrot.slane %v227, %v231
  %v234 = vadd.f32 %v211, %v232
  %v235 = vadd.f32 %v212, %v232
  %v236 = vadd.f32 %v213, %v232
  %v237 = vadd.f32 %v214, %v232
  %v238 = vadd.f32 %v215, %v232
  %v239 = vadd.f32 %v216, %v232
  %v240 = vadd.f32 %v217, %v232
  %v241 = vadd.f32 %v218, %v232
  %v242 = vadd.f32 %v219, %v232
  %v243 = vadd.f32 %v220, %v232
  %v244 = vadd.f32 %v221, %v232
  %v245 = vadd.f32 %v222, %v232
  %v246 = vadd.f32 %v223, %v232
  %v247 = vadd.f32 %v224, %v232
  %v248 = vadd.f32 %v225, %v232
  %v249 = vadd.f32 %v226, %v232
  %v250 = vmax.f32 %v234, 0.0
  %v251 = vmax.f32 %v235, 0.0
  %v252 = vmax.f32 %v236, 0.0
  %v253 = vmax.f32 %v237, 0.0
  %v254 = vmax.f32 %v238, 0.0
  %v255 = vmax.f32 %v239, 0.0
  %v256 = vmax.f32 %v240, 0.0
  %v257 = vmax.f32 %v241, 0.0
  %v258 = vmax.f32 %v242, 0.0
  %v259 = vmax.f32 %v243, 0.0
  %v260 = vmax.f32 %v244, 0.0
  %v261 = vmax.f32 %v245, 0.0
  %v262 = vmax.f32 %v246, 0.0
  %v263 = vmax.f32 %v247, 0.0
  %v264 = vmax.f32 %v248, 0.0
  %v265 = vmax.f32 %v249, 0.0
  %v266 = vpack.c.bf16 %v251, %v250
  %v267 = vpack.c.bf16 %v253, %v252
  %v268 = vpack.c.bf16 %v255, %v254
  %v269 = vpack.c.bf16 %v257, %v256
  %v270 = vpack.c.bf16 %v259, %v258
  %v271 = vpack.c.bf16 %v261, %v260
  %v272 = vpack.c.bf16 %v263, %v262
  %v273 = vpack.c.bf16 %v265, %v264
  %v282 = vunpack.c.l.b16 %v266
  %v283 = vunpack.c.h.b16 %v266
  %v284 = vunpack.c.l.b16 %v267
  %v285 = vunpack.c.h.b16 %v267
  %v286 = vunpack.c.l.b16 %v268
  %v287 = vunpack.c.h.b16 %v268
  %v288 = vunpack.c.l.b16 %v269
  %v289 = vunpack.c.h.b16 %v269
  %v290 = vunpack.c.l.b16 %v270
  %v291 = vunpack.c.h.b16 %v270
  %v292 = vunpack.c.l.b16 %v271
  %v293 = vunpack.c.h.b16 %v271
  %v294 = vunpack.c.l.b16 %v272
  %v295 = vunpack.c.h.b16 %v272
  %v296 = vunpack.c.l.b16 %v273
  %v297 = vunpack.c.h.b16 %v273
  %v298 = vpack.c.b16 %v282, %v282
  %v299 = vpack.c.b16 %v283, %v283
  %v300 = vpack.c.b16 %v284, %v284
  %v301 = vpack.c.b16 %v285, %v285
  %v302 = vpack.c.b16 %v286, %v286
  %v303 = vpack.c.b16 %v287, %v287
  %v304 = vpack.c.b16 %v288, %v288
  %v305 = vpack.c.b16 %v289, %v289
  %v306 = vpack.c.b16 %v290, %v290
  %v307 = vpack.c.b16 %v291, %v291
  %v308 = vpack.c.b16 %v292, %v292
  %v309 = vpack.c.b16 %v293, %v293
  %v310 = vpack.c.b16 %v294, %v294
  %v311 = vpack.c.b16 %v295, %v295
  %v312 = vpack.c.b16 %v296, %v296
  %v313 = vpack.c.b16 %v297, %v297
  %330 = vst [vmem:[%s4] sm:$0xf] %v298
  %331 = vst [vmem:[%s4 + $0x4] sm:$0xf] %v299
  %332 = vst [vmem:[%s4 + $0x8] sm:$0xf] %v300
  %333 = vst [vmem:[%s4 + $0xc] sm:$0xf] %v301
  %334 = vst [vmem:[%s4 + $0x10] sm:$0xf] %v302
  %335 = vst [vmem:[%s4 + $0x14] sm:$0xf] %v303
  %336 = vst [vmem:[%s4 + $0x18] sm:$0xf] %v304
  %337 = vst [vmem:[%s4 + $0x1c] sm:$0xf] %v305
  %338 = vst [vmem:[%s4 + $0x20] sm:$0xf] %v306
  %339 = vst [vmem:[%s4 + $0x24] sm:$0xf] %v307
  %340 = vst [vmem:[%s4 + $0x28] sm:$0xf] %v308
  %341 = vst [vmem:[%s4 + $0x2c] sm:$0xf] %v309
  %342 = vst [vmem:[%s4 + $0x30] sm:$0xf] %v310
  %343 = vst [vmem:[%s4 + $0x34] sm:$0xf] %v311
  %344 = vst [vmem:[%s4 + $0x38] sm:$0xf] %v312
  %345 = vst [vmem:[%s4 + $0x3c] sm:$0xf] %v313
  // Predicated region
  $region18: #{deeplab_forward.21} parent=0 // pred_check
    _
  $region19: #{deeplab_forward.21} parent=0 // pred_check_branch
    %347 = sbr.rel (0) target = $region21
  $region20: #{deeplab_forward.21} parent=0 // pred_region
    _
  $region21: #{deeplab_forward.21} parent=0 // pred_fallthru
    _
  // Predicated region
  $region22: #{deeplab_forward.21} parent=0 // pred_check
    _
  $region23: #{deeplab_forward.21} parent=0 // pred_check_branch
    %349 = sbr.rel (0) target = $region25
  $region24: #{deeplab_forward.21} parent=0 // pred_region
    _
  $region25: #{deeplab_forward.21} parent=0 // pred_fallthru
    _

// kernel: deeplab_forward.13
$region0: #{deeplab_forward.13}
  #allocation0 [shape = 'u32[]', space=smem, size = 0x4, offset = 0x4, fixed_abs, tag = 'smem constant byte address 0x4 - core index']
  #allocation1 [shape = 'u32[144,128]{1,0:T(1,128)}', space=vmem, size = 0x12000, scoped, tag = 'internal scratch']
  %s0 = inlined_call_operand.vmem [shape: bf16[128,36], index: 0, kind: input, shape index: {}]
  %s1 = inlined_call_operand.vmem [shape: bf16[36,128], index: 1, kind: input, shape index: {}]
  %s2 = inlined_call_operand.vmem [shape: f32[1,128], index: 2, kind: input, shape index: {}]
  %s3 = inlined_call_operand.vmem [shape: f32[1,128], index: 3, kind: input, shape index: {}]
  %s4 = inlined_call_operand.vmem [shape: bf16[128,128], index: 4, kind: output, shape index: {}]
  %s5 = sld [smem:[#allocation0]]
  $region26: #{deeplab_forward.13} parent=0
    _
  %s7 = ssub.s32 1, %s5
  %s8 = scalar_select 0, %s7, %s5
  // Predicated region
  $region2: #{deeplab_forward.13} parent=0 // pred_check
    _
  $region3: #{deeplab_forward.13} parent=0 // pred_check_branch
    %10 = sbr.rel (0) target = $region5
  $region4: #{deeplab_forward.13} parent=0 // pred_region
    _
  $region5: #{deeplab_forward.13} parent=0 // pred_fallthru
    _
  // Predicated region
  $region6: #{deeplab_forward.13} parent=0 // pred_check
    _
  $region7: #{deeplab_forward.13} parent=0 // pred_check_branch
    %12 = sbr.rel (0) target = $region9
  $region8: #{deeplab_forward.13} parent=0 // pred_region
    _
  $region9: #{deeplab_forward.13} parent=0 // pred_fallthru
    _
  // Predicated region
  $region10: #{deeplab_forward.13} parent=0 // pred_check
    _
  $region11: #{deeplab_forward.13} parent=0 // pred_check_branch
    %14 = sbr.rel (0) target = $region13
  $region12: #{deeplab_forward.13} parent=0 // pred_region
    _
  $region13: #{deeplab_forward.13} parent=0 // pred_fallthru
    _
  // Predicated region
  $region14: #{deeplab_forward.13} parent=0 // pred_check
    _
  $region15: #{deeplab_forward.13} parent=0 // pred_check_branch
    %16 = sbr.rel (0) target = $region17
  $region16: #{deeplab_forward.13} parent=0 // pred_region
    _
  $region17: #{deeplab_forward.13} parent=0 // pred_fallthru
    _
  %v18 = vld [vmem:[%s0] sm:$0xf]
  %v19 = vld [vmem:[%s0 + $0x4] sm:$0xf]
  %v20 = vld [vmem:[%s0 + $0x8] sm:$0xf]
  %v21 = vld [vmem:[%s0 + $0xc] sm:$0xf]
  %v22 = vld [vmem:[%s0 + $0x10] sm:$0xf]
  %v23 = vld [vmem:[%s0 + $0x14] sm:$0xf]
  %v24 = vld [vmem:[%s0 + $0x18] sm:$0xf]
  %v25 = vld [vmem:[%s0 + $0x1c] sm:$0xf]
  %v26 = vld [vmem:[%s0 + $0x20] sm:$0xf]
  %v27 = vld [vmem:[%s0 + $0x24] sm:$0xf]
  %v28 = vld [vmem:[%s0 + $0x28] sm:$0xf]
  %v29 = vld [vmem:[%s0 + $0x2c] sm:$0xf]
  %v30 = vld [vmem:[%s0 + $0x30] sm:$0xf]
  %v31 = vld [vmem:[%s0 + $0x34] sm:$0xf]
  %v32 = vld [vmem:[%s0 + $0x38] sm:$0xf]
  %v33 = vld [vmem:[%s0 + $0x3c] sm:$0xf]
  %v34 = vld [vmem:[%s1] sm:$0xf]
  %v35 = vld [vmem:[%s1 + $0x4] sm:$0xf]
  %v36 = vld [vmem:[%s1 + $0x8] sm:$0xf]
  %v37 = vld [vmem:[%s1 + $0xc] sm:$0xf]
  %v38 = vld [vmem:[%s1 + $0x10] sm:$0x3]
  %v55 = vunpack.c.l.b16 %v18
  %v56 = vunpack.c.l.b16 %v19
  %v57 = vunpack.c.l.b16 %v20
  %v58 = vunpack.c.l.b16 %v21
  %v59 = vunpack.c.l.b16 %v22
  %v60 = vunpack.c.l.b16 %v23
  %v61 = vunpack.c.l.b16 %v24
  %v62 = vunpack.c.l.b16 %v25
  %v63 = vunpack.c.l.b16 %v26
  %v64 = vunpack.c.l.b16 %v27
  %v65 = vunpack.c.l.b16 %v28
  %v66 = vunpack.c.l.b16 %v29
  %v67 = vunpack.c.l.b16 %v30
  %v68 = vunpack.c.l.b16 %v31
  %v69 = vunpack.c.l.b16 %v32
  %v70 = vunpack.c.l.b16 %v33
  %v71 = vpack.c.b16 %v56, %v55
  %v72 = vpack.c.b16 %v58, %v57
  %v73 = vpack.c.b16 %v60, %v59
  %v74 = vpack.c.b16 %v62, %v61
  %v75 = vpack.c.b16 %v64, %v63
  %v76 = vpack.c.b16 %v66, %v65
  %v77 = vpack.c.b16 %v68, %v67
  %v78 = vpack.c.b16 %v70, %v69
  %v84 = vunpack.c.l.b16 %v34
  %v85 = vunpack.c.l.b16 %v35
  %v86 = vunpack.c.l.b16 %v36
  %v87 = vunpack.c.l.b16 %v37
  %v88 = vunpack.c.l.b16 %v38
  %v89 = vpack.c.b16 %v85, %v84
  %v90 = vpack.c.b16 %v87, %v86
  %v91 = vpack.c.b16 %v88, %v88
  %vm94 = vcmask 293888
  %v96 = vsel %vm94, %v71, 0
  %v99 = vsel %vm94, %v72, 0
  %v102 = vsel %vm94, %v73, 0
  %v105 = vsel %vm94, %v74, 0
  %v108 = vsel %vm94, %v75, 0
  %v111 = vsel %vm94, %v76, 0
  %v114 = vsel %vm94, %v77, 0
  %v117 = vsel %vm94, %v78, 0
  %vm119 = vcmask 1041408
  %v121 = vsel %vm119, %v91, 0
  %123 = vmatprep.subr.bf16.mxu0 0
  %124 = vmatpush1.bf16.msra.mxu0 %v89
  %125 = vmatprep.subr.bf16.mxu0 0
  %126 = vmatpush1.bf16.msra.mxu0 %v90
  %127 = vmatprep.subr.bf16.mxu0 0
  %128 = vmatpush1.bf16.msra.mxu0 %v121
  %129 = vmatprep.subr.bf16.mxu0 0
  %130 = vmatpush1.bf16.msra.mxu0 0
  %131 = vmatprep.subr.bf16.mxu0 0
  %132 = vmatpush1.bf16.msra.mxu0 0
  %133 = vmatprep.subr.bf16.mxu0 0
  %134 = vmatpush1.bf16.msra.mxu0 0
  %135 = vmatprep.subr.bf16.mxu0 0
  %136 = vmatpush1.bf16.msra.mxu0 0
  %137 = vmatprep.subr.bf16.mxu0 0
  %138 = vmatpush1.bf16.msra.mxu0 0
  %139 = vmatprep.subr.bf16.mxu0 0
  %140 = vmatpush1.bf16.msra.mxu0 0
  %141 = vmatprep.subr.bf16.mxu0 0
  %142 = vmatpush1.bf16.msra.mxu0 0
  %143 = vmatprep.subr.bf16.mxu0 0
  %144 = vmatpush1.bf16.msra.mxu0 0
  %145 = vmatprep.subr.bf16.mxu0 0
  %146 = vmatpush1.bf16.msra.mxu0 0
  %147 = vmatprep.subr.bf16.mxu0 0
  %148 = vmatpush1.bf16.msra.mxu0 0
  %149 = vmatprep.subr.bf16.mxu0 0
  %150 = vmatpush1.bf16.msra.mxu0 0
  %151 = vmatprep.subr.bf16.mxu0 0
  %152 = vmatpush1.bf16.msra.mxu0 0
  %153 = vmatprep.subr.bf16.mxu0 0
  %154 = vmatpush1.bf16.msra.mxu0 0
  %155 = vmatprep.mubr.bf16.mxu0 0
  %156 = vmatmul.mubr.bf16.gmra.mrb[0].mxu0 %v96
  %v157 = vpop.f32.mrb[0].mxu0
  %v158 = vadd.f32 0.0, %v157
  %v159 = vpop.f32.mrb[0].mxu0
  %v160 = vpop.f32.mrb[0].mxu0
  %v161 = vadd.f32 0.0, %v160
  %v162 = vpop.f32.mrb[0].mxu0
  %163 = vmatprep.mubr.bf16.mxu0 0
  %164 = vmatmul.mubr.bf16.gmra.mrb[0].mxu0 %v99
  %v165 = vpop.f32.mrb[0].mxu0
  %v166 = vadd.f32 0.0, %v165
  %v167 = vpop.f32.mrb[0].mxu0
  %v168 = vpop.f32.mrb[0].mxu0
  %v169 = vadd.f32 0.0, %v168
  %v170 = vpop.f32.mrb[0].mxu0
  %171 = vmatprep.mubr.bf16.mxu0 0
  %172 = vmatmul.mubr.bf16.gmra.mrb[0].mxu0 %v102
  %v173 = vpop.f32.mrb[0].mxu0
  %v174 = vadd.f32 0.0, %v173
  %v175 = vpop.f32.mrb[0].mxu0
  %v176 = vpop.f32.mrb[0].mxu0
  %v177 = vadd.f32 0.0, %v176
  %v178 = vpop.f32.mrb[0].mxu0
  %179 = vmatprep.mubr.bf16.mxu0 0
  %180 = vmatmul.mubr.bf16.gmra.mrb[0].mxu0 %v105
  %v181 = vpop.f32.mrb[0].mxu0
  %v182 = vadd.f32 0.0, %v181
  %v183 = vpop.f32.mrb[0].mxu0
  %v184 = vpop.f32.mrb[0].mxu0
  %v185 = vadd.f32 0.0, %v184
  %v186 = vpop.f32.mrb[0].mxu0
  %187 = vmatprep.mubr.bf16.mxu0 0
  %188 = vmatmul.mubr.bf16.gmra.mrb[0].mxu0 %v108
  %v189 = vpop.f32.mrb[0].mxu0
  %v190 = vadd.f32 0.0, %v189
  %v191 = vpop.f32.mrb[0].mxu0
  %v192 = vpop.f32.mrb[0].mxu0
  %v193 = vadd.f32 0.0, %v192
  %v194 = vpop.f32.mrb[0].mxu0
  %195 = vmatprep.mubr.bf16.mxu0 0
  %196 = vmatmul.mubr.bf16.gmra.mrb[0].mxu0 %v111
  %v197 = vpop.f32.mrb[0].mxu0
  %v198 = vadd.f32 0.0, %v197
  %v199 = vpop.f32.mrb[0].mxu0
  %v200 = vpop.f32.mrb[0].mxu0
  %v201 = vadd.f32 0.0, %v200
  %v202 = vpop.f32.mrb[0].mxu0
  %203 = vmatprep.mubr.bf16.mxu0 0
  %204 = vmatmul.mubr.bf16.gmra.mrb[0].mxu0 %v114
  %v205 = vpop.f32.mrb[0].mxu0
  %v206 = vadd.f32 0.0, %v205
  %v207 = vpop.f32.mrb[0].mxu0
  %v208 = vpop.f32.mrb[0].mxu0
  %v209 = vadd.f32 0.0, %v208
  %v210 = vpop.f32.mrb[0].mxu0
  %211 = vmatprep.mubr.bf16.mxu0 0
  %212 = vmatmul.mubr.bf16.gmra.mrb[0].mxu0 %v117
  %v213 = vpop.f32.mrb[0].mxu0
  %v214 = vadd.f32 0.0, %v213
  %v215 = vpop.f32.mrb[0].mxu0
  %v216 = vpop.f32.mrb[0].mxu0
  %v217 = vadd.f32 0.0, %v216
  %v218 = vpop.f32.mrb[0].mxu0
  %219 = vdwg.mxu0
  %v220 = vld [vmem:[%s2] sm:$0x1]
  %v222 = vlaneseq
  %v223 = vshrl.u32 %v222, 7
  %v224 = vsub.s32 0, %v223
  %v225 = vrot.slane %v220, %v224
  %v227 = vmul.f32 %v158, %v225
  %v228 = vmul.f32 %v161, %v225
  %v229 = vmul.f32 %v166, %v225
  %v230 = vmul.f32 %v169, %v225
  %v231 = vmul.f32 %v174, %v225
  %v232 = vmul.f32 %v177, %v225
  %v233 = vmul.f32 %v182, %v225
  %v234 = vmul.f32 %v185, %v225
  %v235 = vmul.f32 %v190, %v225
  %v236 = vmul.f32 %v193, %v225
  %v237 = vmul.f32 %v198, %v225
  %v238 = vmul.f32 %v201, %v225
  %v239 = vmul.f32 %v206, %v225
  %v240 = vmul.f32 %v209, %v225
  %v241 = vmul.f32 %v214, %v225
  %v242 = vmul.f32 %v217, %v225
  %v243 = vld [vmem:[%s3] sm:$0x1]
  %v245 = vlaneseq
  %v246 = vshrl.u32 %v245, 7
  %v247 = vsub.s32 0, %v246
  %v248 = vrot.slane %v243, %v247
  %v250 = vadd.f32 %v227, %v248
  %v251 = vadd.f32 %v228, %v248
  %v252 = vadd.f32 %v229, %v248
  %v253 = vadd.f32 %v230, %v248
  %v254 = vadd.f32 %v231, %v248
  %v255 = vadd.f32 %v232, %v248
  %v256 = vadd.f32 %v233, %v248
  %v257 = vadd.f32 %v234, %v248
  %v258 = vadd.f32 %v235, %v248
  %v259 = vadd.f32 %v236, %v248
  %v260 = vadd.f32 %v237, %v248
  %v261 = vadd.f32 %v238, %v248
  %v262 = vadd.f32 %v239, %v248
  %v263 = vadd.f32 %v240, %v248
  %v264 = vadd.f32 %v241, %v248
  %v265 = vadd.f32 %v242, %v248
  %v266 = vmax.f32 %v250, 0.0
  %v267 = vmax.f32 %v251, 0.0
  %v268 = vmax.f32 %v252, 0.0
  %v269 = vmax.f32 %v253, 0.0
  %v270 = vmax.f32 %v254, 0.0
  %v271 = vmax.f32 %v255, 0.0
  %v272 = vmax.f32 %v256, 0.0
  %v273 = vmax.f32 %v257, 0.0
  %v274 = vmax.f32 %v258, 0.0
  %v275 = vmax.f32 %v259, 0.0
  %v276 = vmax.f32 %v260, 0.0
  %v277 = vmax.f32 %v261, 0.0
  %v278 = vmax.f32 %v262, 0.0
  %v279 = vmax.f32 %v263, 0.0
  %v280 = vmax.f32 %v264, 0.0
  %v281 = vmax.f32 %v265, 0.0
  %v282 = vpack.c.bf16 %v267, %v266
  %v283 = vpack.c.bf16 %v269, %v268
  %v284 = vpack.c.bf16 %v271, %v270
  %v285 = vpack.c.bf16 %v273, %v272
  %v286 = vpack.c.bf16 %v275, %v274
  %v287 = vpack.c.bf16 %v277, %v276
  %v288 = vpack.c.bf16 %v279, %v278
  %v289 = vpack.c.bf16 %v281, %v280
  %v298 = vunpack.c.l.b16 %v282
  %v299 = vunpack.c.h.b16 %v282
  %v300 = vunpack.c.l.b16 %v283
  %v301 = vunpack.c.h.b16 %v283
  %v302 = vunpack.c.l.b16 %v284
  %v303 = vunpack.c.h.b16 %v284
  %v304 = vunpack.c.l.b16 %v285
  %v305 = vunpack.c.h.b16 %v285
  %v306 = vunpack.c.l.b16 %v286
  %v307 = vunpack.c.h.b16 %v286
  %v308 = vunpack.c.l.b16 %v287
  %v309 = vunpack.c.h.b16 %v287
  %v310 = vunpack.c.l.b16 %v288
  %v311 = vunpack.c.h.b16 %v288
  %v312 = vunpack.c.l.b16 %v289
  %v313 = vunpack.c.h.b16 %v289
  %v314 = vpack.c.b16 %v298, %v298
  %v315 = vpack.c.b16 %v299, %v299
  %v316 = vpack.c.b16 %v300, %v300
  %v317 = vpack.c.b16 %v301, %v301
  %v318 = vpack.c.b16 %v302, %v302
  %v319 = vpack.c.b16 %v303, %v303
  %v320 = vpack.c.b16 %v304, %v304
  %v321 = vpack.c.b16 %v305, %v305
  %v322 = vpack.c.b16 %v306, %v306
  %v323 = vpack.c.b16 %v307, %v307
  %v324 = vpack.c.b16 %v308, %v308
  %v325 = vpack.c.b16 %v309, %v309
  %v326 = vpack.c.b16 %v310, %v310
  %v327 = vpack.c.b16 %v311, %v311
  %v328 = vpack.c.b16 %v312, %v312
  %v329 = vpack.c.b16 %v313, %v313
  %346 = vst [vmem:[%s4] sm:$0xf] %v314
  %347 = vst [vmem:[%s4 + $0x4] sm:$0xf] %v315
  %348 = vst [vmem:[%s4 + $0x8] sm:$0xf] %v316
  %349 = vst [vmem:[%s4 + $0xc] sm:$0xf] %v317
  %350 = vst [vmem:[%s4 + $0x10] sm:$0xf] %v318
  %351 = vst [vmem:[%s4 + $0x14] sm:$0xf] %v319
  %352 = vst [vmem:[%s4 + $0x18] sm:$0xf] %v320
  %353 = vst [vmem:[%s4 + $0x1c] sm:$0xf] %v321
  %354 = vst [vmem:[%s4 + $0x20] sm:$0xf] %v322
  %355 = vst [vmem:[%s4 + $0x24] sm:$0xf] %v323
  %356 = vst [vmem:[%s4 + $0x28] sm:$0xf] %v324
  %357 = vst [vmem:[%s4 + $0x2c] sm:$0xf] %v325
  %358 = vst [vmem:[%s4 + $0x30] sm:$0xf] %v326
  %359 = vst [vmem:[%s4 + $0x34] sm:$0xf] %v327
  %360 = vst [vmem:[%s4 + $0x38] sm:$0xf] %v328
  %361 = vst [vmem:[%s4 + $0x3c] sm:$0xf] %v329
  // Predicated region
  $region18: #{deeplab_forward.13} parent=0 // pred_check
    _
  $region19: #{deeplab_forward.13} parent=0 // pred_check_branch
    %363 = sbr.rel (0) target = $region21
  $region20: #{deeplab_forward.13} parent=0 // pred_region
    _
  $region21: #{deeplab_forward.13} parent=0 // pred_fallthru
    _
  // Predicated region
  $region22: #{deeplab_forward.13} parent=0 // pred_check
    _
  $region23: #{deeplab_forward.13} parent=0 // pred_check_branch
    %365 = sbr.rel (0) target = $region25
  $region24: #{deeplab_forward.13} parent=0 // pred_region
    _
  $region25: #{deeplab_forward.13} parent=0 // pred_fallthru
    _

// kernel: deeplab_forward.14
$region0: #{deeplab_forward.14}
  #allocation0 [shape = 'u32[]', space=smem, size = 0x4, offset = 0x4, fixed_abs, tag = 'smem constant byte address 0x4 - core index']
  #allocation1 [shape = 'u32[144,128]{1,0:T(1,128)}', space=vmem, size = 0x12000, scoped, tag = 'internal scratch']
  %s0 = inlined_call_operand.vmem [shape: bf16[32,144], index: 0, kind: input, shape index: {}]
  %s1 = inlined_call_operand.vmem [shape: bf16[144,128], index: 1, kind: input, shape index: {}]
  %s2 = inlined_call_operand.vmem [shape: f32[1,128], index: 2, kind: input, shape index: {}]
  %s3 = inlined_call_operand.vmem [shape: f32[1,128], index: 3, kind: input, shape index: {}]
  %s4 = inlined_call_operand.vmem [shape: bf16[32,128], index: 4, kind: output, shape index: {}]
  %s5 = sld [smem:[#allocation0]]
  $region26: #{deeplab_forward.14} parent=0
    _
  %s7 = ssub.s32 1, %s5
  %s8 = scalar_select 0, %s7, %s5
  // Predicated region
  $region2: #{deeplab_forward.14} parent=0 // pred_check
    _
  $region3: #{deeplab_forward.14} parent=0 // pred_check_branch
    %10 = sbr.rel (0) target = $region5
  $region4: #{deeplab_forward.14} parent=0 // pred_region
    _
  $region5: #{deeplab_forward.14} parent=0 // pred_fallthru
    _
  // Predicated region
  $region6: #{deeplab_forward.14} parent=0 // pred_check
    _
  $region7: #{deeplab_forward.14} parent=0 // pred_check_branch
    %12 = sbr.rel (0) target = $region9
  $region8: #{deeplab_forward.14} parent=0 // pred_region
    _
  $region9: #{deeplab_forward.14} parent=0 // pred_fallthru
    _
  // Predicated region
  $region10: #{deeplab_forward.14} parent=0 // pred_check
    _
  $region11: #{deeplab_forward.14} parent=0 // pred_check_branch
    %14 = sbr.rel (0) target = $region13
  $region12: #{deeplab_forward.14} parent=0 // pred_region
    _
  $region13: #{deeplab_forward.14} parent=0 // pred_fallthru
    _
  // Predicated region
  $region14: #{deeplab_forward.14} parent=0 // pred_check
    _
  $region15: #{deeplab_forward.14} parent=0 // pred_check_branch
    %16 = sbr.rel (0) target = $region17
  $region16: #{deeplab_forward.14} parent=0 // pred_region
    _
  $region17: #{deeplab_forward.14} parent=0 // pred_fallthru
    _
  %v18 = vld [vmem:[%s0] sm:$0xff]
  %v19 = vld [vmem:[%s0 + $0x8] sm:$0xff]
  %v20 = vld [vmem:[%s0 + $0x10] sm:$0xff]
  %v21 = vld [vmem:[%s0 + $0x18] sm:$0xff]
  %v22 = vld [vmem:[%s1] sm:$0xf]
  %v23 = vld [vmem:[%s1 + $0x4] sm:$0xf]
  %v24 = vld [vmem:[%s1 + $0x8] sm:$0xf]
  %v25 = vld [vmem:[%s1 + $0xc] sm:$0xf]
  %v26 = vld [vmem:[%s1 + $0x10] sm:$0xf]
  %v27 = vld [vmem:[%s1 + $0x14] sm:$0xf]
  %v28 = vld [vmem:[%s1 + $0x18] sm:$0xf]
  %v29 = vld [vmem:[%s1 + $0x1c] sm:$0xf]
  %v30 = vld [vmem:[%s1 + $0x20] sm:$0xf]
  %v31 = vld [vmem:[%s1 + $0x24] sm:$0xf]
  %v32 = vld [vmem:[%s1 + $0x28] sm:$0xf]
  %v33 = vld [vmem:[%s1 + $0x2c] sm:$0xf]
  %v34 = vld [vmem:[%s1 + $0x30] sm:$0xf]
  %v35 = vld [vmem:[%s1 + $0x34] sm:$0xf]
  %v36 = vld [vmem:[%s1 + $0x38] sm:$0xf]
  %v37 = vld [vmem:[%s1 + $0x3c] sm:$0xf]
  %v38 = vld [vmem:[%s1 + $0x40] sm:$0xf]
  %v39 = vld [vmem:[%s1 + $0x44] sm:$0xf]
  %v44 = vunpack.c.l.b16 %v18
  %v45 = vunpack.c.h.b16 %v18
  %v46 = vunpack.c.l.b16 %v19
  %v47 = vunpack.c.h.b16 %v19
  %v48 = vunpack.c.l.b16 %v20
  %v49 = vunpack.c.h.b16 %v20
  %v50 = vunpack.c.l.b16 %v21
  %v51 = vunpack.c.h.b16 %v21
  %v52 = vpack.c.b16 %v46, %v44
  %v53 = vpack.c.b16 %v47, %v45
  %v54 = vpack.c.b16 %v50, %v48
  %v55 = vpack.c.b16 %v51, %v49
  %v76 = vunpack.c.l.b16 %v22
  %v77 = vunpack.c.l.b16 %v23
  %v78 = vunpack.c.l.b16 %v24
  %v79 = vunpack.c.l.b16 %v25
  %v80 = vunpack.c.l.b16 %v26
  %v81 = vunpack.c.l.b16 %v27
  %v82 = vunpack.c.l.b16 %v28
  %v83 = vunpack.c.l.b16 %v29
  %v84 = vunpack.c.l.b16 %v30
  %v85 = vunpack.c.l.b16 %v31
  %v86 = vunpack.c.l.b16 %v32
  %v87 = vunpack.c.l.b16 %v33
  %v88 = vunpack.c.l.b16 %v34
  %v89 = vunpack.c.l.b16 %v35
  %v90 = vunpack.c.l.b16 %v36
  %v91 = vunpack.c.l.b16 %v37
  %v92 = vunpack.c.l.b16 %v38
  %v93 = vunpack.c.l.b16 %v39
  %v94 = vpack.c.b16 %v77, %v76
  %v95 = vpack.c.b16 %v79, %v78
  %v96 = vpack.c.b16 %v81, %v80
  %v97 = vpack.c.b16 %v83, %v82
  %v98 = vpack.c.b16 %v85, %v84
  %v99 = vpack.c.b16 %v87, %v86
  %v100 = vpack.c.b16 %v89, %v88
  %v101 = vpack.c.b16 %v91, %v90
  %v102 = vpack.c.b16 %v93, %v92
  %vm112 = vcmask 130048
  %v114 = vsel %vm112, %v53, 0
  %v117 = vsel %vm112, %v55, 0
  %119 = vmatprep.subr.bf16.mxu0 0
  %120 = vmatpush1.bf16.msra.mxu0 %v94
  %121 = vmatprep.subr.bf16.mxu0 0
  %122 = vmatpush1.bf16.msra.mxu0 %v95
  %123 = vmatprep.subr.bf16.mxu0 0
  %124 = vmatpush1.bf16.msra.mxu0 %v96
  %125 = vmatprep.subr.bf16.mxu0 0
  %126 = vmatpush1.bf16.msra.mxu0 %v97
  %127 = vmatprep.subr.bf16.mxu0 0
  %128 = vmatpush1.bf16.msra.mxu0 %v98
  %129 = vmatprep.subr.bf16.mxu0 0
  %130 = vmatpush1.bf16.msra.mxu0 %v99
  %131 = vmatprep.subr.bf16.mxu0 0
  %132 = vmatpush1.bf16.msra.mxu0 %v100
  %133 = vmatprep.subr.bf16.mxu0 0
  %134 = vmatpush1.bf16.msra.mxu0 %v101
  %135 = vmatprep.subr.bf16.mxu0 0
  %136 = vmatpush1.bf16.msra.mxu0 %v102
  %137 = vmatprep.subr.bf16.mxu0 0
  %138 = vmatpush1.bf16.msra.mxu0 0
  %139 = vmatprep.subr.bf16.mxu0 0
  %140 = vmatpush1.bf16.msra.mxu0 0
  %141 = vmatprep.subr.bf16.mxu0 0
  %142 = vmatpush1.bf16.msra.mxu0 0
  %143 = vmatprep.subr.bf16.mxu0 0
  %144 = vmatpush1.bf16.msra.mxu0 0
  %145 = vmatprep.subr.bf16.mxu0 0
  %146 = vmatpush1.bf16.msra.mxu0 0
  %147 = vmatprep.subr.bf16.mxu0 0
  %148 = vmatpush1.bf16.msra.mxu0 0
  %149 = vmatprep.subr.bf16.mxu0 0
  %150 = vmatpush1.bf16.msra.mxu0 0
  %151 = vmatprep.mubr.bf16.mxu0 %v114
  %152 = vmatmul.mubr.bf16.gmra.mrb[0].mxu0 %v52
  %v153 = vpop.f32.mrb[0].mxu0
  %v154 = vadd.f32 0.0, %v153
  %v155 = vpop.f32.mrb[0].mxu0
  %v156 = vpop.f32.mrb[0].mxu0
  %v157 = vadd.f32 0.0, %v156
  %v158 = vpop.f32.mrb[0].mxu0
  %159 = vmatprep.mubr.bf16.mxu0 %v117
  %160 = vmatmul.mubr.bf16.gmra.mrb[0].mxu0 %v54
  %v161 = vpop.f32.mrb[0].mxu0
  %v162 = vadd.f32 0.0, %v161
  %v163 = vpop.f32.mrb[0].mxu0
  %v164 = vpop.f32.mrb[0].mxu0
  %v165 = vadd.f32 0.0, %v164
  %v166 = vpop.f32.mrb[0].mxu0
  %167 = vdwg.mxu0
  %v168 = vld [vmem:[%s2] sm:$0x1]
  %v170 = vlaneseq
  %v171 = vshrl.u32 %v170, 7
  %v172 = vsub.s32 0, %v171
  %v173 = vrot.slane %v168, %v172
  %v175 = vmul.f32 %v154, %v173
  %v176 = vmul.f32 %v157, %v173
  %v177 = vmul.f32 %v162, %v173
  %v178 = vmul.f32 %v165, %v173
  %v179 = vld [vmem:[%s3] sm:$0x1]
  %v181 = vlaneseq
  %v182 = vshrl.u32 %v181, 7
  %v183 = vsub.s32 0, %v182
  %v184 = vrot.slane %v179, %v183
  %v186 = vadd.f32 %v175, %v184
  %v187 = vadd.f32 %v176, %v184
  %v188 = vadd.f32 %v177, %v184
  %v189 = vadd.f32 %v178, %v184
  %v190 = vmax.f32 %v186, 0.0
  %v191 = vmax.f32 %v187, 0.0
  %v192 = vmax.f32 %v188, 0.0
  %v193 = vmax.f32 %v189, 0.0
  %v194 = vpack.c.bf16 %v191, %v190
  %v195 = vpack.c.bf16 %v193, %v192
  %v198 = vunpack.c.l.b16 %v194
  %v199 = vunpack.c.h.b16 %v194
  %v200 = vunpack.c.l.b16 %v195
  %v201 = vunpack.c.h.b16 %v195
  %v202 = vpack.c.b16 %v198, %v198
  %v203 = vpack.c.b16 %v199, %v199
  %v204 = vpack.c.b16 %v200, %v200
  %v205 = vpack.c.b16 %v201, %v201
  %210 = vst [vmem:[%s4] sm:$0xf] %v202
  %211 = vst [vmem:[%s4 + $0x4] sm:$0xf] %v203
  %212 = vst [vmem:[%s4 + $0x8] sm:$0xf] %v204
  %213 = vst [vmem:[%s4 + $0xc] sm:$0xf] %v205
  // Predicated region
  $region18: #{deeplab_forward.14} parent=0 // pred_check
    _
  $region19: #{deeplab_forward.14} parent=0 // pred_check_branch
    %215 = sbr.rel (0) target = $region21
  $region20: #{deeplab_forward.14} parent=0 // pred_region
    _
  $region21: #{deeplab_forward.14} parent=0 // pred_fallthru
    _
  // Predicated region
  $region22: #{deeplab_forward.14} parent=0 // pred_check
    _
  $region23: #{deeplab_forward.14} parent=0 // pred_check_branch
    %217 = sbr.rel (0) target = $region25
  $region24: #{deeplab_forward.14} parent=0 // pred_region
    _
  $region25: #{deeplab_forward.14} parent=0 // pred_fallthru
    _

// kernel: deeplab_forward.15
$region0: #{deeplab_forward.15}
  #allocation0 [shape = 'u32[]', space=smem, size = 0x4, offset = 0x4, fixed_abs, tag = 'smem constant byte address 0x4 - core index']
  #allocation1 [shape = 'u32[144,128]{1,0:T(1,128)}', space=vmem, size = 0x12000, scoped, tag = 'internal scratch']
  %s0 = inlined_call_operand.vmem [shape: bf16[32,288], index: 0, kind: input, shape index: {}]
  %s1 = inlined_call_operand.vmem [shape: bf16[288,128], index: 1, kind: input, shape index: {}]
  %s2 = inlined_call_operand.vmem [shape: f32[1,128], index: 2, kind: input, shape index: {}]
  %s3 = inlined_call_operand.vmem [shape: f32[1,128], index: 3, kind: input, shape index: {}]
  %s4 = inlined_call_operand.vmem [shape: bf16[32,128], index: 4, kind: output, shape index: {}]
  %s5 = sld [smem:[#allocation0]]
  $region26: #{deeplab_forward.15} parent=0
    _
  %s7 = ssub.s32 1, %s5
  %s8 = scalar_select 0, %s7, %s5
  // Predicated region
  $region2: #{deeplab_forward.15} parent=0 // pred_check
    _
  $region3: #{deeplab_forward.15} parent=0 // pred_check_branch
    %10 = sbr.rel (0) target = $region5
  $region4: #{deeplab_forward.15} parent=0 // pred_region
    _
  $region5: #{deeplab_forward.15} parent=0 // pred_fallthru
    _
  // Predicated region
  $region6: #{deeplab_forward.15} parent=0 // pred_check
    _
  $region7: #{deeplab_forward.15} parent=0 // pred_check_branch
    %12 = sbr.rel (0) target = $region9
  $region8: #{deeplab_forward.15} parent=0 // pred_region
    _
  $region9: #{deeplab_forward.15} parent=0 // pred_fallthru
    _
  // Predicated region
  $region10: #{deeplab_forward.15} parent=0 // pred_check
    _
  $region11: #{deeplab_forward.15} parent=0 // pred_check_branch
    %14 = sbr.rel (0) target = $region13
  $region12: #{deeplab_forward.15} parent=0 // pred_region
    _
  $region13: #{deeplab_forward.15} parent=0 // pred_fallthru
    _
  // Predicated region
  $region14: #{deeplab_forward.15} parent=0 // pred_check
    _
  $region15: #{deeplab_forward.15} parent=0 // pred_check_branch
    %16 = sbr.rel (0) target = $region17
  $region16: #{deeplab_forward.15} parent=0 // pred_region
    _
  $region17: #{deeplab_forward.15} parent=0 // pred_fallthru
    _
  %v18 = vld [vmem:[%s0] sm:$0xff]
  %v19 = vld [vmem:[%s0 + $0x8] sm:$0xf]
  %v20 = vld [vmem:[%s0 + $0xc] sm:$0xff]
  %v21 = vld [vmem:[%s0 + $0x14] sm:$0xf]
  %v22 = vld [vmem:[%s0 + $0x18] sm:$0xff]
  %v23 = vld [vmem:[%s0 + $0x20] sm:$0xf]
  %v24 = vld [vmem:[%s0 + $0x24] sm:$0xff]
  %v25 = vld [vmem:[%s0 + $0x2c] sm:$0xf]
  %v26 = vld [vmem:[%s1] sm:$0xf]
  %v27 = vld [vmem:[%s1 + $0x4] sm:$0xf]
  %v28 = vld [vmem:[%s1 + $0x8] sm:$0xf]
  %v29 = vld [vmem:[%s1 + $0xc] sm:$0xf]
  %v30 = vld [vmem:[%s1 + $0x10] sm:$0xf]
  %v31 = vld [vmem:[%s1 + $0x14] sm:$0xf]
  %v32 = vld [vmem:[%s1 + $0x18] sm:$0xf]
  %v33 = vld [vmem:[%s1 + $0x1c] sm:$0xf]
  %v34 = vld [vmem:[%s1 + $0x20] sm:$0xf]
  %v35 = vld [vmem:[%s1 + $0x24] sm:$0xf]
  %v36 = vld [vmem:[%s1 + $0x28] sm:$0xf]
  %v37 = vld [vmem:[%s1 + $0x2c] sm:$0xf]
  %v38 = vld [vmem:[%s1 + $0x30] sm:$0xf]
  %v39 = vld [vmem:[%s1 + $0x34] sm:$0xf]
  %v40 = vld [vmem:[%s1 + $0x38] sm:$0xf]
  %v41 = vld [vmem:[%s1 + $0x3c] sm:$0xf]
  %v42 = vld [vmem:[%s1 + $0x40] sm:$0xf]
  %v43 = vld [vmem:[%s1 + $0x44] sm:$0xf]
  %v44 = vld [vmem:[%s1 + $0x48] sm:$0xf]
  %v45 = vld [vmem:[%s1 + $0x4c] sm:$0xf]
  %v46 = vld [vmem:[%s1 + $0x50] sm:$0xf]
  %v47 = vld [vmem:[%s1 + $0x54] sm:$0xf]
  %v48 = vld [vmem:[%s1 + $0x58] sm:$0xf]
  %v49 = vld [vmem:[%s1 + $0x5c] sm:$0xf]
  %v50 = vld [vmem:[%s1 + $0x60] sm:$0xf]
  %v51 = vld [vmem:[%s1 + $0x64] sm:$0xf]
  %v52 = vld [vmem:[%s1 + $0x68] sm:$0xf]
  %v53 = vld [vmem:[%s1 + $0x6c] sm:$0xf]
  %v54 = vld [vmem:[%s1 + $0x70] sm:$0xf]
  %v55 = vld [vmem:[%s1 + $0x74] sm:$0xf]
  %v56 = vld [vmem:[%s1 + $0x78] sm:$0xf]
  %v57 = vld [vmem:[%s1 + $0x7c] sm:$0xf]
  %v58 = vld [vmem:[%s1 + $0x80] sm:$0xf]
  %v59 = vld [vmem:[%s1 + $0x84] sm:$0xf]
  %v60 = vld [vmem:[%s1 + $0x88] sm:$0xf]
  %v61 = vld [vmem:[%s1 + $0x8c] sm:$0xf]
  %v70 = vunpack.c.l.b16 %v18
  %v71 = vunpack.c.h.b16 %v18
  %v72 = vunpack.c.l.b16 %v19
  %v73 = vunpack.c.l.b16 %v20
  %v74 = vunpack.c.h.b16 %v20
  %v75 = vunpack.c.l.b16 %v21
  %v76 = vunpack.c.l.b16 %v22
  %v77 = vunpack.c.h.b16 %v22
  %v78 = vunpack.c.l.b16 %v23
  %v79 = vunpack.c.l.b16 %v24
  %v80 = vunpack.c.h.b16 %v24
  %v81 = vunpack.c.l.b16 %v25
  %v82 = vpack.c.b16 %v73, %v70
  %v83 = vpack.c.b16 %v74, %v71
  %v84 = vpack.c.b16 %v75, %v72
  %v85 = vpack.c.b16 %v79, %v76
  %v86 = vpack.c.b16 %v80, %v77
  %v87 = vpack.c.b16 %v81, %v78
  %v128 = vunpack.c.l.b16 %v26
  %v129 = vunpack.c.l.b16 %v27
  %v130 = vunpack.c.l.b16 %v28
  %v131 = vunpack.c.l.b16 %v29
  %v132 = vunpack.c.l.b16 %v30
  %v133 = vunpack.c.l.b16 %v31
  %v134 = vunpack.c.l.b16 %v32
  %v135 = vunpack.c.l.b16 %v33
  %v136 = vunpack.c.l.b16 %v34
  %v137 = vunpack.c.l.b16 %v35
  %v138 = vunpack.c.l.b16 %v36
  %v139 = vunpack.c.l.b16 %v37
  %v140 = vunpack.c.l.b16 %v38
  %v141 = vunpack.c.l.b16 %v39
  %v142 = vunpack.c.l.b16 %v40
  %v143 = vunpack.c.l.b16 %v41
  %v144 = vunpack.c.l.b16 %v42
  %v145 = vunpack.c.l.b16 %v43
  %v146 = vunpack.c.l.b16 %v44
  %v147 = vunpack.c.l.b16 %v45
  %v148 = vunpack.c.l.b16 %v46
  %v149 = vunpack.c.l.b16 %v47
  %v150 = vunpack.c.l.b16 %v48
  %v151 = vunpack.c.l.b16 %v49
  %v152 = vunpack.c.l.b16 %v50
  %v153 = vunpack.c.l.b16 %v51
  %v154 = vunpack.c.l.b16 %v52
  %v155 = vunpack.c.l.b16 %v53
  %v156 = vunpack.c.l.b16 %v54
  %v157 = vunpack.c.l.b16 %v55
  %v158 = vunpack.c.l.b16 %v56
  %v159 = vunpack.c.l.b16 %v57
  %v160 = vunpack.c.l.b16 %v58
  %v161 = vunpack.c.l.b16 %v59
  %v162 = vunpack.c.l.b16 %v60
  %v163 = vunpack.c.l.b16 %v61
  %v164 = vpack.c.b16 %v129, %v128
  %v165 = vpack.c.b16 %v131, %v130
  %v166 = vpack.c.b16 %v133, %v132
  %v167 = vpack.c.b16 %v135, %v134
  %v168 = vpack.c.b16 %v137, %v136
  %v169 = vpack.c.b16 %v139, %v138
  %v170 = vpack.c.b16 %v141, %v140
  %v171 = vpack.c.b16 %v143, %v142
  %v172 = vpack.c.b16 %v145, %v144
  %v173 = vpack.c.b16 %v147, %v146
  %v174 = vpack.c.b16 %v149, %v148
  %v175 = vpack.c.b16 %v151, %v150
  %v176 = vpack.c.b16 %v153, %v152
  %v177 = vpack.c.b16 %v155, %v154
  %v178 = vpack.c.b16 %v157, %v156
  %v179 = vpack.c.b16 %v159, %v158
  %v180 = vpack.c.b16 %v161, %v160
  %v181 = vpack.c.b16 %v163, %v162
  %vm200 = vcmask 261120
  %v202 = vsel %vm200, %v84, 0
  %v205 = vsel %vm200, %v87, 0
  %207 = vmatprep.subr.bf16.mxu0 0
  %208 = vmatpush1.bf16.msra.mxu0 %v164
  %209 = vmatprep.subr.bf16.mxu0 0
  %210 = vmatpush1.bf16.msra.mxu0 %v165
  %211 = vmatprep.subr.bf16.mxu0 0
  %212 = vmatpush1.bf16.msra.mxu0 %v166
  %213 = vmatprep.subr.bf16.mxu0 0
  %214 = vmatpush1.bf16.msra.mxu0 %v167
  %215 = vmatprep.subr.bf16.mxu0 0
  %216 = vmatpush1.bf16.msra.mxu0 %v168
  %217 = vmatprep.subr.bf16.mxu0 0
  %218 = vmatpush1.bf16.msra.mxu0 %v169
  %219 = vmatprep.subr.bf16.mxu0 0
  %220 = vmatpush1.bf16.msra.mxu0 %v170
  %221 = vmatprep.subr.bf16.mxu0 0
  %222 = vmatpush1.bf16.msra.mxu0 %v171
  %223 = vmatprep.subr.bf16.mxu0 0
  %224 = vmatpush1.bf16.msra.mxu0 %v172
  %225 = vmatprep.subr.bf16.mxu0 0
  %226 = vmatpush1.bf16.msra.mxu0 %v173
  %227 = vmatprep.subr.bf16.mxu0 0
  %228 = vmatpush1.bf16.msra.mxu0 %v174
  %229 = vmatprep.subr.bf16.mxu0 0
  %230 = vmatpush1.bf16.msra.mxu0 %v175
  %231 = vmatprep.subr.bf16.mxu0 0
  %232 = vmatpush1.bf16.msra.mxu0 %v176
  %233 = vmatprep.subr.bf16.mxu0 0
  %234 = vmatpush1.bf16.msra.mxu0 %v177
  %235 = vmatprep.subr.bf16.mxu0 0
  %236 = vmatpush1.bf16.msra.mxu0 %v178
  %237 = vmatprep.subr.bf16.mxu0 0
  %238 = vmatpush1.bf16.msra.mxu0 %v179
  %239 = vmatprep.mubr.bf16.mxu0 %v83
  %240 = vmatmul.mubr.bf16.gmra.mrb[0].mxu0 %v82
  %v241 = vpop.f32.mrb[0].mxu0
  %v242 = vadd.f32 0.0, %v241
  %v243 = vpop.f32.mrb[0].mxu0
  %v244 = vpop.f32.mrb[0].mxu0
  %v245 = vadd.f32 0.0, %v244
  %v246 = vpop.f32.mrb[0].mxu0
  %247 = vmatprep.mubr.bf16.mxu0 %v86
  %248 = vmatmul.mubr.bf16.gmra.mrb[0].mxu0 %v85
  %v249 = vpop.f32.mrb[0].mxu0
  %v250 = vadd.f32 0.0, %v249
  %v251 = vpop.f32.mrb[0].mxu0
  %v252 = vpop.f32.mrb[0].mxu0
  %v253 = vadd.f32 0.0, %v252
  %v254 = vpop.f32.mrb[0].mxu0
  %255 = vdwg.mxu0
  %256 = vmatprep.subr.bf16.mxu0 0
  %257 = vmatpush1.bf16.msra.mxu0 %v180
  %258 = vmatprep.subr.bf16.mxu0 0
  %259 = vmatpush1.bf16.msra.mxu0 %v181
  %260 = vmatprep.subr.bf16.mxu0 0
  %261 = vmatpush1.bf16.msra.mxu0 0
  %262 = vmatprep.subr.bf16.mxu0 0
  %263 = vmatpush1.bf16.msra.mxu0 0
  %264 = vmatprep.subr.bf16.mxu0 0
  %265 = vmatpush1.bf16.msra.mxu0 0
  %266 = vmatprep.subr.bf16.mxu0 0
  %267 = vmatpush1.bf16.msra.mxu0 0
  %268 = vmatprep.subr.bf16.mxu0 0
  %269 = vmatpush1.bf16.msra.mxu0 0
  %270 = vmatprep.subr.bf16.mxu0 0
  %271 = vmatpush1.bf16.msra.mxu0 0
  %272 = vmatprep.subr.bf16.mxu0 0
  %273 = vmatpush1.bf16.msra.mxu0 0
  %274 = vmatprep.subr.bf16.mxu0 0
  %275 = vmatpush1.bf16.msra.mxu0 0
  %276 = vmatprep.subr.bf16.mxu0 0
  %277 = vmatpush1.bf16.msra.mxu0 0
  %278 = vmatprep.subr.bf16.mxu0 0
  %279 = vmatpush1.bf16.msra.mxu0 0
  %280 = vmatprep.subr.bf16.mxu0 0
  %281 = vmatpush1.bf16.msra.mxu0 0
  %282 = vmatprep.subr.bf16.mxu0 0
  %283 = vmatpush1.bf16.msra.mxu0 0
  %284 = vmatprep.subr.bf16.mxu0 0
  %285 = vmatpush1.bf16.msra.mxu0 0
  %286 = vmatprep.subr.bf16.mxu0 0
  %287 = vmatpush1.bf16.msra.mxu0 0
  %288 = vmatprep.mubr.bf16.mxu0 0
  %289 = vmatmul.mubr.bf16.gmra.mrb[0].mxu0 %v202
  %v290 = vpop.f32.mrb[0].mxu0
  %v291 = vadd.f32 %v242, %v290
  %v292 = vpop.f32.mrb[0].mxu0
  %v293 = vpop.f32.mrb[0].mxu0
  %v294 = vadd.f32 %v245, %v293
  %v295 = vpop.f32.mrb[0].mxu0
  %296 = vmatprep.mubr.bf16.mxu0 0
  %297 = vmatmul.mubr.bf16.gmra.mrb[0].mxu0 %v205
  %v298 = vpop.f32.mrb[0].mxu0
  %v299 = vadd.f32 %v250, %v298
  %v300 = vpop.f32.mrb[0].mxu0
  %v301 = vpop.f32.mrb[0].mxu0
  %v302 = vadd.f32 %v253, %v301
  %v303 = vpop.f32.mrb[0].mxu0
  %304 = vdwg.mxu0
  %v305 = vld [vmem:[%s2] sm:$0x1]
  %v307 = vlaneseq
  %v308 = vshrl.u32 %v307, 7
  %v309 = vsub.s32 0, %v308
  %v310 = vrot.slane %v305, %v309
  %v312 = vmul.f32 %v291, %v310
  %v313 = vmul.f32 %v294, %v310
  %v314 = vmul.f32 %v299, %v310
  %v315 = vmul.f32 %v302, %v310
  %v316 = vld [vmem:[%s3] sm:$0x1]
  %v318 = vlaneseq
  %v319 = vshrl.u32 %v318, 7
  %v320 = vsub.s32 0, %v319
  %v321 = vrot.slane %v316, %v320
  %v323 = vadd.f32 %v312, %v321
  %v324 = vadd.f32 %v313, %v321
  %v325 = vadd.f32 %v314, %v321
  %v326 = vadd.f32 %v315, %v321
  %v327 = vmax.f32 %v323, 0.0
  %v328 = vmax.f32 %v324, 0.0
  %v329 = vmax.f32 %v325, 0.0
  %v330 = vmax.f32 %v326, 0.0
  %v331 = vpack.c.bf16 %v328, %v327
  %v332 = vpack.c.bf16 %v330, %v329
  %v335 = vunpack.c.l.b16 %v331
  %v336 = vunpack.c.h.b16 %v331
  %v337 = vunpack.c.l.b16 %v332
  %v338 = vunpack.c.h.b16 %v332
  %v339 = vpack.c.b16 %v335, %v335
  %v340 = vpack.c.b16 %v336, %v336
  %v341 = vpack.c.b16 %v337, %v337
  %v342 = vpack.c.b16 %v338, %v338
  %347 = vst [vmem:[%s4] sm:$0xf] %v339
  %348 = vst [vmem:[%s4 + $0x4] sm:$0xf] %v340
  %349 = vst [vmem:[%s4 + $0x8] sm:$0xf] %v341
  %350 = vst [vmem:[%s4 + $0xc] sm:$0xf] %v342
  // Predicated region
  $region18: #{deeplab_forward.15} parent=0 // pred_check
    _
  $region19: #{deeplab_forward.15} parent=0 // pred_check_branch
    %352 = sbr.rel (0) target = $region21
  $region20: #{deeplab_forward.15} parent=0 // pred_region
    _
  $region21: #{deeplab_forward.15} parent=0 // pred_fallthru
    _
  // Predicated region
  $region22: #{deeplab_forward.15} parent=0 // pred_check
    _
  $region23: #{deeplab_forward.15} parent=0 // pred_check_branch
    %354 = sbr.rel (0) target = $region25
  $region24: #{deeplab_forward.15} parent=0 // pred_region
    _
  $region25: #{deeplab_forward.15} parent=0 // pred_fallthru
    _

// kernel: deeplab_forward.16
$region0: #{deeplab_forward.16}
  #allocation0 [shape = 'u32[]', space=smem, size = 0x4, offset = 0x4, fixed_abs, tag = 'smem constant byte address 0x4 - core index']
  #allocation1 [shape = 'u32[144,128]{1,0:T(1,128)}', space=vmem, size = 0x12000, scoped, tag = 'internal scratch']
  %s0 = inlined_call_operand.vmem [shape: bf16[32,32], index: 0, kind: input, shape index: {}]
  %s1 = inlined_call_operand.vmem [shape: bf16[32,128], index: 1, kind: input, shape index: {}]
  %s2 = inlined_call_operand.vmem [shape: f32[1,128], index: 2, kind: input, shape index: {}]
  %s3 = inlined_call_operand.vmem [shape: f32[1,128], index: 3, kind: input, shape index: {}]
  %s4 = inlined_call_operand.vmem [shape: bf16[32,128], index: 4, kind: output, shape index: {}]
  %s5 = sld [smem:[#allocation0]]
  $region26: #{deeplab_forward.16} parent=0
    _
  %s7 = ssub.s32 1, %s5
  %s8 = scalar_select 0, %s7, %s5
  // Predicated region
  $region2: #{deeplab_forward.16} parent=0 // pred_check
    _
  $region3: #{deeplab_forward.16} parent=0 // pred_check_branch
    %10 = sbr.rel (0) target = $region5
  $region4: #{deeplab_forward.16} parent=0 // pred_region
    _
  $region5: #{deeplab_forward.16} parent=0 // pred_fallthru
    _
  // Predicated region
  $region6: #{deeplab_forward.16} parent=0 // pred_check
    _
  $region7: #{deeplab_forward.16} parent=0 // pred_check_branch
    %12 = sbr.rel (0) target = $region9
  $region8: #{deeplab_forward.16} parent=0 // pred_region
    _
  $region9: #{deeplab_forward.16} parent=0 // pred_fallthru
    _
  // Predicated region
  $region10: #{deeplab_forward.16} parent=0 // pred_check
    _
  $region11: #{deeplab_forward.16} parent=0 // pred_check_branch
    %14 = sbr.rel (0) target = $region13
  $region12: #{deeplab_forward.16} parent=0 // pred_region
    _
  $region13: #{deeplab_forward.16} parent=0 // pred_fallthru
    _
  // Predicated region
  $region14: #{deeplab_forward.16} parent=0 // pred_check
    _
  $region15: #{deeplab_forward.16} parent=0 // pred_check_branch
    %16 = sbr.rel (0) target = $region17
  $region16: #{deeplab_forward.16} parent=0 // pred_region
    _
  $region17: #{deeplab_forward.16} parent=0 // pred_fallthru
    _
  %v18 = vld [vmem:[%s0] sm:$0xf]
  %v19 = vld [vmem:[%s0 + $0x4] sm:$0xf]
  %v20 = vld [vmem:[%s0 + $0x8] sm:$0xf]
  %v21 = vld [vmem:[%s0 + $0xc] sm:$0xf]
  %v22 = vld [vmem:[%s1] sm:$0xf]
  %v23 = vld [vmem:[%s1 + $0x4] sm:$0xf]
  %v24 = vld [vmem:[%s1 + $0x8] sm:$0xf]
  %v25 = vld [vmem:[%s1 + $0xc] sm:$0xf]
  %v30 = vunpack.c.l.b16 %v18
  %v31 = vunpack.c.l.b16 %v19
  %v32 = vunpack.c.l.b16 %v20
  %v33 = vunpack.c.l.b16 %v21
  %v34 = vpack.c.b16 %v31, %v30
  %v35 = vpack.c.b16 %v33, %v32
  %v40 = vunpack.c.l.b16 %v22
  %v41 = vunpack.c.l.b16 %v23
  %v42 = vunpack.c.l.b16 %v24
  %v43 = vunpack.c.l.b16 %v25
  %v44 = vpack.c.b16 %v41, %v40
  %v45 = vpack.c.b16 %v43, %v42
  %vm48 = vcmask 261120
  %v50 = vsel %vm48, %v34, 0
  %v53 = vsel %vm48, %v35, 0
  %55 = vmatprep.subr.bf16.mxu0 0
  %56 = vmatpush1.bf16.msra.mxu0 %v44
  %57 = vmatprep.subr.bf16.mxu0 0
  %58 = vmatpush1.bf16.msra.mxu0 %v45
  %59 = vmatprep.subr.bf16.mxu0 0
  %60 = vmatpush1.bf16.msra.mxu0 0
  %61 = vmatprep.subr.bf16.mxu0 0
  %62 = vmatpush1.bf16.msra.mxu0 0
  %63 = vmatprep.subr.bf16.mxu0 0
  %64 = vmatpush1.bf16.msra.mxu0 0
  %65 = vmatprep.subr.bf16.mxu0 0
  %66 = vmatpush1.bf16.msra.mxu0 0
  %67 = vmatprep.subr.bf16.mxu0 0
  %68 = vmatpush1.bf16.msra.mxu0 0
  %69 = vmatprep.subr.bf16.mxu0 0
  %70 = vmatpush1.bf16.msra.mxu0 0
  %71 = vmatprep.subr.bf16.mxu0 0
  %72 = vmatpush1.bf16.msra.mxu0 0
  %73 = vmatprep.subr.bf16.mxu0 0
  %74 = vmatpush1.bf16.msra.mxu0 0
  %75 = vmatprep.subr.bf16.mxu0 0
  %76 = vmatpush1.bf16.msra.mxu0 0
  %77 = vmatprep.subr.bf16.mxu0 0
  %78 = vmatpush1.bf16.msra.mxu0 0
  %79 = vmatprep.subr.bf16.mxu0 0
  %80 = vmatpush1.bf16.msra.mxu0 0
  %81 = vmatprep.subr.bf16.mxu0 0
  %82 = vmatpush1.bf16.msra.mxu0 0
  %83 = vmatprep.subr.bf16.mxu0 0
  %84 = vmatpush1.bf16.msra.mxu0 0
  %85 = vmatprep.subr.bf16.mxu0 0
  %86 = vmatpush1.bf16.msra.mxu0 0
  %87 = vmatprep.mubr.bf16.mxu0 0
  %88 = vmatmul.mubr.bf16.gmra.mrb[0].mxu0 %v50
  %v89 = vpop.f32.mrb[0].mxu0
  %v90 = vadd.f32 0.0, %v89
  %v91 = vpop.f32.mrb[0].mxu0
  %v92 = vpop.f32.mrb[0].mxu0
  %v93 = vadd.f32 0.0, %v92
  %v94 = vpop.f32.mrb[0].mxu0
  %95 = vmatprep.mubr.bf16.mxu0 0
  %96 = vmatmul.mubr.bf16.gmra.mrb[0].mxu0 %v53
  %v97 = vpop.f32.mrb[0].mxu0
  %v98 = vadd.f32 0.0, %v97
  %v99 = vpop.f32.mrb[0].mxu0
  %v100 = vpop.f32.mrb[0].mxu0
  %v101 = vadd.f32 0.0, %v100
  %v102 = vpop.f32.mrb[0].mxu0
  %103 = vdwg.mxu0
  %v104 = vld [vmem:[%s2] sm:$0x1]
  %v106 = vlaneseq
  %v107 = vshrl.u32 %v106, 7
  %v108 = vsub.s32 0, %v107
  %v109 = vrot.slane %v104, %v108
  %v111 = vmul.f32 %v90, %v109
  %v112 = vmul.f32 %v93, %v109
  %v113 = vmul.f32 %v98, %v109
  %v114 = vmul.f32 %v101, %v109
  %v115 = vld [vmem:[%s3] sm:$0x1]
  %v117 = vlaneseq
  %v118 = vshrl.u32 %v117, 7
  %v119 = vsub.s32 0, %v118
  %v120 = vrot.slane %v115, %v119
  %v122 = vadd.f32 %v111, %v120
  %v123 = vadd.f32 %v112, %v120
  %v124 = vadd.f32 %v113, %v120
  %v125 = vadd.f32 %v114, %v120
  %v126 = vmax.f32 %v122, 0.0
  %v127 = vmax.f32 %v123, 0.0
  %v128 = vmax.f32 %v124, 0.0
  %v129 = vmax.f32 %v125, 0.0
  %v130 = vpack.c.bf16 %v127, %v126
  %v131 = vpack.c.bf16 %v129, %v128
  %v134 = vunpack.c.l.b16 %v130
  %v135 = vunpack.c.h.b16 %v130
  %v136 = vunpack.c.l.b16 %v131
  %v137 = vunpack.c.h.b16 %v131
  %v138 = vpack.c.b16 %v134, %v134
  %v139 = vpack.c.b16 %v135, %v135
  %v140 = vpack.c.b16 %v136, %v136
  %v141 = vpack.c.b16 %v137, %v137
  %146 = vst [vmem:[%s4] sm:$0xf] %v138
  %147 = vst [vmem:[%s4 + $0x4] sm:$0xf] %v139
  %148 = vst [vmem:[%s4 + $0x8] sm:$0xf] %v140
  %149 = vst [vmem:[%s4 + $0xc] sm:$0xf] %v141
  // Predicated region
  $region18: #{deeplab_forward.16} parent=0 // pred_check
    _
  $region19: #{deeplab_forward.16} parent=0 // pred_check_branch
    %151 = sbr.rel (0) target = $region21
  $region20: #{deeplab_forward.16} parent=0 // pred_region
    _
  $region21: #{deeplab_forward.16} parent=0 // pred_fallthru
    _
  // Predicated region
  $region22: #{deeplab_forward.16} parent=0 // pred_check
    _
  $region23: #{deeplab_forward.16} parent=0 // pred_check_branch
    %153 = sbr.rel (0) target = $region25
  $region24: #{deeplab_forward.16} parent=0 // pred_region
    _
  $region25: #{deeplab_forward.16} parent=0 // pred_fallthru
    _

// kernel: deeplab_forward.18
$region0: #{deeplab_forward.18}
  #allocation0 [shape = 'u32[]', space=smem, size = 0x4, offset = 0x4, fixed_abs, tag = 'smem constant byte address 0x4 - core index']
  #allocation1 [shape = 'u32[144,128]{1,0:T(1,128)}', space=vmem, size = 0x12000, scoped, tag = 'internal scratch']
  %s0 = inlined_call_operand.vmem [shape: bf16[32,32], index: 0, kind: input, shape index: {}]
  %s1 = inlined_call_operand.vmem [shape: bf16[32,32], index: 1, kind: input, shape index: {}]
  %s2 = inlined_call_operand.vmem [shape: bf16[32,128], index: 2, kind: input, shape index: {}]
  %s3 = inlined_call_operand.vmem [shape: bf16[32,128], index: 3, kind: input, shape index: {}]
  %s4 = inlined_call_operand.vmem [shape: f32[1,128], index: 4, kind: input, shape index: {}]
  %s5 = inlined_call_operand.vmem [shape: f32[1,128], index: 5, kind: input, shape index: {}]
  %s6 = inlined_call_operand.vmem [shape: f32[32,128], index: 6, kind: output, shape index: {}]
  %s7 = sld [smem:[#allocation0]]
  $region34: #{deeplab_forward.18} parent=0
    _
  %s9 = ssub.s32 1, %s7
  %s10 = scalar_select 0, %s9, %s7
  // Predicated region
  $region2: #{deeplab_forward.18} parent=0 // pred_check
    _
  $region3: #{deeplab_forward.18} parent=0 // pred_check_branch
    %12 = sbr.rel (0) target = $region5
  $region4: #{deeplab_forward.18} parent=0 // pred_region
    _
  $region5: #{deeplab_forward.18} parent=0 // pred_fallthru
    _
  // Predicated region
  $region6: #{deeplab_forward.18} parent=0 // pred_check
    _
  $region7: #{deeplab_forward.18} parent=0 // pred_check_branch
    %14 = sbr.rel (0) target = $region9
  $region8: #{deeplab_forward.18} parent=0 // pred_region
    _
  $region9: #{deeplab_forward.18} parent=0 // pred_fallthru
    _
  // Predicated region
  $region10: #{deeplab_forward.18} parent=0 // pred_check
    _
  $region11: #{deeplab_forward.18} parent=0 // pred_check_branch
    %16 = sbr.rel (0) target = $region13
  $region12: #{deeplab_forward.18} parent=0 // pred_region
    _
  $region13: #{deeplab_forward.18} parent=0 // pred_fallthru
    _
  // Predicated region
  $region14: #{deeplab_forward.18} parent=0 // pred_check
    _
  $region15: #{deeplab_forward.18} parent=0 // pred_check_branch
    %18 = sbr.rel (0) target = $region17
  $region16: #{deeplab_forward.18} parent=0 // pred_region
    _
  $region17: #{deeplab_forward.18} parent=0 // pred_fallthru
    _
  // Predicated region
  $region18: #{deeplab_forward.18} parent=0 // pred_check
    _
  $region19: #{deeplab_forward.18} parent=0 // pred_check_branch
    %20 = sbr.rel (0) target = $region21
  $region20: #{deeplab_forward.18} parent=0 // pred_region
    _
  $region21: #{deeplab_forward.18} parent=0 // pred_fallthru
    _
  // Predicated region
  $region22: #{deeplab_forward.18} parent=0 // pred_check
    _
  $region23: #{deeplab_forward.18} parent=0 // pred_check_branch
    %22 = sbr.rel (0) target = $region25
  $region24: #{deeplab_forward.18} parent=0 // pred_region
    _
  $region25: #{deeplab_forward.18} parent=0 // pred_fallthru
    _
  %v24 = vld [vmem:[%s0] sm:$0xf]
  %v25 = vld [vmem:[%s0 + $0x4] sm:$0xf]
  %v26 = vld [vmem:[%s0 + $0x8] sm:$0xf]
  %v27 = vld [vmem:[%s0 + $0xc] sm:$0xf]
  %v28 = vld [vmem:[%s2] sm:$0xf]
  %v29 = vld [vmem:[%s2 + $0x4] sm:$0xf]
  %v30 = vld [vmem:[%s2 + $0x8] sm:$0xf]
  %v31 = vld [vmem:[%s2 + $0xc] sm:$0xf]
  %v32 = vld [vmem:[%s1] sm:$0xf]
  %v33 = vld [vmem:[%s1 + $0x4] sm:$0xf]
  %v34 = vld [vmem:[%s1 + $0x8] sm:$0xf]
  %v35 = vld [vmem:[%s1 + $0xc] sm:$0xf]
  %v36 = vld [vmem:[%s3] sm:$0xf]
  %v37 = vld [vmem:[%s3 + $0x4] sm:$0xf]
  %v38 = vld [vmem:[%s3 + $0x8] sm:$0xf]
  %v39 = vld [vmem:[%s3 + $0xc] sm:$0xf]
  %v44 = vunpack.c.l.b16 %v32
  %v45 = vunpack.c.l.b16 %v33
  %v46 = vunpack.c.l.b16 %v34
  %v47 = vunpack.c.l.b16 %v35
  %v48 = vpack.c.b16 %v45, %v44
  %v49 = vpack.c.b16 %v47, %v46
  %v54 = vunpack.c.l.b16 %v36
  %v55 = vunpack.c.l.b16 %v37
  %v56 = vunpack.c.l.b16 %v38
  %v57 = vunpack.c.l.b16 %v39
  %v58 = vpack.c.b16 %v55, %v54
  %v59 = vpack.c.b16 %v57, %v56
  %vm62 = vcmask 261120
  %v64 = vsel %vm62, %v48, 0
  %v67 = vsel %vm62, %v49, 0
  %69 = vmatprep.subr.bf16.mxu0 0
  %70 = vmatpush1.bf16.msra.mxu0 %v58
  %71 = vmatprep.subr.bf16.mxu0 0
  %72 = vmatpush1.bf16.msra.mxu0 %v59
  %73 = vmatprep.subr.bf16.mxu0 0
  %74 = vmatpush1.bf16.msra.mxu0 0
  %75 = vmatprep.subr.bf16.mxu0 0
  %76 = vmatpush1.bf16.msra.mxu0 0
  %77 = vmatprep.subr.bf16.mxu0 0
  %78 = vmatpush1.bf16.msra.mxu0 0
  %79 = vmatprep.subr.bf16.mxu0 0
  %80 = vmatpush1.bf16.msra.mxu0 0
  %81 = vmatprep.subr.bf16.mxu0 0
  %82 = vmatpush1.bf16.msra.mxu0 0
  %83 = vmatprep.subr.bf16.mxu0 0
  %84 = vmatpush1.bf16.msra.mxu0 0
  %85 = vmatprep.subr.bf16.mxu0 0
  %86 = vmatpush1.bf16.msra.mxu0 0
  %87 = vmatprep.subr.bf16.mxu0 0
  %88 = vmatpush1.bf16.msra.mxu0 0
  %89 = vmatprep.subr.bf16.mxu0 0
  %90 = vmatpush1.bf16.msra.mxu0 0
  %91 = vmatprep.subr.bf16.mxu0 0
  %92 = vmatpush1.bf16.msra.mxu0 0
  %93 = vmatprep.subr.bf16.mxu0 0
  %94 = vmatpush1.bf16.msra.mxu0 0
  %95 = vmatprep.subr.bf16.mxu0 0
  %96 = vmatpush1.bf16.msra.mxu0 0
  %97 = vmatprep.subr.bf16.mxu0 0
  %98 = vmatpush1.bf16.msra.mxu0 0
  %99 = vmatprep.subr.bf16.mxu0 0
  %100 = vmatpush1.bf16.msra.mxu0 0
  %101 = vmatprep.mubr.bf16.mxu0 0
  %102 = vmatmul.mubr.bf16.gmra.mrb[0].mxu0 %v64
  %v103 = vpop.f32.mrb[0].mxu0
  %v104 = vadd.f32 0.0, %v103
  %v105 = vpop.f32.mrb[0].mxu0
  %v106 = vpop.f32.mrb[0].mxu0
  %v107 = vadd.f32 0.0, %v106
  %v108 = vpop.f32.mrb[0].mxu0
  %109 = vmatprep.mubr.bf16.mxu0 0
  %110 = vmatmul.mubr.bf16.gmra.mrb[0].mxu0 %v67
  %v111 = vpop.f32.mrb[0].mxu0
  %v112 = vadd.f32 0.0, %v111
  %v113 = vpop.f32.mrb[0].mxu0
  %v114 = vpop.f32.mrb[0].mxu0
  %v115 = vadd.f32 0.0, %v114
  %v116 = vpop.f32.mrb[0].mxu0
  %117 = vdwg.mxu0
  %v122 = vunpack.c.l.b16 %v24
  %v123 = vunpack.c.l.b16 %v25
  %v124 = vunpack.c.l.b16 %v26
  %v125 = vunpack.c.l.b16 %v27
  %v126 = vpack.c.b16 %v123, %v122
  %v127 = vpack.c.b16 %v125, %v124
  %v132 = vunpack.c.l.b16 %v28
  %v133 = vunpack.c.l.b16 %v29
  %v134 = vunpack.c.l.b16 %v30
  %v135 = vunpack.c.l.b16 %v31
  %v136 = vpack.c.b16 %v133, %v132
  %v137 = vpack.c.b16 %v135, %v134
  %v141 = vsel %vm62, %v126, 0
  %v144 = vsel %vm62, %v127, 0
  %146 = vmatprep.subr.bf16.mxu0 0
  %147 = vmatpush1.bf16.msra.mxu0 %v136
  %148 = vmatprep.subr.bf16.mxu0 0
  %149 = vmatpush1.bf16.msra.mxu0 %v137
  %150 = vmatprep.subr.bf16.mxu0 0
  %151 = vmatpush1.bf16.msra.mxu0 0
  %152 = vmatprep.subr.bf16.mxu0 0
  %153 = vmatpush1.bf16.msra.mxu0 0
  %154 = vmatprep.subr.bf16.mxu0 0
  %155 = vmatpush1.bf16.msra.mxu0 0
  %156 = vmatprep.subr.bf16.mxu0 0
  %157 = vmatpush1.bf16.msra.mxu0 0
  %158 = vmatprep.subr.bf16.mxu0 0
  %159 = vmatpush1.bf16.msra.mxu0 0
  %160 = vmatprep.subr.bf16.mxu0 0
  %161 = vmatpush1.bf16.msra.mxu0 0
  %162 = vmatprep.subr.bf16.mxu0 0
  %163 = vmatpush1.bf16.msra.mxu0 0
  %164 = vmatprep.subr.bf16.mxu0 0
  %165 = vmatpush1.bf16.msra.mxu0 0
  %166 = vmatprep.subr.bf16.mxu0 0
  %167 = vmatpush1.bf16.msra.mxu0 0
  %168 = vmatprep.subr.bf16.mxu0 0
  %169 = vmatpush1.bf16.msra.mxu0 0
  %170 = vmatprep.subr.bf16.mxu0 0
  %171 = vmatpush1.bf16.msra.mxu0 0
  %172 = vmatprep.subr.bf16.mxu0 0
  %173 = vmatpush1.bf16.msra.mxu0 0
  %174 = vmatprep.subr.bf16.mxu0 0
  %175 = vmatpush1.bf16.msra.mxu0 0
  %176 = vmatprep.subr.bf16.mxu0 0
  %177 = vmatpush1.bf16.msra.mxu0 0
  %178 = vmatprep.mubr.bf16.mxu0 0
  %179 = vmatmul.mubr.bf16.gmra.mrb[0].mxu0 %v141
  %v180 = vpop.f32.mrb[0].mxu0
  %v181 = vadd.f32 %v104, %v180
  %v182 = vpop.f32.mrb[0].mxu0
  %v183 = vpop.f32.mrb[0].mxu0
  %v184 = vadd.f32 %v107, %v183
  %v185 = vpop.f32.mrb[0].mxu0
  %186 = vmatprep.mubr.bf16.mxu0 0
  %187 = vmatmul.mubr.bf16.gmra.mrb[0].mxu0 %v144
  %v188 = vpop.f32.mrb[0].mxu0
  %v189 = vadd.f32 %v112, %v188
  %v190 = vpop.f32.mrb[0].mxu0
  %v191 = vpop.f32.mrb[0].mxu0
  %v192 = vadd.f32 %v115, %v191
  %v193 = vpop.f32.mrb[0].mxu0
  %194 = vdwg.mxu0
  %v195 = vld [vmem:[%s4] sm:$0x1]
  %v197 = vlaneseq
  %v198 = vshrl.u32 %v197, 7
  %v199 = vsub.s32 0, %v198
  %v200 = vrot.slane %v195, %v199
  %v202 = vmul.f32 %v181, %v200
  %v203 = vmul.f32 %v184, %v200
  %v204 = vmul.f32 %v189, %v200
  %v205 = vmul.f32 %v192, %v200
  %v206 = vld [vmem:[%s5] sm:$0x1]
  %v208 = vlaneseq
  %v209 = vshrl.u32 %v208, 7
  %v210 = vsub.s32 0, %v209
  %v211 = vrot.slane %v206, %v210
  %v213 = vadd.f32 %v202, %v211
  %v214 = vadd.f32 %v203, %v211
  %v215 = vadd.f32 %v204, %v211
  %v216 = vadd.f32 %v205, %v211
  %217 = vst [vmem:[%s6] sm:$0xff] %v213
  %218 = vst [vmem:[%s6 + $0x8] sm:$0xff] %v214
  %219 = vst [vmem:[%s6 + $0x10] sm:$0xff] %v215
  %220 = vst [vmem:[%s6 + $0x18] sm:$0xff] %v216
  // Predicated region
  $region26: #{deeplab_forward.18} parent=0 // pred_check
    _
  $region27: #{deeplab_forward.18} parent=0 // pred_check_branch
    %222 = sbr.rel (0) target = $region29
  $region28: #{deeplab_forward.18} parent=0 // pred_region
    _
  $region29: #{deeplab_forward.18} parent=0 // pred_fallthru
    _
  // Predicated region
  $region30: #{deeplab_forward.18} parent=0 // pred_check
    _
  $region31: #{deeplab_forward.18} parent=0 // pred_check_branch
    %224 = sbr.rel (0) target = $region33
  $region32: #{deeplab_forward.18} parent=0 // pred_region
    _
  $region33: #{deeplab_forward.18} parent=0 // pred_fallthru
    _

// kernel: deeplab_forward.19
$region0: #{deeplab_forward.19}
  #allocation0 [shape = 'u32[]', space=smem, size = 0x4, offset = 0x4, fixed_abs, tag = 'smem constant byte address 0x4 - core index']
  #allocation1 [shape = 'u32[144,128]{1,0:T(1,128)}', space=vmem, size = 0x12000, scoped, tag = 'internal scratch']
  %s0 = inlined_call_operand.vmem [shape: bf16[8,4], index: 0, kind: input, shape index: {}]
  %s1 = inlined_call_operand.vmem [shape: bf16[2,4,128], index: 1, kind: input, shape index: {}]
  %s2 = inlined_call_operand.vmem [shape: bf16[2,8,128], index: 2, kind: output, shape index: {}]
  %s3 = sld [smem:[#allocation0]]
  $region41: #{deeplab_forward.19} parent=0
    _
  %s5 = ssub.s32 1, %s3
  %s6 = scalar_select 0, %s5, %s3
  loop: start=0, step=1, limit=4
  $region2: #{deeplab_forward.19} parent=0 // loop_pre_header
    _
  $region3: #{deeplab_forward.19} parent=0 // loop_header
    %s8 = sphi 0, %s12
    %p9 = scmp.ge.s32.totalorder %s8, 4
    %s15 = sphi 0, %s34
    %s16 = sphi 0, %s30
    %s17 = sphi 0, %s26
    %s18 = sphi 0, %s15
    %s19 = sphi 0, %s16
    %s20 = sphi 0, %s17
    %s21 = sphi 0, %s18
    %s22 = sphi 0, %s19
    %s23 = sphi 0, %s20
    %s37 = sphi 0, %s39
    %s40 = sphi 0, %s37
    %s41 = sphi 0, %s40
    %s57 = sphi 0, %s41
    %s65 = sphi 0, %s67
    %s68 = sphi 0, %s65
    %s69 = sphi 0, %s68
    %s85 = sphi 0, %s69
    %s95 = sphi 0, %s97
    %s98 = sphi 0, %s95
    %s99 = sphi 0, %s98
    %s115 = sphi 0, %s99
  $region4: #{deeplab_forward.19} parent=0 // loop_header_branch
    %11 = sbr.rel (%p9) target = $region8
  $region5: #{deeplab_forward.19} parent=0 // loop_body
    %s13 = ssub.s32 %s8, 1
    %s14 = ssub.s32 %s8, 2
    %s24 = sadd.s32 1, %s17
    %p25 = scmp.ge.s32.totalorder %s24, 1
    %s26 = scalar_select %p25, 0, %s24
    %s27 = sadd.s32 1, %s16
    %s28 = scalar_select %p25, %s27, %s16
    %p29 = scmp.ge.s32.totalorder %s28, 1
    %s30 = scalar_select %p29, 0, %s28
    %s31 = sadd.s32 1, %s15
    %s32 = scalar_select %p29, %s31, %s15
    %p33 = scmp.ge.s32.totalorder %s32, 2
    %s34 = scalar_select %p33, 0, %s32
    %s35 = ssub.s32 %s16, %s30
    %p36 = scmp.eq.s32.totalorder %s35, 0
    %s38 = sadd.s32 %s37, 1
    %s39 = scalar_select %p36, %s37, %s38
    %p42 = pneg %p36
    %p43 = scmp.eq.s32.totalorder %s8, 1
    %p44 = por %p42, %p43
    %p45 = scmp.ne.s32.totalorder %s37, %s40
    %p46 = scmp.eq.s32.totalorder %s8, 0
    %p47 = por %p45, %p46
    %p48 = scmp.ne.s32.totalorder %s37, %s40
    %p49 = scmp.eq.s32.totalorder %s13, 1
    %p50 = por %p48, %p49
    %p51 = scmp.ne.s32.totalorder %s40, %s41
    %p52 = scmp.eq.s32.totalorder %s13, 0
    %p53 = por %p51, %p52
    %p54 = scmp.ne.s32.totalorder %s40, %s41
    %p55 = scmp.eq.s32.totalorder %s14, 1
    %p56 = por %p54, %p55
    %p58 = scmp.ne.s32.totalorder %s41, %s57
    %p59 = scmp.eq.s32.totalorder %s14, 0
    %p60 = por %p58, %p59
    %s61 = ssub.s32 %s15, %s34
    %s62 = ssub.s32 %s17, %s26
    %s63 = sor.u32 %s61, %s62
    %p64 = scmp.eq.s32.totalorder %s63, 0
    %s66 = sadd.s32 %s65, 1
    %s67 = scalar_select %p64, %s65, %s66
    %p70 = pneg %p64
    %p71 = scmp.eq.s32.totalorder %s8, 1
    %p72 = por %p70, %p71
    %p73 = scmp.ne.s32.totalorder %s65, %s68
    %p74 = scmp.eq.s32.totalorder %s8, 0
    %p75 = por %p73, %p74
    %p76 = scmp.ne.s32.totalorder %s65, %s68
    %p77 = scmp.eq.s32.totalorder %s13, 1
    %p78 = por %p76, %p77
    %p79 = scmp.ne.s32.totalorder %s68, %s69
    %p80 = scmp.eq.s32.totalorder %s13, 0
    %p81 = por %p79, %p80
    %p82 = scmp.ne.s32.totalorder %s68, %s69
    %p83 = scmp.eq.s32.totalorder %s14, 1
    %p84 = por %p82, %p83
    %p86 = scmp.ne.s32.totalorder %s69, %s85
    %p87 = scmp.eq.s32.totalorder %s14, 0
    %p88 = por %p86, %p87
    %s89 = ssub.s32 %s15, %s34
    %s90 = ssub.s32 %s16, %s30
    %s91 = sor.u32 %s89, %s90
    %s92 = ssub.s32 %s17, %s26
    %s93 = sor.u32 %s91, %s92
    %p94 = scmp.eq.s32.totalorder %s93, 0
    %s96 = sadd.s32 %s95, 1
    %s97 = scalar_select %p94, %s95, %s96
    %p100 = pneg %p94
    %p101 = scmp.eq.s32.totalorder %s8, 1
    %p102 = por %p100, %p101
    %p103 = scmp.ne.s32.totalorder %s95, %s98
    %p104 = scmp.eq.s32.totalorder %s8, 0
    %p105 = por %p103, %p104
    %p106 = scmp.ne.s32.totalorder %s95, %s98
    %p107 = scmp.eq.s32.totalorder %s13, 1
    %p108 = por %p106, %p107
    %p109 = scmp.ne.s32.totalorder %s98, %s99
    %p110 = scmp.eq.s32.totalorder %s13, 0
    %p111 = por %p109, %p110
    %p112 = scmp.ne.s32.totalorder %s98, %s99
    %p113 = scmp.eq.s32.totalorder %s14, 1
    %p114 = por %p112, %p113
    %p116 = scmp.ne.s32.totalorder %s99, %s115
    %p117 = scmp.eq.s32.totalorder %s14, 0
    %p118 = por %p116, %p117
    %p119 = scmp.le.s32.totalorder 1, %s8
    %p120 = scmp.lt.s32.totalorder %s8, 3
    %p121 = pnand %p119, %p120
    %p122 = pneg %p121
    // Predicated region
    $region9: #{deeplab_forward.19} parent=5 // pred_check
      _
    $region10: #{deeplab_forward.19} parent=5 // pred_check_branch
      %124 = sbr.rel (%p121) target = $region12
    $region11: #{deeplab_forward.19} parent=5 // pred_region
      %s125 = ssub.s32 %s8, 1
      // Predicated region
      $region13: #{deeplab_forward.19} parent=11 // pred_check
        %p126 = pneg %p53
      $region14: #{deeplab_forward.19} parent=11 // pred_check_branch
        %128 = sbr.rel (%p126) target = $region16
      $region15: #{deeplab_forward.19} parent=11 // pred_region
        %p129 = scmp.lt.s32.totalorder %s19, 0
        %s130 = scalar_select %p129, %s19, 0
        %s131 = smul.addr %s130, 4
        %s132 = scalar_lea.vmem %s0, %s131
      $region16: #{deeplab_forward.19} parent=11 // pred_fallthru
        _
    $region12: #{deeplab_forward.19} parent=5 // pred_fallthru
      _
    %p133 = scmp.lt.s32.totalorder %s8, 2
    // Predicated region
    $region17: #{deeplab_forward.19} parent=5 // pred_check
      %p134 = pneg %p133
    $region18: #{deeplab_forward.19} parent=5 // pred_check_branch
      %136 = sbr.rel (%p134) target = $region20
    $region19: #{deeplab_forward.19} parent=5 // pred_region
      // Predicated region
      $region21: #{deeplab_forward.19} parent=19 // pred_check
        %p137 = pneg %p75
      $region22: #{deeplab_forward.19} parent=19 // pred_check_branch
        %139 = sbr.rel (%p137) target = $region24
      $region23: #{deeplab_forward.19} parent=19 // pred_region
        %p140 = scmp.lt.s32.totalorder %s15, 1
        %s141 = scalar_select %p140, %s15, 1
        %p142 = scmp.lt.s32.totalorder %s17, 0
        %s143 = scalar_select %p142, %s17, 0
        %s144 = sadd.s32 %s143, %s141
        %s145 = smul.addr %s144, 2
        %s146 = scalar_lea.vmem %s1, %s145
      $region24: #{deeplab_forward.19} parent=19 // pred_fallthru
        _
    $region20: #{deeplab_forward.19} parent=5 // pred_fallthru
      _
    %p147 = scmp.le.s32.totalorder 1, %s8
    %p148 = scmp.lt.s32.totalorder %s8, 3
    %p149 = pnand %p147, %p148
    %p150 = pneg %p149
    // Predicated region
    $region25: #{deeplab_forward.19} parent=5 // pred_check
      _
    $region26: #{deeplab_forward.19} parent=5 // pred_check_branch
      %152 = sbr.rel (%p149) target = $region28
    $region27: #{deeplab_forward.19} parent=5 // pred_region
      %s153 = ssub.s32 %s8, 1
      %p154 = scmp.lt.s32.totalorder %s19, 0
      %s155 = scalar_select %p154, %s19, 0
      %s156 = smul.addr %s155, 4
      %s157 = scalar_lea.vmem %s0, %s156
      %p158 = pneg %p53
      %p159 = pneg %p50
      %p160 = scmp.lt.s32.totalorder %s18, 1
      %s161 = scalar_select %p160, %s18, 1
      %p162 = scmp.lt.s32.totalorder %s20, 0
      %s163 = scalar_select %p162, %s20, 0
      %s164 = sadd.s32 %s163, %s161
      %s165 = smul.addr %s164, 2
      %s166 = scalar_lea.vmem %s1, %s165
      %p167 = pneg %p81
      %p168 = pneg %p78
      %p169 = pneg %p111
      %p170 = pneg %p108
      %p171 = scmp.lt.s32.totalorder %s18, 1
      %s172 = scalar_select %p171, %s18, 1
      %p173 = scmp.lt.s32.totalorder %s19, 0
      %s174 = scalar_select %p173, %s19, 0
      %p175 = scmp.lt.s32.totalorder %s20, 0
      %s176 = scalar_select %p175, %s20, 0
      %s177 = sadd.s32 %s176, %s174
      %s178 = sadd.s32 %s177, %s172
      %s179 = smul.addr %s178, 4
      %s180 = scalar_lea.vmem %s2, %s179
      %p181 = scmp.lt.s32.totalorder %s19, 0
      %s182 = scalar_select %p181, %s19, 0
      %s183 = smul.addr %s182, 4
      %s184 = scalar_lea.vmem %s0, %s183
      %p185 = scmp.lt.s32.totalorder %s18, 1
      %s186 = scalar_select %p185, %s18, 1
      %p187 = scmp.lt.s32.totalorder %s20, 0
      %s188 = scalar_select %p187, %s20, 0
      %s189 = sadd.s32 %s188, %s186
      %s190 = smul.addr %s189, 2
      %s191 = scalar_lea.vmem %s1, %s190
      %p192 = scmp.lt.s32.totalorder %s18, 1
      %s193 = scalar_select %p192, %s18, 1
      %p194 = scmp.lt.s32.totalorder %s19, 0
      %s195 = scalar_select %p194, %s19, 0
      %p196 = scmp.lt.s32.totalorder %s20, 0
      %s197 = scalar_select %p196, %s20, 0
      %s198 = sadd.s32 %s197, %s195
      %s199 = sadd.s32 %s198, %s193
      %s200 = smul.addr %s199, 4
      %s201 = scalar_lea.vmem %s2, %s200
      %v203 = vld [vmem:[%s184] sm:$0xf]
      %v204 = vld [vmem:[%s191] sm:$0x3]
      %vm205 = vcmask 31744
      %v207 = vsel %vm205, %v203, 0
      %vm209 = vcmask 1041408
      %v211 = vsel %vm209, %v204, 0
      %213 = vmatprep.subr.bf16.mxu0 0
      %214 = vmatpush1.bf16.msra.mxu0 %v211
      %215 = vmatprep.subr.bf16.mxu0 0
      %216 = vmatpush1.bf16.msra.mxu0 0
      %217 = vmatprep.subr.bf16.mxu0 0
      %218 = vmatpush1.bf16.msra.mxu0 0
      %219 = vmatprep.subr.bf16.mxu0 0
      %220 = vmatpush1.bf16.msra.mxu0 0
      %221 = vmatprep.subr.bf16.mxu0 0
      %222 = vmatpush1.bf16.msra.mxu0 0
      %223 = vmatprep.subr.bf16.mxu0 0
      %224 = vmatpush1.bf16.msra.mxu0 0
      %225 = vmatprep.subr.bf16.mxu0 0
      %226 = vmatpush1.bf16.msra.mxu0 0
      %227 = vmatprep.subr.bf16.mxu0 0
      %228 = vmatpush1.bf16.msra.mxu0 0
      %229 = vmatprep.subr.bf16.mxu0 0
      %230 = vmatpush1.bf16.msra.mxu0 0
      %231 = vmatprep.subr.bf16.mxu0 0
      %232 = vmatpush1.bf16.msra.mxu0 0
      %233 = vmatprep.subr.bf16.mxu0 0
      %234 = vmatpush1.bf16.msra.mxu0 0
      %235 = vmatprep.subr.bf16.mxu0 0
      %236 = vmatpush1.bf16.msra.mxu0 0
      %237 = vmatprep.subr.bf16.mxu0 0
      %238 = vmatpush1.bf16.msra.mxu0 0
      %239 = vmatprep.subr.bf16.mxu0 0
      %240 = vmatpush1.bf16.msra.mxu0 0
      %241 = vmatprep.subr.bf16.mxu0 0
      %242 = vmatpush1.bf16.msra.mxu0 0
      %243 = vmatprep.subr.bf16.mxu0 0
      %244 = vmatpush1.bf16.msra.mxu0 0
      %245 = vmatprep.mubr.bf16.mxu0 0
      %246 = vmatmul.mubr.bf16.gmra.mrb[0].mxu0 %v207
      %v247 = vpop.f32.mrb[0].mxu0
      %v248 = vadd.f32 0.0, %v247
      %v249 = vpop.f32.mrb[0].mxu0
      %v250 = vpop.f32.mrb[0].mxu0
      %v251 = vpop.f32.mrb[0].mxu0
      %252 = vdwg.mxu0
      %v253 = vpack.c.bf16 %v248, %v248
      %254 = vst [vmem:[%s201] sm:$0xf] %v253
      %p255 = scmp.lt.s32.totalorder %s18, 1
      %s256 = scalar_select %p255, %s18, 1
      %p257 = scmp.lt.s32.totalorder %s19, 0
      %s258 = scalar_select %p257, %s19, 0
      %p259 = scmp.lt.s32.totalorder %s20, 0
      %s260 = scalar_select %p259, %s20, 0
      %s261 = sadd.s32 %s260, %s258
      %s262 = sadd.s32 %s261, %s256
      %s263 = smul.addr %s262, 4
      %s264 = scalar_lea.vmem %s2, %s263
      // Predicated region
      $region29: #{deeplab_forward.19} parent=27 // pred_check
        %p265 = pneg %p108
      $region30: #{deeplab_forward.19} parent=27 // pred_check_branch
        %267 = sbr.rel (%p265) target = $region32
      $region31: #{deeplab_forward.19} parent=27 // pred_region
        _
      $region32: #{deeplab_forward.19} parent=27 // pred_fallthru
        _
    $region28: #{deeplab_forward.19} parent=5 // pred_fallthru
      _
    %p268 = scmp.le.s32.totalorder 2, %s8
    // Predicated region
    $region33: #{deeplab_forward.19} parent=5 // pred_check
      %p269 = pneg %p268
    $region34: #{deeplab_forward.19} parent=5 // pred_check_branch
      %271 = sbr.rel (%p269) target = $region36
    $region35: #{deeplab_forward.19} parent=5 // pred_region
      %s272 = ssub.s32 %s8, 2
      // Predicated region
      $region37: #{deeplab_forward.19} parent=35 // pred_check
        %p273 = pneg %p114
      $region38: #{deeplab_forward.19} parent=35 // pred_check_branch
        %275 = sbr.rel (%p273) target = $region40
      $region39: #{deeplab_forward.19} parent=35 // pred_region
        %p276 = scmp.lt.s32.totalorder %s21, 1
        %s277 = scalar_select %p276, %s21, 1
        %p278 = scmp.lt.s32.totalorder %s22, 0
        %s279 = scalar_select %p278, %s22, 0
        %p280 = scmp.lt.s32.totalorder %s23, 0
        %s281 = scalar_select %p280, %s23, 0
        %s282 = sadd.s32 %s281, %s279
        %s283 = sadd.s32 %s282, %s277
        %s284 = smul.addr %s283, 4
        %s285 = scalar_lea.vmem %s2, %s284
      $region40: #{deeplab_forward.19} parent=35 // pred_fallthru
        _
    $region36: #{deeplab_forward.19} parent=5 // pred_fallthru
      _
  $region6: #{deeplab_forward.19} parent=0 // loop_footer
    %s12 = sadd.s32 1, %s8
  $region7: #{deeplab_forward.19} parent=0 // loop_footer_branch
    %7 = sbr.rel target = $region3
  $region8: #{deeplab_forward.19} parent=0 // loop_exit
    _

// kernel: deeplab_forward.20
$region0: #{deeplab_forward.20}
  #allocation0 [shape = 'u32[]', space=smem, size = 0x4, offset = 0x4, fixed_abs, tag = 'smem constant byte address 0x4 - core index']
  #allocation1 [shape = 'u32[144,128]{1,0:T(1,128)}', space=vmem, size = 0x12000, scoped, tag = 'internal scratch']
  %s0 = inlined_call_operand.vmem [shape: bf16[8,4], index: 0, kind: input, shape index: {}]
  %s1 = inlined_call_operand.vmem [shape: bf16[2,4,256], index: 1, kind: input, shape index: {}]
  %s2 = inlined_call_operand.vmem [shape: bf16[2,8,256], index: 2, kind: output, shape index: {}]
  %s3 = sld [smem:[#allocation0]]
  $region41: #{deeplab_forward.20} parent=0
    _
  %s5 = ssub.s32 1, %s3
  %s6 = scalar_select 0, %s5, %s3
  loop: start=0, step=1, limit=4
  $region2: #{deeplab_forward.20} parent=0 // loop_pre_header
    _
  $region3: #{deeplab_forward.20} parent=0 // loop_header
    %s8 = sphi 0, %s12
    %p9 = scmp.ge.s32.totalorder %s8, 4
    %s15 = sphi 0, %s34
    %s16 = sphi 0, %s30
    %s17 = sphi 0, %s26
    %s18 = sphi 0, %s15
    %s19 = sphi 0, %s16
    %s20 = sphi 0, %s17
    %s21 = sphi 0, %s18
    %s22 = sphi 0, %s19
    %s23 = sphi 0, %s20
    %s37 = sphi 0, %s39
    %s40 = sphi 0, %s37
    %s41 = sphi 0, %s40
    %s57 = sphi 0, %s41
    %s65 = sphi 0, %s67
    %s68 = sphi 0, %s65
    %s69 = sphi 0, %s68
    %s85 = sphi 0, %s69
    %s95 = sphi 0, %s97
    %s98 = sphi 0, %s95
    %s99 = sphi 0, %s98
    %s115 = sphi 0, %s99
  $region4: #{deeplab_forward.20} parent=0 // loop_header_branch
    %11 = sbr.rel (%p9) target = $region8
  $region5: #{deeplab_forward.20} parent=0 // loop_body
    %s13 = ssub.s32 %s8, 1
    %s14 = ssub.s32 %s8, 2
    %s24 = sadd.s32 1, %s17
    %p25 = scmp.ge.s32.totalorder %s24, 1
    %s26 = scalar_select %p25, 0, %s24
    %s27 = sadd.s32 1, %s16
    %s28 = scalar_select %p25, %s27, %s16
    %p29 = scmp.ge.s32.totalorder %s28, 1
    %s30 = scalar_select %p29, 0, %s28
    %s31 = sadd.s32 1, %s15
    %s32 = scalar_select %p29, %s31, %s15
    %p33 = scmp.ge.s32.totalorder %s32, 2
    %s34 = scalar_select %p33, 0, %s32
    %s35 = ssub.s32 %s16, %s30
    %p36 = scmp.eq.s32.totalorder %s35, 0
    %s38 = sadd.s32 %s37, 1
    %s39 = scalar_select %p36, %s37, %s38
    %p42 = pneg %p36
    %p43 = scmp.eq.s32.totalorder %s8, 1
    %p44 = por %p42, %p43
    %p45 = scmp.ne.s32.totalorder %s37, %s40
    %p46 = scmp.eq.s32.totalorder %s8, 0
    %p47 = por %p45, %p46
    %p48 = scmp.ne.s32.totalorder %s37, %s40
    %p49 = scmp.eq.s32.totalorder %s13, 1
    %p50 = por %p48, %p49
    %p51 = scmp.ne.s32.totalorder %s40, %s41
    %p52 = scmp.eq.s32.totalorder %s13, 0
    %p53 = por %p51, %p52
    %p54 = scmp.ne.s32.totalorder %s40, %s41
    %p55 = scmp.eq.s32.totalorder %s14, 1
    %p56 = por %p54, %p55
    %p58 = scmp.ne.s32.totalorder %s41, %s57
    %p59 = scmp.eq.s32.totalorder %s14, 0
    %p60 = por %p58, %p59
    %s61 = ssub.s32 %s15, %s34
    %s62 = ssub.s32 %s17, %s26
    %s63 = sor.u32 %s61, %s62
    %p64 = scmp.eq.s32.totalorder %s63, 0
    %s66 = sadd.s32 %s65, 1
    %s67 = scalar_select %p64, %s65, %s66
    %p70 = pneg %p64
    %p71 = scmp.eq.s32.totalorder %s8, 1
    %p72 = por %p70, %p71
    %p73 = scmp.ne.s32.totalorder %s65, %s68
    %p74 = scmp.eq.s32.totalorder %s8, 0
    %p75 = por %p73, %p74
    %p76 = scmp.ne.s32.totalorder %s65, %s68
    %p77 = scmp.eq.s32.totalorder %s13, 1
    %p78 = por %p76, %p77
    %p79 = scmp.ne.s32.totalorder %s68, %s69
    %p80 = scmp.eq.s32.totalorder %s13, 0
    %p81 = por %p79, %p80
    %p82 = scmp.ne.s32.totalorder %s68, %s69
    %p83 = scmp.eq.s32.totalorder %s14, 1
    %p84 = por %p82, %p83
    %p86 = scmp.ne.s32.totalorder %s69, %s85
    %p87 = scmp.eq.s32.totalorder %s14, 0
    %p88 = por %p86, %p87
    %s89 = ssub.s32 %s15, %s34
    %s90 = ssub.s32 %s16, %s30
    %s91 = sor.u32 %s89, %s90
    %s92 = ssub.s32 %s17, %s26
    %s93 = sor.u32 %s91, %s92
    %p94 = scmp.eq.s32.totalorder %s93, 0
    %s96 = sadd.s32 %s95, 1
    %s97 = scalar_select %p94, %s95, %s96
    %p100 = pneg %p94
    %p101 = scmp.eq.s32.totalorder %s8, 1
    %p102 = por %p100, %p101
    %p103 = scmp.ne.s32.totalorder %s95, %s98
    %p104 = scmp.eq.s32.totalorder %s8, 0
    %p105 = por %p103, %p104
    %p106 = scmp.ne.s32.totalorder %s95, %s98
    %p107 = scmp.eq.s32.totalorder %s13, 1
    %p108 = por %p106, %p107
    %p109 = scmp.ne.s32.totalorder %s98, %s99
    %p110 = scmp.eq.s32.totalorder %s13, 0
    %p111 = por %p109, %p110
    %p112 = scmp.ne.s32.totalorder %s98, %s99
    %p113 = scmp.eq.s32.totalorder %s14, 1
    %p114 = por %p112, %p113
    %p116 = scmp.ne.s32.totalorder %s99, %s115
    %p117 = scmp.eq.s32.totalorder %s14, 0
    %p118 = por %p116, %p117
    %p119 = scmp.le.s32.totalorder 1, %s8
    %p120 = scmp.lt.s32.totalorder %s8, 3
    %p121 = pnand %p119, %p120
    %p122 = pneg %p121
    // Predicated region
    $region9: #{deeplab_forward.20} parent=5 // pred_check
      _
    $region10: #{deeplab_forward.20} parent=5 // pred_check_branch
      %124 = sbr.rel (%p121) target = $region12
    $region11: #{deeplab_forward.20} parent=5 // pred_region
      %s125 = ssub.s32 %s8, 1
      // Predicated region
      $region13: #{deeplab_forward.20} parent=11 // pred_check
        %p126 = pneg %p53
      $region14: #{deeplab_forward.20} parent=11 // pred_check_branch
        %128 = sbr.rel (%p126) target = $region16
      $region15: #{deeplab_forward.20} parent=11 // pred_region
        %p129 = scmp.lt.s32.totalorder %s19, 0
        %s130 = scalar_select %p129, %s19, 0
        %s131 = smul.addr %s130, 4
        %s132 = scalar_lea.vmem %s0, %s131
      $region16: #{deeplab_forward.20} parent=11 // pred_fallthru
        _
    $region12: #{deeplab_forward.20} parent=5 // pred_fallthru
      _
    %p133 = scmp.lt.s32.totalorder %s8, 2
    // Predicated region
    $region17: #{deeplab_forward.20} parent=5 // pred_check
      %p134 = pneg %p133
    $region18: #{deeplab_forward.20} parent=5 // pred_check_branch
      %136 = sbr.rel (%p134) target = $region20
    $region19: #{deeplab_forward.20} parent=5 // pred_region
      // Predicated region
      $region21: #{deeplab_forward.20} parent=19 // pred_check
        %p137 = pneg %p75
      $region22: #{deeplab_forward.20} parent=19 // pred_check_branch
        %139 = sbr.rel (%p137) target = $region24
      $region23: #{deeplab_forward.20} parent=19 // pred_region
        %s140 = smul.u32 2, %s17
        %p141 = scmp.lt.s32.totalorder %s15, 1
        %s142 = scalar_select %p141, %s15, 1
        %p143 = scmp.lt.s32.totalorder %s140, 1
        %s144 = scalar_select %p143, %s140, 1
        %s145 = smul.addr %s142, 2
        %s146 = sadd.s32 %s144, %s145
        %s147 = smul.addr %s146, 2
        %s148 = scalar_lea.vmem %s1, %s147
        %s149 = smul.u32 2, %s17
      $region24: #{deeplab_forward.20} parent=19 // pred_fallthru
        _
    $region20: #{deeplab_forward.20} parent=5 // pred_fallthru
      _
    %p150 = scmp.le.s32.totalorder 1, %s8
    %p151 = scmp.lt.s32.totalorder %s8, 3
    %p152 = pnand %p150, %p151
    %p153 = pneg %p152
    // Predicated region
    $region25: #{deeplab_forward.20} parent=5 // pred_check
      _
    $region26: #{deeplab_forward.20} parent=5 // pred_check_branch
      %155 = sbr.rel (%p152) target = $region28
    $region27: #{deeplab_forward.20} parent=5 // pred_region
      %s156 = ssub.s32 %s8, 1
      %p157 = scmp.lt.s32.totalorder %s19, 0
      %s158 = scalar_select %p157, %s19, 0
      %s159 = smul.addr %s158, 4
      %s160 = scalar_lea.vmem %s0, %s159
      %p161 = pneg %p53
      %p162 = pneg %p50
      %s163 = smul.u32 2, %s20
      %p164 = scmp.lt.s32.totalorder %s18, 1
      %s165 = scalar_select %p164, %s18, 1
      %p166 = scmp.lt.s32.totalorder %s163, 1
      %s167 = scalar_select %p166, %s163, 1
      %s168 = smul.addr %s165, 2
      %s169 = sadd.s32 %s167, %s168
      %s170 = smul.addr %s169, 2
      %s171 = scalar_lea.vmem %s1, %s170
      %p172 = pneg %p81
      %p173 = pneg %p78
      %p174 = pneg %p111
      %p175 = pneg %p108
      %s176 = smul.u32 2, %s20
      %p177 = scmp.lt.s32.totalorder %s18, 1
      %s178 = scalar_select %p177, %s18, 1
      %p179 = scmp.lt.s32.totalorder %s19, 0
      %s180 = scalar_select %p179, %s19, 0
      %p181 = scmp.lt.s32.totalorder %s176, 1
      %s182 = scalar_select %p181, %s176, 1
      %s183 = smul.addr %s180, 2
      %s184 = sadd.s32 %s182, %s183
      %s185 = smul.addr %s178, 2
      %s186 = sadd.s32 %s184, %s185
      %s187 = smul.addr %s186, 4
      %s188 = scalar_lea.vmem %s2, %s187
      %p189 = scmp.lt.s32.totalorder %s19, 0
      %s190 = scalar_select %p189, %s19, 0
      %s191 = smul.addr %s190, 4
      %s192 = scalar_lea.vmem %s0, %s191
      %s193 = smul.u32 2, %s20
      %p194 = scmp.lt.s32.totalorder %s18, 1
      %s195 = scalar_select %p194, %s18, 1
      %p196 = scmp.lt.s32.totalorder %s193, 1
      %s197 = scalar_select %p196, %s193, 1
      %s198 = smul.addr %s195, 2
      %s199 = sadd.s32 %s197, %s198
      %s200 = smul.addr %s199, 2
      %s201 = scalar_lea.vmem %s1, %s200
      %s202 = smul.u32 2, %s20
      %s203 = smul.u32 2, %s20
      %p204 = scmp.lt.s32.totalorder %s18, 1
      %s205 = scalar_select %p204, %s18, 1
      %p206 = scmp.lt.s32.totalorder %s19, 0
      %s207 = scalar_select %p206, %s19, 0
      %p208 = scmp.lt.s32.totalorder %s203, 1
      %s209 = scalar_select %p208, %s203, 1
      %s210 = smul.addr %s207, 2
      %s211 = sadd.s32 %s209, %s210
      %s212 = smul.addr %s205, 2
      %s213 = sadd.s32 %s211, %s212
      %s214 = smul.addr %s213, 4
      %s215 = scalar_lea.vmem %s2, %s214
      %s216 = smul.u32 2, %s20
      %v218 = vld [vmem:[%s192] sm:$0xf]
      %v219 = vld [vmem:[%s201] sm:$0xf]
      %v222 = vunpack.c.l.s4 1983009808
      %v223 = vunpack.c.0.s8 %v222
      %v224 = vlaneseq
      %v225 = vshrl.u32 %v224, 7
      %v226 = vsub.s32 %v223, %v225
      %v227 = vrot.slane %v219, %v226
      %v228 = vcombine.high %v227, %v227
      %vm229 = vcmask 31744
      %v231 = vsel %vm229, %v218, 0
      %vm233 = vcmask 1041408
      %v235 = vsel %vm233, %v227, 0
      %v238 = vsel %vm233, %v228, 0
      %240 = vmatprep.subr.bf16.mxu0 %v238
      %241 = vmatpush1.bf16.msra.mxu0 %v235
      %242 = vmatprep.subr.bf16.mxu0 0
      %243 = vmatpush1.bf16.msra.mxu0 0
      %244 = vmatprep.subr.bf16.mxu0 0
      %245 = vmatpush1.bf16.msra.mxu0 0
      %246 = vmatprep.subr.bf16.mxu0 0
      %247 = vmatpush1.bf16.msra.mxu0 0
      %248 = vmatprep.subr.bf16.mxu0 0
      %249 = vmatpush1.bf16.msra.mxu0 0
      %250 = vmatprep.subr.bf16.mxu0 0
      %251 = vmatpush1.bf16.msra.mxu0 0
      %252 = vmatprep.subr.bf16.mxu0 0
      %253 = vmatpush1.bf16.msra.mxu0 0
      %254 = vmatprep.subr.bf16.mxu0 0
      %255 = vmatpush1.bf16.msra.mxu0 0
      %256 = vmatprep.subr.bf16.mxu0 0
      %257 = vmatpush1.bf16.msra.mxu0 0
      %258 = vmatprep.subr.bf16.mxu0 0
      %259 = vmatpush1.bf16.msra.mxu0 0
      %260 = vmatprep.subr.bf16.mxu0 0
      %261 = vmatpush1.bf16.msra.mxu0 0
      %262 = vmatprep.subr.bf16.mxu0 0
      %263 = vmatpush1.bf16.msra.mxu0 0
      %264 = vmatprep.subr.bf16.mxu0 0
      %265 = vmatpush1.bf16.msra.mxu0 0
      %266 = vmatprep.subr.bf16.mxu0 0
      %267 = vmatpush1.bf16.msra.mxu0 0
      %268 = vmatprep.subr.bf16.mxu0 0
      %269 = vmatpush1.bf16.msra.mxu0 0
      %270 = vmatprep.subr.bf16.mxu0 0
      %271 = vmatpush1.bf16.msra.mxu0 0
      %272 = vmatprep.mubr.bf16.mxu0 0
      %273 = vmatmul.mubr.bf16.gmra.mrb[0].mxu0 %v231
      %v274 = vpop.f32.mrb[0].mxu0
      %v275 = vadd.f32 0.0, %v274
      %v276 = vpop.f32.mrb[0].mxu0
      %v277 = vadd.f32 0.0, %v276
      %v278 = vpop.f32.mrb[0].mxu0
      %v279 = vpop.f32.mrb[0].mxu0
      %280 = vdwg.mxu0
      %v281 = vpack.c.bf16 %v275, %v275
      %v282 = vpack.c.bf16 %v277, %v277
      %v285 = vunpack.c.l.b16 %v281
      %v286 = vunpack.c.l.b16 %v282
      %v287 = vpack.c.b16 %v286, %v285
      %289 = vst [vmem:[%s215] sm:$0xff] %v287
      %s290 = smul.u32 2, %s20
      %p291 = scmp.lt.s32.totalorder %s18, 1
      %s292 = scalar_select %p291, %s18, 1
      %p293 = scmp.lt.s32.totalorder %s19, 0
      %s294 = scalar_select %p293, %s19, 0
      %p295 = scmp.lt.s32.totalorder %s290, 1
      %s296 = scalar_select %p295, %s290, 1
      %s297 = smul.addr %s294, 2
      %s298 = sadd.s32 %s296, %s297
      %s299 = smul.addr %s292, 2
      %s300 = sadd.s32 %s298, %s299
      %s301 = smul.addr %s300, 4
      %s302 = scalar_lea.vmem %s2, %s301
      // Predicated region
      $region29: #{deeplab_forward.20} parent=27 // pred_check
        %p303 = pneg %p108
      $region30: #{deeplab_forward.20} parent=27 // pred_check_branch
        %305 = sbr.rel (%p303) target = $region32
      $region31: #{deeplab_forward.20} parent=27 // pred_region
        %s306 = smul.u32 2, %s20
      $region32: #{deeplab_forward.20} parent=27 // pred_fallthru
        _
    $region28: #{deeplab_forward.20} parent=5 // pred_fallthru
      _
    %p307 = scmp.le.s32.totalorder 2, %s8
    // Predicated region
    $region33: #{deeplab_forward.20} parent=5 // pred_check
      %p308 = pneg %p307
    $region34: #{deeplab_forward.20} parent=5 // pred_check_branch
      %310 = sbr.rel (%p308) target = $region36
    $region35: #{deeplab_forward.20} parent=5 // pred_region
      %s311 = ssub.s32 %s8, 2
      // Predicated region
      $region37: #{deeplab_forward.20} parent=35 // pred_check
        %p312 = pneg %p114
      $region38: #{deeplab_forward.20} parent=35 // pred_check_branch
        %314 = sbr.rel (%p312) target = $region40
      $region39: #{deeplab_forward.20} parent=35 // pred_region
        %s315 = smul.u32 2, %s23
        %p316 = scmp.lt.s32.totalorder %s21, 1
        %s317 = scalar_select %p316, %s21, 1
        %p318 = scmp.lt.s32.totalorder %s22, 0
        %s319 = scalar_select %p318, %s22, 0
        %p320 = scmp.lt.s32.totalorder %s315, 1
        %s321 = scalar_select %p320, %s315, 1
        %s322 = smul.addr %s319, 2
        %s323 = sadd.s32 %s321, %s322
        %s324 = smul.addr %s317, 2
        %s325 = sadd.s32 %s323, %s324
        %s326 = smul.addr %s325, 4
        %s327 = scalar_lea.vmem %s2, %s326
      $region40: #{deeplab_forward.20} parent=35 // pred_fallthru
        _
    $region36: #{deeplab_forward.20} parent=5 // pred_fallthru
      _
  $region6: #{deeplab_forward.20} parent=0 // loop_footer
    %s12 = sadd.s32 1, %s8
  $region7: #{deeplab_forward.20} parent=0 // loop_footer_branch
    %7 = sbr.rel target = $region3
  $region8: #{deeplab_forward.20} parent=0 // loop_exit
    _

// kernel: deeplab_forward.23
$region0: #{deeplab_forward.23}
  #allocation0 [shape = 'u32[]', space=smem, size = 0x4, offset = 0x4, fixed_abs, tag = 'smem constant byte address 0x4 - core index']
  #allocation1 [shape = 'u32[144,128]{1,0:T(1,128)}', space=vmem, size = 0x12000, scoped, tag = 'internal scratch']
  %s0 = inlined_call_operand.vmem [shape: bf16[128,32], index: 0, kind: input, shape index: {}]
  %s1 = inlined_call_operand.vmem [shape: bf16[32,128], index: 1, kind: input, shape index: {}]
  %s2 = inlined_call_operand.vmem [shape: f32[1,128], index: 2, kind: input, shape index: {}]
  %s3 = inlined_call_operand.vmem [shape: f32[1,128], index: 3, kind: input, shape index: {}]
  %s4 = inlined_call_operand.vmem [shape: f32[128,128], index: 4, kind: output, shape index: {}]
  %s5 = sld [smem:[#allocation0]]
  $region26: #{deeplab_forward.23} parent=0
    _
  %s7 = ssub.s32 1, %s5
  %s8 = scalar_select 0, %s7, %s5
  // Predicated region
  $region2: #{deeplab_forward.23} parent=0 // pred_check
    _
  $region3: #{deeplab_forward.23} parent=0 // pred_check_branch
    %10 = sbr.rel (0) target = $region5
  $region4: #{deeplab_forward.23} parent=0 // pred_region
    _
  $region5: #{deeplab_forward.23} parent=0 // pred_fallthru
    _
  // Predicated region
  $region6: #{deeplab_forward.23} parent=0 // pred_check
    _
  $region7: #{deeplab_forward.23} parent=0 // pred_check_branch
    %12 = sbr.rel (0) target = $region9
  $region8: #{deeplab_forward.23} parent=0 // pred_region
    _
  $region9: #{deeplab_forward.23} parent=0 // pred_fallthru
    _
  // Predicated region
  $region10: #{deeplab_forward.23} parent=0 // pred_check
    _
  $region11: #{deeplab_forward.23} parent=0 // pred_check_branch
    %14 = sbr.rel (0) target = $region13
  $region12: #{deeplab_forward.23} parent=0 // pred_region
    _
  $region13: #{deeplab_forward.23} parent=0 // pred_fallthru
    _
  // Predicated region
  $region14: #{deeplab_forward.23} parent=0 // pred_check
    _
  $region15: #{deeplab_forward.23} parent=0 // pred_check_branch
    %16 = sbr.rel (0) target = $region17
  $region16: #{deeplab_forward.23} parent=0 // pred_region
    _
  $region17: #{deeplab_forward.23} parent=0 // pred_fallthru
    _
  %v18 = vld [vmem:[%s0] sm:$0xf]
  %v19 = vld [vmem:[%s0 + $0x4] sm:$0xf]
  %v20 = vld [vmem:[%s0 + $0x8] sm:$0xf]
  %v21 = vld [vmem:[%s0 + $0xc] sm:$0xf]
  %v22 = vld [vmem:[%s0 + $0x10] sm:$0xf]
  %v23 = vld [vmem:[%s0 + $0x14] sm:$0xf]
  %v24 = vld [vmem:[%s0 + $0x18] sm:$0xf]
  %v25 = vld [vmem:[%s0 + $0x1c] sm:$0xf]
  %v26 = vld [vmem:[%s0 + $0x20] sm:$0xf]
  %v27 = vld [vmem:[%s0 + $0x24] sm:$0xf]
  %v28 = vld [vmem:[%s0 + $0x28] sm:$0xf]
  %v29 = vld [vmem:[%s0 + $0x2c] sm:$0xf]
  %v30 = vld [vmem:[%s0 + $0x30] sm:$0xf]
  %v31 = vld [vmem:[%s0 + $0x34] sm:$0xf]
  %v32 = vld [vmem:[%s0 + $0x38] sm:$0xf]
  %v33 = vld [vmem:[%s0 + $0x3c] sm:$0xf]
  %v34 = vld [vmem:[%s1] sm:$0xf]
  %v35 = vld [vmem:[%s1 + $0x4] sm:$0xf]
  %v36 = vld [vmem:[%s1 + $0x8] sm:$0xf]
  %v37 = vld [vmem:[%s1 + $0xc] sm:$0xf]
  %v54 = vunpack.c.l.b16 %v18
  %v55 = vunpack.c.l.b16 %v19
  %v56 = vunpack.c.l.b16 %v20
  %v57 = vunpack.c.l.b16 %v21
  %v58 = vunpack.c.l.b16 %v22
  %v59 = vunpack.c.l.b16 %v23
  %v60 = vunpack.c.l.b16 %v24
  %v61 = vunpack.c.l.b16 %v25
  %v62 = vunpack.c.l.b16 %v26
  %v63 = vunpack.c.l.b16 %v27
  %v64 = vunpack.c.l.b16 %v28
  %v65 = vunpack.c.l.b16 %v29
  %v66 = vunpack.c.l.b16 %v30
  %v67 = vunpack.c.l.b16 %v31
  %v68 = vunpack.c.l.b16 %v32
  %v69 = vunpack.c.l.b16 %v33
  %v70 = vpack.c.b16 %v55, %v54
  %v71 = vpack.c.b16 %v57, %v56
  %v72 = vpack.c.b16 %v59, %v58
  %v73 = vpack.c.b16 %v61, %v60
  %v74 = vpack.c.b16 %v63, %v62
  %v75 = vpack.c.b16 %v65, %v64
  %v76 = vpack.c.b16 %v67, %v66
  %v77 = vpack.c.b16 %v69, %v68
  %v82 = vunpack.c.l.b16 %v34
  %v83 = vunpack.c.l.b16 %v35
  %v84 = vunpack.c.l.b16 %v36
  %v85 = vunpack.c.l.b16 %v37
  %v86 = vpack.c.b16 %v83, %v82
  %v87 = vpack.c.b16 %v85, %v84
  %vm90 = vcmask 261120
  %v92 = vsel %vm90, %v70, 0
  %v95 = vsel %vm90, %v71, 0
  %v98 = vsel %vm90, %v72, 0
  %v101 = vsel %vm90, %v73, 0
  %v104 = vsel %vm90, %v74, 0
  %v107 = vsel %vm90, %v75, 0
  %v110 = vsel %vm90, %v76, 0
  %v113 = vsel %vm90, %v77, 0
  %115 = vmatprep.subr.bf16.mxu0 0
  %116 = vmatpush1.bf16.msra.mxu0 %v86
  %117 = vmatprep.subr.bf16.mxu0 0
  %118 = vmatpush1.bf16.msra.mxu0 %v87
  %119 = vmatprep.subr.bf16.mxu0 0
  %120 = vmatpush1.bf16.msra.mxu0 0
  %121 = vmatprep.subr.bf16.mxu0 0
  %122 = vmatpush1.bf16.msra.mxu0 0
  %123 = vmatprep.subr.bf16.mxu0 0
  %124 = vmatpush1.bf16.msra.mxu0 0
  %125 = vmatprep.subr.bf16.mxu0 0
  %126 = vmatpush1.bf16.msra.mxu0 0
  %127 = vmatprep.subr.bf16.mxu0 0
  %128 = vmatpush1.bf16.msra.mxu0 0
  %129 = vmatprep.subr.bf16.mxu0 0
  %130 = vmatpush1.bf16.msra.mxu0 0
  %131 = vmatprep.subr.bf16.mxu0 0
  %132 = vmatpush1.bf16.msra.mxu0 0
  %133 = vmatprep.subr.bf16.mxu0 0
  %134 = vmatpush1.bf16.msra.mxu0 0
  %135 = vmatprep.subr.bf16.mxu0 0
  %136 = vmatpush1.bf16.msra.mxu0 0
  %137 = vmatprep.subr.bf16.mxu0 0
  %138 = vmatpush1.bf16.msra.mxu0 0
  %139 = vmatprep.subr.bf16.mxu0 0
  %140 = vmatpush1.bf16.msra.mxu0 0
  %141 = vmatprep.subr.bf16.mxu0 0
  %142 = vmatpush1.bf16.msra.mxu0 0
  %143 = vmatprep.subr.bf16.mxu0 0
  %144 = vmatpush1.bf16.msra.mxu0 0
  %145 = vmatprep.subr.bf16.mxu0 0
  %146 = vmatpush1.bf16.msra.mxu0 0
  %147 = vmatprep.mubr.bf16.mxu0 0
  %148 = vmatmul.mubr.bf16.gmra.mrb[0].mxu0 %v92
  %v149 = vpop.f32.mrb[0].mxu0
  %v150 = vadd.f32 0.0, %v149
  %v151 = vpop.f32.mrb[0].mxu0
  %v152 = vpop.f32.mrb[0].mxu0
  %v153 = vadd.f32 0.0, %v152
  %v154 = vpop.f32.mrb[0].mxu0
  %155 = vmatprep.mubr.bf16.mxu0 0
  %156 = vmatmul.mubr.bf16.gmra.mrb[0].mxu0 %v95
  %v157 = vpop.f32.mrb[0].mxu0
  %v158 = vadd.f32 0.0, %v157
  %v159 = vpop.f32.mrb[0].mxu0
  %v160 = vpop.f32.mrb[0].mxu0
  %v161 = vadd.f32 0.0, %v160
  %v162 = vpop.f32.mrb[0].mxu0
  %163 = vmatprep.mubr.bf16.mxu0 0
  %164 = vmatmul.mubr.bf16.gmra.mrb[0].mxu0 %v98
  %v165 = vpop.f32.mrb[0].mxu0
  %v166 = vadd.f32 0.0, %v165
  %v167 = vpop.f32.mrb[0].mxu0
  %v168 = vpop.f32.mrb[0].mxu0
  %v169 = vadd.f32 0.0, %v168
  %v170 = vpop.f32.mrb[0].mxu0
  %171 = vmatprep.mubr.bf16.mxu0 0
  %172 = vmatmul.mubr.bf16.gmra.mrb[0].mxu0 %v101
  %v173 = vpop.f32.mrb[0].mxu0
  %v174 = vadd.f32 0.0, %v173
  %v175 = vpop.f32.mrb[0].mxu0
  %v176 = vpop.f32.mrb[0].mxu0
  %v177 = vadd.f32 0.0, %v176
  %v178 = vpop.f32.mrb[0].mxu0
  %179 = vmatprep.mubr.bf16.mxu0 0
  %180 = vmatmul.mubr.bf16.gmra.mrb[0].mxu0 %v104
  %v181 = vpop.f32.mrb[0].mxu0
  %v182 = vadd.f32 0.0, %v181
  %v183 = vpop.f32.mrb[0].mxu0
  %v184 = vpop.f32.mrb[0].mxu0
  %v185 = vadd.f32 0.0, %v184
  %v186 = vpop.f32.mrb[0].mxu0
  %187 = vmatprep.mubr.bf16.mxu0 0
  %188 = vmatmul.mubr.bf16.gmra.mrb[0].mxu0 %v107
  %v189 = vpop.f32.mrb[0].mxu0
  %v190 = vadd.f32 0.0, %v189
  %v191 = vpop.f32.mrb[0].mxu0
  %v192 = vpop.f32.mrb[0].mxu0
  %v193 = vadd.f32 0.0, %v192
  %v194 = vpop.f32.mrb[0].mxu0
  %195 = vmatprep.mubr.bf16.mxu0 0
  %196 = vmatmul.mubr.bf16.gmra.mrb[0].mxu0 %v110
  %v197 = vpop.f32.mrb[0].mxu0
  %v198 = vadd.f32 0.0, %v197
  %v199 = vpop.f32.mrb[0].mxu0
  %v200 = vpop.f32.mrb[0].mxu0
  %v201 = vadd.f32 0.0, %v200
  %v202 = vpop.f32.mrb[0].mxu0
  %203 = vmatprep.mubr.bf16.mxu0 0
  %204 = vmatmul.mubr.bf16.gmra.mrb[0].mxu0 %v113
  %v205 = vpop.f32.mrb[0].mxu0
  %v206 = vadd.f32 0.0, %v205
  %v207 = vpop.f32.mrb[0].mxu0
  %v208 = vpop.f32.mrb[0].mxu0
  %v209 = vadd.f32 0.0, %v208
  %v210 = vpop.f32.mrb[0].mxu0
  %211 = vdwg.mxu0
  %v212 = vld [vmem:[%s2] sm:$0x1]
  %v214 = vlaneseq
  %v215 = vshrl.u32 %v214, 7
  %v216 = vsub.s32 0, %v215
  %v217 = vrot.slane %v212, %v216
  %v219 = vmul.f32 %v150, %v217
  %v220 = vmul.f32 %v153, %v217
  %v221 = vmul.f32 %v158, %v217
  %v222 = vmul.f32 %v161, %v217
  %v223 = vmul.f32 %v166, %v217
  %v224 = vmul.f32 %v169, %v217
  %v225 = vmul.f32 %v174, %v217
  %v226 = vmul.f32 %v177, %v217
  %v227 = vmul.f32 %v182, %v217
  %v228 = vmul.f32 %v185, %v217
  %v229 = vmul.f32 %v190, %v217
  %v230 = vmul.f32 %v193, %v217
  %v231 = vmul.f32 %v198, %v217
  %v232 = vmul.f32 %v201, %v217
  %v233 = vmul.f32 %v206, %v217
  %v234 = vmul.f32 %v209, %v217
  %v235 = vld [vmem:[%s3] sm:$0x1]
  %v237 = vlaneseq
  %v238 = vshrl.u32 %v237, 7
  %v239 = vsub.s32 0, %v238
  %v240 = vrot.slane %v235, %v239
  %v242 = vadd.f32 %v219, %v240
  %v243 = vadd.f32 %v220, %v240
  %v244 = vadd.f32 %v221, %v240
  %v245 = vadd.f32 %v222, %v240
  %v246 = vadd.f32 %v223, %v240
  %v247 = vadd.f32 %v224, %v240
  %v248 = vadd.f32 %v225, %v240
  %v249 = vadd.f32 %v226, %v240
  %v250 = vadd.f32 %v227, %v240
  %v251 = vadd.f32 %v228, %v240
  %v252 = vadd.f32 %v229, %v240
  %v253 = vadd.f32 %v230, %v240
  %v254 = vadd.f32 %v231, %v240
  %v255 = vadd.f32 %v232, %v240
  %v256 = vadd.f32 %v233, %v240
  %v257 = vadd.f32 %v234, %v240
  %258 = vst [vmem:[%s4] sm:$0xff] %v242
  %259 = vst [vmem:[%s4 + $0x8] sm:$0xff] %v243
  %260 = vst [vmem:[%s4 + $0x10] sm:$0xff] %v244
  %261 = vst [vmem:[%s4 + $0x18] sm:$0xff] %v245
  %262 = vst [vmem:[%s4 + $0x20] sm:$0xff] %v246
  %263 = vst [vmem:[%s4 + $0x28] sm:$0xff] %v247
  %264 = vst [vmem:[%s4 + $0x30] sm:$0xff] %v248
  %265 = vst [vmem:[%s4 + $0x38] sm:$0xff] %v249
  %266 = vst [vmem:[%s4 + $0x40] sm:$0xff] %v250
  %267 = vst [vmem:[%s4 + $0x48] sm:$0xff] %v251
  %268 = vst [vmem:[%s4 + $0x50] sm:$0xff] %v252
  %269 = vst [vmem:[%s4 + $0x58] sm:$0xff] %v253
  %270 = vst [vmem:[%s4 + $0x60] sm:$0xff] %v254
  %271 = vst [vmem:[%s4 + $0x68] sm:$0xff] %v255
  %272 = vst [vmem:[%s4 + $0x70] sm:$0xff] %v256
  %273 = vst [vmem:[%s4 + $0x78] sm:$0xff] %v257
  // Predicated region
  $region18: #{deeplab_forward.23} parent=0 // pred_check
    _
  $region19: #{deeplab_forward.23} parent=0 // pred_check_branch
    %275 = sbr.rel (0) target = $region21
  $region20: #{deeplab_forward.23} parent=0 // pred_region
    _
  $region21: #{deeplab_forward.23} parent=0 // pred_fallthru
    _
  // Predicated region
  $region22: #{deeplab_forward.23} parent=0 // pred_check
    _
  $region23: #{deeplab_forward.23} parent=0 // pred_check_branch
    %277 = sbr.rel (0) target = $region25
  $region24: #{deeplab_forward.23} parent=0 // pred_region
    _
  $region25: #{deeplab_forward.23} parent=0 // pred_fallthru
    _

// kernel: deeplab_forward.24
$region0: #{deeplab_forward.24}
  #allocation0 [shape = 'u32[]', space=smem, size = 0x4, offset = 0x4, fixed_abs, tag = 'smem constant byte address 0x4 - core index']
  #allocation1 [shape = 'u32[144,128]{1,0:T(1,128)}', space=vmem, size = 0x12000, scoped, tag = 'internal scratch']
  %s0 = inlined_call_operand.vmem [shape: bf16[16,8], index: 0, kind: input, shape index: {}]
  %s1 = inlined_call_operand.vmem [shape: bf16[2,8,168], index: 1, kind: input, shape index: {}]
  %s2 = inlined_call_operand.vmem [shape: bf16[2,16,168], index: 2, kind: output, shape index: {}]
  %s3 = sld [smem:[#allocation0]]
  $region41: #{deeplab_forward.24} parent=0
    _
  %s5 = ssub.s32 1, %s3
  %s6 = scalar_select 0, %s5, %s3
  loop: start=0, step=1, limit=4
  $region2: #{deeplab_forward.24} parent=0 // loop_pre_header
    _
  $region3: #{deeplab_forward.24} parent=0 // loop_header
    %s8 = sphi 0, %s12
    %p9 = scmp.ge.s32.totalorder %s8, 4
    %s15 = sphi 0, %s34
    %s16 = sphi 0, %s30
    %s17 = sphi 0, %s26
    %s18 = sphi 0, %s15
    %s19 = sphi 0, %s16
    %s20 = sphi 0, %s17
    %s21 = sphi 0, %s18
    %s22 = sphi 0, %s19
    %s23 = sphi 0, %s20
    %s37 = sphi 0, %s39
    %s40 = sphi 0, %s37
    %s41 = sphi 0, %s40
    %s57 = sphi 0, %s41
    %s65 = sphi 0, %s67
    %s68 = sphi 0, %s65
    %s69 = sphi 0, %s68
    %s85 = sphi 0, %s69
    %s95 = sphi 0, %s97
    %s98 = sphi 0, %s95
    %s99 = sphi 0, %s98
    %s115 = sphi 0, %s99
  $region4: #{deeplab_forward.24} parent=0 // loop_header_branch
    %11 = sbr.rel (%p9) target = $region8
  $region5: #{deeplab_forward.24} parent=0 // loop_body
    %s13 = ssub.s32 %s8, 1
    %s14 = ssub.s32 %s8, 2
    %s24 = sadd.s32 1, %s17
    %p25 = scmp.ge.s32.totalorder %s24, 1
    %s26 = scalar_select %p25, 0, %s24
    %s27 = sadd.s32 1, %s16
    %s28 = scalar_select %p25, %s27, %s16
    %p29 = scmp.ge.s32.totalorder %s28, 1
    %s30 = scalar_select %p29, 0, %s28
    %s31 = sadd.s32 1, %s15
    %s32 = scalar_select %p29, %s31, %s15
    %p33 = scmp.ge.s32.totalorder %s32, 2
    %s34 = scalar_select %p33, 0, %s32
    %s35 = ssub.s32 %s16, %s30
    %p36 = scmp.eq.s32.totalorder %s35, 0
    %s38 = sadd.s32 %s37, 1
    %s39 = scalar_select %p36, %s37, %s38
    %p42 = pneg %p36
    %p43 = scmp.eq.s32.totalorder %s8, 1
    %p44 = por %p42, %p43
    %p45 = scmp.ne.s32.totalorder %s37, %s40
    %p46 = scmp.eq.s32.totalorder %s8, 0
    %p47 = por %p45, %p46
    %p48 = scmp.ne.s32.totalorder %s37, %s40
    %p49 = scmp.eq.s32.totalorder %s13, 1
    %p50 = por %p48, %p49
    %p51 = scmp.ne.s32.totalorder %s40, %s41
    %p52 = scmp.eq.s32.totalorder %s13, 0
    %p53 = por %p51, %p52
    %p54 = scmp.ne.s32.totalorder %s40, %s41
    %p55 = scmp.eq.s32.totalorder %s14, 1
    %p56 = por %p54, %p55
    %p58 = scmp.ne.s32.totalorder %s41, %s57
    %p59 = scmp.eq.s32.totalorder %s14, 0
    %p60 = por %p58, %p59
    %s61 = ssub.s32 %s15, %s34
    %s62 = ssub.s32 %s17, %s26
    %s63 = sor.u32 %s61, %s62
    %p64 = scmp.eq.s32.totalorder %s63, 0
    %s66 = sadd.s32 %s65, 1
    %s67 = scalar_select %p64, %s65, %s66
    %p70 = pneg %p64
    %p71 = scmp.eq.s32.totalorder %s8, 1
    %p72 = por %p70, %p71
    %p73 = scmp.ne.s32.totalorder %s65, %s68
    %p74 = scmp.eq.s32.totalorder %s8, 0
    %p75 = por %p73, %p74
    %p76 = scmp.ne.s32.totalorder %s65, %s68
    %p77 = scmp.eq.s32.totalorder %s13, 1
    %p78 = por %p76, %p77
    %p79 = scmp.ne.s32.totalorder %s68, %s69
    %p80 = scmp.eq.s32.totalorder %s13, 0
    %p81 = por %p79, %p80
    %p82 = scmp.ne.s32.totalorder %s68, %s69
    %p83 = scmp.eq.s32.totalorder %s14, 1
    %p84 = por %p82, %p83
    %p86 = scmp.ne.s32.totalorder %s69, %s85
    %p87 = scmp.eq.s32.totalorder %s14, 0
    %p88 = por %p86, %p87
    %s89 = ssub.s32 %s15, %s34
    %s90 = ssub.s32 %s16, %s30
    %s91 = sor.u32 %s89, %s90
    %s92 = ssub.s32 %s17, %s26
    %s93 = sor.u32 %s91, %s92
    %p94 = scmp.eq.s32.totalorder %s93, 0
    %s96 = sadd.s32 %s95, 1
    %s97 = scalar_select %p94, %s95, %s96
    %p100 = pneg %p94
    %p101 = scmp.eq.s32.totalorder %s8, 1
    %p102 = por %p100, %p101
    %p103 = scmp.ne.s32.totalorder %s95, %s98
    %p104 = scmp.eq.s32.totalorder %s8, 0
    %p105 = por %p103, %p104
    %p106 = scmp.ne.s32.totalorder %s95, %s98
    %p107 = scmp.eq.s32.totalorder %s13, 1
    %p108 = por %p106, %p107
    %p109 = scmp.ne.s32.totalorder %s98, %s99
    %p110 = scmp.eq.s32.totalorder %s13, 0
    %p111 = por %p109, %p110
    %p112 = scmp.ne.s32.totalorder %s98, %s99
    %p113 = scmp.eq.s32.totalorder %s14, 1
    %p114 = por %p112, %p113
    %p116 = scmp.ne.s32.totalorder %s99, %s115
    %p117 = scmp.eq.s32.totalorder %s14, 0
    %p118 = por %p116, %p117
    %p119 = scmp.le.s32.totalorder 1, %s8
    %p120 = scmp.lt.s32.totalorder %s8, 3
    %p121 = pnand %p119, %p120
    %p122 = pneg %p121
    // Predicated region
    $region9: #{deeplab_forward.24} parent=5 // pred_check
      _
    $region10: #{deeplab_forward.24} parent=5 // pred_check_branch
      %124 = sbr.rel (%p121) target = $region12
    $region11: #{deeplab_forward.24} parent=5 // pred_region
      %s125 = ssub.s32 %s8, 1
      // Predicated region
      $region13: #{deeplab_forward.24} parent=11 // pred_check
        %p126 = pneg %p53
      $region14: #{deeplab_forward.24} parent=11 // pred_check_branch
        %128 = sbr.rel (%p126) target = $region16
      $region15: #{deeplab_forward.24} parent=11 // pred_region
        %s129 = smul.u32 2, %s19
        %p130 = scmp.lt.s32.totalorder %s129, 1
        %s131 = scalar_select %p130, %s129, 1
        %s132 = smul.addr %s131, 4
        %s133 = scalar_lea.vmem %s0, %s132
        %s134 = smul.u32 2, %s19
      $region16: #{deeplab_forward.24} parent=11 // pred_fallthru
        _
    $region12: #{deeplab_forward.24} parent=5 // pred_fallthru
      _
    %p135 = scmp.lt.s32.totalorder %s8, 2
    // Predicated region
    $region17: #{deeplab_forward.24} parent=5 // pred_check
      %p136 = pneg %p135
    $region18: #{deeplab_forward.24} parent=5 // pred_check_branch
      %138 = sbr.rel (%p136) target = $region20
    $region19: #{deeplab_forward.24} parent=5 // pred_region
      // Predicated region
      $region21: #{deeplab_forward.24} parent=19 // pred_check
        %p139 = pneg %p75
      $region22: #{deeplab_forward.24} parent=19 // pred_check_branch
        %141 = sbr.rel (%p139) target = $region24
      $region23: #{deeplab_forward.24} parent=19 // pred_region
        %s142 = smul.u32 2, %s17
        %p143 = scmp.lt.s32.totalorder %s15, 1
        %s144 = scalar_select %p143, %s15, 1
        %p145 = scmp.lt.s32.totalorder %s142, 1
        %s146 = scalar_select %p145, %s142, 1
        %s147 = smul.addr %s144, 2
        %s148 = sadd.s32 %s146, %s147
        %s149 = smul.addr %s148, 4
        %s150 = scalar_lea.vmem %s1, %s149
        %s151 = smul.u32 2, %s17
      $region24: #{deeplab_forward.24} parent=19 // pred_fallthru
        _
    $region20: #{deeplab_forward.24} parent=5 // pred_fallthru
      _
    %p152 = scmp.le.s32.totalorder 1, %s8
    %p153 = scmp.lt.s32.totalorder %s8, 3
    %p154 = pnand %p152, %p153
    %p155 = pneg %p154
    // Predicated region
    $region25: #{deeplab_forward.24} parent=5 // pred_check
      _
    $region26: #{deeplab_forward.24} parent=5 // pred_check_branch
      %157 = sbr.rel (%p154) target = $region28
    $region27: #{deeplab_forward.24} parent=5 // pred_region
      %s158 = ssub.s32 %s8, 1
      %s159 = smul.u32 2, %s19
      %p160 = scmp.lt.s32.totalorder %s159, 1
      %s161 = scalar_select %p160, %s159, 1
      %s162 = smul.addr %s161, 4
      %s163 = scalar_lea.vmem %s0, %s162
      %p164 = pneg %p53
      %p165 = pneg %p50
      %s166 = smul.u32 2, %s20
      %p167 = scmp.lt.s32.totalorder %s18, 1
      %s168 = scalar_select %p167, %s18, 1
      %p169 = scmp.lt.s32.totalorder %s166, 1
      %s170 = scalar_select %p169, %s166, 1
      %s171 = smul.addr %s168, 2
      %s172 = sadd.s32 %s170, %s171
      %s173 = smul.addr %s172, 4
      %s174 = scalar_lea.vmem %s1, %s173
      %p175 = pneg %p81
      %p176 = pneg %p78
      %p177 = pneg %p111
      %p178 = pneg %p108
      %s179 = smul.u32 2, %s19
      %s180 = smul.u32 2, %s20
      %p181 = scmp.lt.s32.totalorder %s18, 1
      %s182 = scalar_select %p181, %s18, 1
      %p183 = scmp.lt.s32.totalorder %s179, 1
      %s184 = scalar_select %p183, %s179, 1
      %p185 = scmp.lt.s32.totalorder %s180, 1
      %s186 = scalar_select %p185, %s180, 1
      %s187 = smul.addr %s184, 2
      %s188 = sadd.s32 %s186, %s187
      %s189 = smul.addr %s182, 4
      %s190 = sadd.s32 %s188, %s189
      %s191 = smul.addr %s190, 4
      %s192 = scalar_lea.vmem %s2, %s191
      %s193 = smul.u32 2, %s19
      %p194 = scmp.lt.s32.totalorder %s193, 1
      %s195 = scalar_select %p194, %s193, 1
      %s196 = smul.addr %s195, 4
      %s197 = scalar_lea.vmem %s0, %s196
      %s198 = smul.u32 2, %s19
      %s199 = smul.u32 2, %s20
      %p200 = scmp.lt.s32.totalorder %s18, 1
      %s201 = scalar_select %p200, %s18, 1
      %p202 = scmp.lt.s32.totalorder %s199, 1
      %s203 = scalar_select %p202, %s199, 1
      %s204 = smul.addr %s201, 2
      %s205 = sadd.s32 %s203, %s204
      %s206 = smul.addr %s205, 4
      %s207 = scalar_lea.vmem %s1, %s206
      %s208 = smul.u32 2, %s20
      %s209 = smul.u32 2, %s19
      %s210 = smul.u32 2, %s20
      %p211 = scmp.lt.s32.totalorder %s18, 1
      %s212 = scalar_select %p211, %s18, 1
      %p213 = scmp.lt.s32.totalorder %s209, 1
      %s214 = scalar_select %p213, %s209, 1
      %p215 = scmp.lt.s32.totalorder %s210, 1
      %s216 = scalar_select %p215, %s210, 1
      %s217 = smul.addr %s214, 2
      %s218 = sadd.s32 %s216, %s217
      %s219 = smul.addr %s212, 4
      %s220 = sadd.s32 %s218, %s219
      %s221 = smul.addr %s220, 4
      %s222 = scalar_lea.vmem %s2, %s221
      %s223 = smul.u32 2, %s19
      %s224 = smul.u32 2, %s20
      %v226 = vld [vmem:[%s197] sm:$0xf]
      %v227 = vld [vmem:[%s197 + $0x4] sm:$0xf]
      %v228 = vld [vmem:[%s207] sm:$0xff]
      %v231 = vunpack.c.l.b16 %v226
      %v232 = vunpack.c.l.b16 %v227
      %v233 = vpack.c.b16 %v232, %v231
      %v235 = vunpack.c.l.b16 %v228
      %v236 = vunpack.c.h.b16 %v228
      %v237 = vpack.c.b16 %v235, %v235
      %v238 = vpack.c.b16 %v236, %v236
      %vm239 = vcmask 64512
      %v241 = vsel %vm239, %v233, 0
      %vm243 = vcmask 1043456
      %v245 = vsel %vm243, %v237, 0
      %v248 = vsel %vm243, %v238, 0
      %250 = vmatprep.subr.bf16.mxu0 %v248
      %251 = vmatpush1.bf16.msra.mxu0 %v245
      %252 = vmatprep.subr.bf16.mxu0 0
      %253 = vmatpush1.bf16.msra.mxu0 0
      %254 = vmatprep.subr.bf16.mxu0 0
      %255 = vmatpush1.bf16.msra.mxu0 0
      %256 = vmatprep.subr.bf16.mxu0 0
      %257 = vmatpush1.bf16.msra.mxu0 0
      %258 = vmatprep.subr.bf16.mxu0 0
      %259 = vmatpush1.bf16.msra.mxu0 0
      %260 = vmatprep.subr.bf16.mxu0 0
      %261 = vmatpush1.bf16.msra.mxu0 0
      %262 = vmatprep.subr.bf16.mxu0 0
      %263 = vmatpush1.bf16.msra.mxu0 0
      %264 = vmatprep.subr.bf16.mxu0 0
      %265 = vmatpush1.bf16.msra.mxu0 0
      %266 = vmatprep.subr.bf16.mxu0 0
      %267 = vmatpush1.bf16.msra.mxu0 0
      %268 = vmatprep.subr.bf16.mxu0 0
      %269 = vmatpush1.bf16.msra.mxu0 0
      %270 = vmatprep.subr.bf16.mxu0 0
      %271 = vmatpush1.bf16.msra.mxu0 0
      %272 = vmatprep.subr.bf16.mxu0 0
      %273 = vmatpush1.bf16.msra.mxu0 0
      %274 = vmatprep.subr.bf16.mxu0 0
      %275 = vmatpush1.bf16.msra.mxu0 0
      %276 = vmatprep.subr.bf16.mxu0 0
      %277 = vmatpush1.bf16.msra.mxu0 0
      %278 = vmatprep.subr.bf16.mxu0 0
      %279 = vmatpush1.bf16.msra.mxu0 0
      %280 = vmatprep.subr.bf16.mxu0 0
      %281 = vmatpush1.bf16.msra.mxu0 0
      %282 = vmatprep.mubr.bf16.mxu0 0
      %283 = vmatmul.mubr.bf16.gmra.mrb[0].mxu0 %v241
      %v284 = vpop.f32.mrb[0].mxu0
      %v285 = vadd.f32 0.0, %v284
      %v286 = vpop.f32.mrb[0].mxu0
      %v287 = vadd.f32 0.0, %v286
      %v288 = vpop.f32.mrb[0].mxu0
      %v289 = vadd.f32 0.0, %v288
      %v290 = vpop.f32.mrb[0].mxu0
      %v291 = vadd.f32 0.0, %v290
      %292 = vdwg.mxu0
      %v293 = vpack.c.bf16 %v289, %v285
      %v294 = vpack.c.bf16 %v291, %v287
      %v297 = vunpack.c.l.b16 %v293
      %v298 = vunpack.c.l.b16 %v294
      %v299 = vunpack.c.h.b16 %v293
      %v300 = vunpack.c.h.b16 %v294
      %v301 = vpack.c.b16 %v298, %v297
      %v302 = vpack.c.b16 %v300, %v299
      %vm305 = vcmask 326660
      %vm306 = vmor %vm305, %vm243
      %307 = vst.msk [vmem:[%s222] sm:$0xff] %vm306, %v301
      %308 = vst.msk [vmem:[%s222 + $0x8] sm:$0xff] %vm306, %v302
      %s309 = smul.u32 2, %s19
      %s310 = smul.u32 2, %s20
      %p311 = scmp.lt.s32.totalorder %s18, 1
      %s312 = scalar_select %p311, %s18, 1
      %p313 = scmp.lt.s32.totalorder %s309, 1
      %s314 = scalar_select %p313, %s309, 1
      %p315 = scmp.lt.s32.totalorder %s310, 1
      %s316 = scalar_select %p315, %s310, 1
      %s317 = smul.addr %s314, 2
      %s318 = sadd.s32 %s316, %s317
      %s319 = smul.addr %s312, 4
      %s320 = sadd.s32 %s318, %s319
      %s321 = smul.addr %s320, 4
      %s322 = scalar_lea.vmem %s2, %s321
      // Predicated region
      $region29: #{deeplab_forward.24} parent=27 // pred_check
        %p323 = pneg %p108
      $region30: #{deeplab_forward.24} parent=27 // pred_check_branch
        %325 = sbr.rel (%p323) target = $region32
      $region31: #{deeplab_forward.24} parent=27 // pred_region
        %s326 = smul.u32 2, %s19
        %s327 = smul.u32 2, %s20
      $region32: #{deeplab_forward.24} parent=27 // pred_fallthru
        _
    $region28: #{deeplab_forward.24} parent=5 // pred_fallthru
      _
    %p328 = scmp.le.s32.totalorder 2, %s8
    // Predicated region
    $region33: #{deeplab_forward.24} parent=5 // pred_check
      %p329 = pneg %p328
    $region34: #{deeplab_forward.24} parent=5 // pred_check_branch
      %331 = sbr.rel (%p329) target = $region36
    $region35: #{deeplab_forward.24} parent=5 // pred_region
      %s332 = ssub.s32 %s8, 2
      // Predicated region
      $region37: #{deeplab_forward.24} parent=35 // pred_check
        %p333 = pneg %p114
      $region38: #{deeplab_forward.24} parent=35 // pred_check_branch
        %335 = sbr.rel (%p333) target = $region40
      $region39: #{deeplab_forward.24} parent=35 // pred_region
        %s336 = smul.u32 2, %s22
        %s337 = smul.u32 2, %s23
        %p338 = scmp.lt.s32.totalorder %s21, 1
        %s339 = scalar_select %p338, %s21, 1
        %p340 = scmp.lt.s32.totalorder %s336, 1
        %s341 = scalar_select %p340, %s336, 1
        %p342 = scmp.lt.s32.totalorder %s337, 1
        %s343 = scalar_select %p342, %s337, 1
        %s344 = smul.addr %s341, 2
        %s345 = sadd.s32 %s343, %s344
        %s346 = smul.addr %s339, 4
        %s347 = sadd.s32 %s345, %s346
        %s348 = smul.addr %s347, 4
        %s349 = scalar_lea.vmem %s2, %s348
      $region40: #{deeplab_forward.24} parent=35 // pred_fallthru
        _
    $region36: #{deeplab_forward.24} parent=5 // pred_fallthru
      _
  $region6: #{deeplab_forward.24} parent=0 // loop_footer
    %s12 = sadd.s32 1, %s8
  $region7: #{deeplab_forward.24} parent=0 // loop_footer_branch
    %7 = sbr.rel target = $region3
  $region8: #{deeplab_forward.24} parent=0 // loop_exit
    _

// kernel: deeplab_forward.22
$region0: #{deeplab_forward.22}
  #allocation0 [shape = 'u32[]', space=smem, size = 0x4, offset = 0x4, fixed_abs, tag = 'smem constant byte address 0x4 - core index']
  #allocation1 [shape = 'u32[144,128]{1,0:T(1,128)}', space=vmem, size = 0x12000, scoped, tag = 'internal scratch']
  %s0 = inlined_call_operand.vmem [shape: bf16[128,288], index: 0, kind: input, shape index: {}]
  %s1 = inlined_call_operand.vmem [shape: bf16[128,72], index: 1, kind: input, shape index: {}]
  %s2 = inlined_call_operand.vmem [shape: bf16[288,128], index: 2, kind: input, shape index: {}]
  %s3 = inlined_call_operand.vmem [shape: bf16[72,128], index: 3, kind: input, shape index: {}]
  %s4 = inlined_call_operand.vmem [shape: f32[1,128], index: 4, kind: input, shape index: {}]
  %s5 = inlined_call_operand.vmem [shape: f32[1,128], index: 5, kind: input, shape index: {}]
  %s6 = inlined_call_operand.vmem [shape: bf16[128,128], index: 6, kind: output, shape index: {}]
  %s7 = sld [smem:[#allocation0]]
  $region34: #{deeplab_forward.22} parent=0
    _
  %s9 = ssub.s32 1, %s7
  %s10 = scalar_select 0, %s9, %s7
  // Predicated region
  $region2: #{deeplab_forward.22} parent=0 // pred_check
    _
  $region3: #{deeplab_forward.22} parent=0 // pred_check_branch
    %12 = sbr.rel (0) target = $region5
  $region4: #{deeplab_forward.22} parent=0 // pred_region
    _
  $region5: #{deeplab_forward.22} parent=0 // pred_fallthru
    _
  // Predicated region
  $region6: #{deeplab_forward.22} parent=0 // pred_check
    _
  $region7: #{deeplab_forward.22} parent=0 // pred_check_branch
    %14 = sbr.rel (0) target = $region9
  $region8: #{deeplab_forward.22} parent=0 // pred_region
    _
  $region9: #{deeplab_forward.22} parent=0 // pred_fallthru
    _
  // Predicated region
  $region10: #{deeplab_forward.22} parent=0 // pred_check
    _
  $region11: #{deeplab_forward.22} parent=0 // pred_check_branch
    %16 = sbr.rel (0) target = $region13
  $region12: #{deeplab_forward.22} parent=0 // pred_region
    _
  $region13: #{deeplab_forward.22} parent=0 // pred_fallthru
    _
  // Predicated region
  $region14: #{deeplab_forward.22} parent=0 // pred_check
    _
  $region15: #{deeplab_forward.22} parent=0 // pred_check_branch
    %18 = sbr.rel (0) target = $region17
  $region16: #{deeplab_forward.22} parent=0 // pred_region
    _
  $region17: #{deeplab_forward.22} parent=0 // pred_fallthru
    _
  // Predicated region
  $region18: #{deeplab_forward.22} parent=0 // pred_check
    _
  $region19: #{deeplab_forward.22} parent=0 // pred_check_branch
    %20 = sbr.rel (0) target = $region21
  $region20: #{deeplab_forward.22} parent=0 // pred_region
    _
  $region21: #{deeplab_forward.22} parent=0 // pred_fallthru
    _
  // Predicated region
  $region22: #{deeplab_forward.22} parent=0 // pred_check
    _
  $region23: #{deeplab_forward.22} parent=0 // pred_check_branch
    %22 = sbr.rel (0) target = $region25
  $region24: #{deeplab_forward.22} parent=0 // pred_region
    _
  $region25: #{deeplab_forward.22} parent=0 // pred_fallthru
    _
  %v24 = vld [vmem:[%s0] sm:$0xff]
  %v25 = vld [vmem:[%s0 + $0x8] sm:$0xf]
  %v26 = vld [vmem:[%s0 + $0xc] sm:$0xff]
  %v27 = vld [vmem:[%s0 + $0x14] sm:$0xf]
  %v28 = vld [vmem:[%s0 + $0x18] sm:$0xff]
  %v29 = vld [vmem:[%s0 + $0x20] sm:$0xf]
  %v30 = vld [vmem:[%s0 + $0x24] sm:$0xff]
  %v31 = vld [vmem:[%s0 + $0x2c] sm:$0xf]
  %v32 = vld [vmem:[%s0 + $0x30] sm:$0xff]
  %v33 = vld [vmem:[%s0 + $0x38] sm:$0xf]
  %v34 = vld [vmem:[%s0 + $0x3c] sm:$0xff]
  %v35 = vld [vmem:[%s0 + $0x44] sm:$0xf]
  %v36 = vld [vmem:[%s0 + $0x48] sm:$0xff]
  %v37 = vld [vmem:[%s0 + $0x50] sm:$0xf]
  %v38 = vld [vmem:[%s0 + $0x54] sm:$0xff]
  %v39 = vld [vmem:[%s0 + $0x5c] sm:$0xf]
  %v40 = vld [vmem:[%s0 + $0x60] sm:$0xff]
  %v41 = vld [vmem:[%s0 + $0x68] sm:$0xf]
  %v42 = vld [vmem:[%s0 + $0x6c] sm:$0xff]
  %v43 = vld [vmem:[%s0 + $0x74] sm:$0xf]
  %v44 = vld [vmem:[%s0 + $0x78] sm:$0xff]
  %v45 = vld [vmem:[%s0 + $0x80] sm:$0xf]
  %v46 = vld [vmem:[%s0 + $0x84] sm:$0xff]
  %v47 = vld [vmem:[%s0 + $0x8c] sm:$0xf]
  %v48 = vld [vmem:[%s0 + $0x90] sm:$0xff]
  %v49 = vld [vmem:[%s0 + $0x98] sm:$0xf]
  %v50 = vld [vmem:[%s0 + $0x9c] sm:$0xff]
  %v51 = vld [vmem:[%s0 + $0xa4] sm:$0xf]
  %v52 = vld [vmem:[%s0 + $0xa8] sm:$0xff]
  %v53 = vld [vmem:[%s0 + $0xb0] sm:$0xf]
  %v54 = vld [vmem:[%s0 + $0xb4] sm:$0xff]
  %v55 = vld [vmem:[%s0 + $0xbc] sm:$0xf]
  %v56 = vld [vmem:[%s2] sm:$0xf]
  %v57 = vld [vmem:[%s2 + $0x4] sm:$0xf]
  %v58 = vld [vmem:[%s2 + $0x8] sm:$0xf]
  %v59 = vld [vmem:[%s2 + $0xc] sm:$0xf]
  %v60 = vld [vmem:[%s2 + $0x10] sm:$0xf]
  %v61 = vld [vmem:[%s2 + $0x14] sm:$0xf]
  %v62 = vld [vmem:[%s2 + $0x18] sm:$0xf]
  %v63 = vld [vmem:[%s2 + $0x1c] sm:$0xf]
  %v64 = vld [vmem:[%s2 + $0x20] sm:$0xf]
  %v65 = vld [vmem:[%s2 + $0x24] sm:$0xf]
  %v66 = vld [vmem:[%s2 + $0x28] sm:$0xf]
  %v67 = vld [vmem:[%s2 + $0x2c] sm:$0xf]
  %v68 = vld [vmem:[%s2 + $0x30] sm:$0xf]
  %v69 = vld [vmem:[%s2 + $0x34] sm:$0xf]
  %v70 = vld [vmem:[%s2 + $0x38] sm:$0xf]
  %v71 = vld [vmem:[%s2 + $0x3c] sm:$0xf]
  %v72 = vld [vmem:[%s2 + $0x40] sm:$0xf]
  %v73 = vld [vmem:[%s2 + $0x44] sm:$0xf]
  %v74 = vld [vmem:[%s2 + $0x48] sm:$0xf]
  %v75 = vld [vmem:[%s2 + $0x4c] sm:$0xf]
  %v76 = vld [vmem:[%s2 + $0x50] sm:$0xf]
  %v77 = vld [vmem:[%s2 + $0x54] sm:$0xf]
  %v78 = vld [vmem:[%s2 + $0x58] sm:$0xf]
  %v79 = vld [vmem:[%s2 + $0x5c] sm:$0xf]
  %v80 = vld [vmem:[%s2 + $0x60] sm:$0xf]
  %v81 = vld [vmem:[%s2 + $0x64] sm:$0xf]
  %v82 = vld [vmem:[%s2 + $0x68] sm:$0xf]
  %v83 = vld [vmem:[%s2 + $0x6c] sm:$0xf]
  %v84 = vld [vmem:[%s2 + $0x70] sm:$0xf]
  %v85 = vld [vmem:[%s2 + $0x74] sm:$0xf]
  %v86 = vld [vmem:[%s2 + $0x78] sm:$0xf]
  %v87 = vld [vmem:[%s2 + $0x7c] sm:$0xf]
  %v88 = vld [vmem:[%s2 + $0x80] sm:$0xf]
  %v89 = vld [vmem:[%s2 + $0x84] sm:$0xf]
  %v90 = vld [vmem:[%s2 + $0x88] sm:$0xf]
  %v91 = vld [vmem:[%s2 + $0x8c] sm:$0xf]
  %v92 = vld [vmem:[%s1] sm:$0xf]
  %v93 = vld [vmem:[%s1 + $0x4] sm:$0xf]
  %v94 = vld [vmem:[%s1 + $0x8] sm:$0xf]
  %v95 = vld [vmem:[%s1 + $0xc] sm:$0xf]
  %v96 = vld [vmem:[%s1 + $0x10] sm:$0xf]
  %v97 = vld [vmem:[%s1 + $0x14] sm:$0xf]
  %v98 = vld [vmem:[%s1 + $0x18] sm:$0xf]
  %v99 = vld [vmem:[%s1 + $0x1c] sm:$0xf]
  %v100 = vld [vmem:[%s1 + $0x20] sm:$0xf]
  %v101 = vld [vmem:[%s1 + $0x24] sm:$0xf]
  %v102 = vld [vmem:[%s1 + $0x28] sm:$0xf]
  %v103 = vld [vmem:[%s1 + $0x2c] sm:$0xf]
  %v104 = vld [vmem:[%s1 + $0x30] sm:$0xf]
  %v105 = vld [vmem:[%s1 + $0x34] sm:$0xf]
  %v106 = vld [vmem:[%s1 + $0x38] sm:$0xf]
  %v107 = vld [vmem:[%s1 + $0x3c] sm:$0xf]
  %v108 = vld [vmem:[%s3] sm:$0xf]
  %v109 = vld [vmem:[%s3 + $0x4] sm:$0xf]
  %v110 = vld [vmem:[%s3 + $0x8] sm:$0xf]
  %v111 = vld [vmem:[%s3 + $0xc] sm:$0xf]
  %v112 = vld [vmem:[%s3 + $0x10] sm:$0xf]
  %v113 = vld [vmem:[%s3 + $0x14] sm:$0xf]
  %v114 = vld [vmem:[%s3 + $0x18] sm:$0xf]
  %v115 = vld [vmem:[%s3 + $0x1c] sm:$0xf]
  %v116 = vld [vmem:[%s3 + $0x20] sm:$0xf]
  %v133 = vunpack.c.l.b16 %v92
  %v134 = vunpack.c.l.b16 %v93
  %v135 = vunpack.c.l.b16 %v94
  %v136 = vunpack.c.l.b16 %v95
  %v137 = vunpack.c.l.b16 %v96
  %v138 = vunpack.c.l.b16 %v97
  %v139 = vunpack.c.l.b16 %v98
  %v140 = vunpack.c.l.b16 %v99
  %v141 = vunpack.c.l.b16 %v100
  %v142 = vunpack.c.l.b16 %v101
  %v143 = vunpack.c.l.b16 %v102
  %v144 = vunpack.c.l.b16 %v103
  %v145 = vunpack.c.l.b16 %v104
  %v146 = vunpack.c.l.b16 %v105
  %v147 = vunpack.c.l.b16 %v106
  %v148 = vunpack.c.l.b16 %v107
  %v149 = vpack.c.b16 %v134, %v133
  %v150 = vpack.c.b16 %v136, %v135
  %v151 = vpack.c.b16 %v138, %v137
  %v152 = vpack.c.b16 %v140, %v139
  %v153 = vpack.c.b16 %v142, %v141
  %v154 = vpack.c.b16 %v144, %v143
  %v155 = vpack.c.b16 %v146, %v145
  %v156 = vpack.c.b16 %v148, %v147
  %v166 = vunpack.c.l.b16 %v108
  %v167 = vunpack.c.l.b16 %v109
  %v168 = vunpack.c.l.b16 %v110
  %v169 = vunpack.c.l.b16 %v111
  %v170 = vunpack.c.l.b16 %v112
  %v171 = vunpack.c.l.b16 %v113
  %v172 = vunpack.c.l.b16 %v114
  %v173 = vunpack.c.l.b16 %v115
  %v174 = vunpack.c.l.b16 %v116
  %v175 = vpack.c.b16 %v167, %v166
  %v176 = vpack.c.b16 %v169, %v168
  %v177 = vpack.c.b16 %v171, %v170
  %v178 = vpack.c.b16 %v173, %v172
  %v179 = vpack.c.b16 %v174, %v174
  %vm184 = vcmask 588800
  %v186 = vsel %vm184, %v149, 0
  %v189 = vsel %vm184, %v150, 0
  %v192 = vsel %vm184, %v151, 0
  %v195 = vsel %vm184, %v152, 0
  %v198 = vsel %vm184, %v153, 0
  %v201 = vsel %vm184, %v154, 0
  %v204 = vsel %vm184, %v155, 0
  %v207 = vsel %vm184, %v156, 0
  %vm209 = vcmask 1043456
  %v211 = vsel %vm209, %v179, 0
  %213 = vmatprep.subr.bf16.mxu0 0
  %214 = vmatpush1.bf16.msra.mxu0 %v175
  %215 = vmatprep.subr.bf16.mxu0 0
  %216 = vmatpush1.bf16.msra.mxu0 %v176
  %217 = vmatprep.subr.bf16.mxu0 0
  %218 = vmatpush1.bf16.msra.mxu0 %v177
  %219 = vmatprep.subr.bf16.mxu0 0
  %220 = vmatpush1.bf16.msra.mxu0 %v178
  %221 = vmatprep.subr.bf16.mxu0 0
  %222 = vmatpush1.bf16.msra.mxu0 %v211
  %223 = vmatprep.subr.bf16.mxu0 0
  %224 = vmatpush1.bf16.msra.mxu0 0
  %225 = vmatprep.subr.bf16.mxu0 0
  %226 = vmatpush1.bf16.msra.mxu0 0
  %227 = vmatprep.subr.bf16.mxu0 0
  %228 = vmatpush1.bf16.msra.mxu0 0
  %229 = vmatprep.subr.bf16.mxu0 0
  %230 = vmatpush1.bf16.msra.mxu0 0
  %231 = vmatprep.subr.bf16.mxu0 0
  %232 = vmatpush1.bf16.msra.mxu0 0
  %233 = vmatprep.subr.bf16.mxu0 0
  %234 = vmatpush1.bf16.msra.mxu0 0
  %235 = vmatprep.subr.bf16.mxu0 0
  %236 = vmatpush1.bf16.msra.mxu0 0
  %237 = vmatprep.subr.bf16.mxu0 0
  %238 = vmatpush1.bf16.msra.mxu0 0
  %239 = vmatprep.subr.bf16.mxu0 0
  %240 = vmatpush1.bf16.msra.mxu0 0
  %241 = vmatprep.subr.bf16.mxu0 0
  %242 = vmatpush1.bf16.msra.mxu0 0
  %243 = vmatprep.subr.bf16.mxu0 0
  %244 = vmatpush1.bf16.msra.mxu0 0
  %245 = vmatprep.mubr.bf16.mxu0 0
  %246 = vmatmul.mubr.bf16.gmra.mrb[0].mxu0 %v186
  %v247 = vpop.f32.mrb[0].mxu0
  %v248 = vadd.f32 0.0, %v247
  %v249 = vpop.f32.mrb[0].mxu0
  %v250 = vpop.f32.mrb[0].mxu0
  %v251 = vadd.f32 0.0, %v250
  %v252 = vpop.f32.mrb[0].mxu0
  %253 = vmatprep.mubr.bf16.mxu0 0
  %254 = vmatmul.mubr.bf16.gmra.mrb[0].mxu0 %v189
  %v255 = vpop.f32.mrb[0].mxu0
  %v256 = vadd.f32 0.0, %v255
  %v257 = vpop.f32.mrb[0].mxu0
  %v258 = vpop.f32.mrb[0].mxu0
  %v259 = vadd.f32 0.0, %v258
  %v260 = vpop.f32.mrb[0].mxu0
  %261 = vmatprep.mubr.bf16.mxu0 0
  %262 = vmatmul.mubr.bf16.gmra.mrb[0].mxu0 %v192
  %v263 = vpop.f32.mrb[0].mxu0
  %v264 = vadd.f32 0.0, %v263
  %v265 = vpop.f32.mrb[0].mxu0
  %v266 = vpop.f32.mrb[0].mxu0
  %v267 = vadd.f32 0.0, %v266
  %v268 = vpop.f32.mrb[0].mxu0
  %269 = vmatprep.mubr.bf16.mxu0 0
  %270 = vmatmul.mubr.bf16.gmra.mrb[0].mxu0 %v195
  %v271 = vpop.f32.mrb[0].mxu0
  %v272 = vadd.f32 0.0, %v271
  %v273 = vpop.f32.mrb[0].mxu0
  %v274 = vpop.f32.mrb[0].mxu0
  %v275 = vadd.f32 0.0, %v274
  %v276 = vpop.f32.mrb[0].mxu0
  %277 = vmatprep.mubr.bf16.mxu0 0
  %278 = vmatmul.mubr.bf16.gmra.mrb[0].mxu0 %v198
  %v279 = vpop.f32.mrb[0].mxu0
  %v280 = vadd.f32 0.0, %v279
  %v281 = vpop.f32.mrb[0].mxu0
  %v282 = vpop.f32.mrb[0].mxu0
  %v283 = vadd.f32 0.0, %v282
  %v284 = vpop.f32.mrb[0].mxu0
  %285 = vmatprep.mubr.bf16.mxu0 0
  %286 = vmatmul.mubr.bf16.gmra.mrb[0].mxu0 %v201
  %v287 = vpop.f32.mrb[0].mxu0
  %v288 = vadd.f32 0.0, %v287
  %v289 = vpop.f32.mrb[0].mxu0
  %v290 = vpop.f32.mrb[0].mxu0
  %v291 = vadd.f32 0.0, %v290
  %v292 = vpop.f32.mrb[0].mxu0
  %293 = vmatprep.mubr.bf16.mxu0 0
  %294 = vmatmul.mubr.bf16.gmra.mrb[0].mxu0 %v204
  %v295 = vpop.f32.mrb[0].mxu0
  %v296 = vadd.f32 0.0, %v295
  %v297 = vpop.f32.mrb[0].mxu0
  %v298 = vpop.f32.mrb[0].mxu0
  %v299 = vadd.f32 0.0, %v298
  %v300 = vpop.f32.mrb[0].mxu0
  %301 = vmatprep.mubr.bf16.mxu0 0
  %302 = vmatmul.mubr.bf16.gmra.mrb[0].mxu0 %v207
  %v303 = vpop.f32.mrb[0].mxu0
  %v304 = vadd.f32 0.0, %v303
  %v305 = vpop.f32.mrb[0].mxu0
  %v306 = vpop.f32.mrb[0].mxu0
  %v307 = vadd.f32 0.0, %v306
  %v308 = vpop.f32.mrb[0].mxu0
  %309 = vdwg.mxu0
  %v342 = vunpack.c.l.b16 %v24
  %v343 = vunpack.c.h.b16 %v24
  %v344 = vunpack.c.l.b16 %v25
  %v345 = vunpack.c.l.b16 %v26
  %v346 = vunpack.c.h.b16 %v26
  %v347 = vunpack.c.l.b16 %v27
  %v348 = vunpack.c.l.b16 %v28
  %v349 = vunpack.c.h.b16 %v28
  %v350 = vunpack.c.l.b16 %v29
  %v351 = vunpack.c.l.b16 %v30
  %v352 = vunpack.c.h.b16 %v30
  %v353 = vunpack.c.l.b16 %v31
  %v354 = vunpack.c.l.b16 %v32
  %v355 = vunpack.c.h.b16 %v32
  %v356 = vunpack.c.l.b16 %v33
  %v357 = vunpack.c.l.b16 %v34
  %v358 = vunpack.c.h.b16 %v34
  %v359 = vunpack.c.l.b16 %v35
  %v360 = vunpack.c.l.b16 %v36
  %v361 = vunpack.c.h.b16 %v36
  %v362 = vunpack.c.l.b16 %v37
  %v363 = vunpack.c.l.b16 %v38
  %v364 = vunpack.c.h.b16 %v38
  %v365 = vunpack.c.l.b16 %v39
  %v366 = vunpack.c.l.b16 %v40
  %v367 = vunpack.c.h.b16 %v40
  %v368 = vunpack.c.l.b16 %v41
  %v369 = vunpack.c.l.b16 %v42
  %v370 = vunpack.c.h.b16 %v42
  %v371 = vunpack.c.l.b16 %v43
  %v372 = vunpack.c.l.b16 %v44
  %v373 = vunpack.c.h.b16 %v44
  %v374 = vunpack.c.l.b16 %v45
  %v375 = vunpack.c.l.b16 %v46
  %v376 = vunpack.c.h.b16 %v46
  %v377 = vunpack.c.l.b16 %v47
  %v378 = vunpack.c.l.b16 %v48
  %v379 = vunpack.c.h.b16 %v48
  %v380 = vunpack.c.l.b16 %v49
  %v381 = vunpack.c.l.b16 %v50
  %v382 = vunpack.c.h.b16 %v50
  %v383 = vunpack.c.l.b16 %v51
  %v384 = vunpack.c.l.b16 %v52
  %v385 = vunpack.c.h.b16 %v52
  %v386 = vunpack.c.l.b16 %v53
  %v387 = vunpack.c.l.b16 %v54
  %v388 = vunpack.c.h.b16 %v54
  %v389 = vunpack.c.l.b16 %v55
  %v390 = vpack.c.b16 %v345, %v342
  %v391 = vpack.c.b16 %v346, %v343
  %v392 = vpack.c.b16 %v347, %v344
  %v393 = vpack.c.b16 %v351, %v348
  %v394 = vpack.c.b16 %v352, %v349
  %v395 = vpack.c.b16 %v353, %v350
  %v396 = vpack.c.b16 %v357, %v354
  %v397 = vpack.c.b16 %v358, %v355
  %v398 = vpack.c.b16 %v359, %v356
  %v399 = vpack.c.b16 %v363, %v360
  %v400 = vpack.c.b16 %v364, %v361
  %v401 = vpack.c.b16 %v365, %v362
  %v402 = vpack.c.b16 %v369, %v366
  %v403 = vpack.c.b16 %v370, %v367
  %v404 = vpack.c.b16 %v371, %v368
  %v405 = vpack.c.b16 %v375, %v372
  %v406 = vpack.c.b16 %v376, %v373
  %v407 = vpack.c.b16 %v377, %v374
  %v408 = vpack.c.b16 %v381, %v378
  %v409 = vpack.c.b16 %v382, %v379
  %v410 = vpack.c.b16 %v383, %v380
  %v411 = vpack.c.b16 %v387, %v384
  %v412 = vpack.c.b16 %v388, %v385
  %v413 = vpack.c.b16 %v389, %v386
  %v466 = vunpack.c.l.b16 %v56
  %v467 = vunpack.c.l.b16 %v57
  %v468 = vunpack.c.l.b16 %v58
  %v469 = vunpack.c.l.b16 %v59
  %v470 = vunpack.c.l.b16 %v60
  %v471 = vunpack.c.l.b16 %v61
  %v472 = vunpack.c.l.b16 %v62
  %v473 = vunpack.c.l.b16 %v63
  %v474 = vunpack.c.l.b16 %v64
  %v475 = vunpack.c.l.b16 %v65
  %v476 = vunpack.c.l.b16 %v66
  %v477 = vunpack.c.l.b16 %v67
  %v478 = vunpack.c.l.b16 %v68
  %v479 = vunpack.c.l.b16 %v69
  %v480 = vunpack.c.l.b16 %v70
  %v481 = vunpack.c.l.b16 %v71
  %v482 = vunpack.c.l.b16 %v72
  %v483 = vunpack.c.l.b16 %v73
  %v484 = vunpack.c.l.b16 %v74
  %v485 = vunpack.c.l.b16 %v75
  %v486 = vunpack.c.l.b16 %v76
  %v487 = vunpack.c.l.b16 %v77
  %v488 = vunpack.c.l.b16 %v78
  %v489 = vunpack.c.l.b16 %v79
  %v490 = vunpack.c.l.b16 %v80
  %v491 = vunpack.c.l.b16 %v81
  %v492 = vunpack.c.l.b16 %v82
  %v493 = vunpack.c.l.b16 %v83
  %v494 = vunpack.c.l.b16 %v84
  %v495 = vunpack.c.l.b16 %v85
  %v496 = vunpack.c.l.b16 %v86
  %v497 = vunpack.c.l.b16 %v87
  %v498 = vunpack.c.l.b16 %v88
  %v499 = vunpack.c.l.b16 %v89
  %v500 = vunpack.c.l.b16 %v90
  %v501 = vunpack.c.l.b16 %v91
  %v502 = vpack.c.b16 %v467, %v466
  %v503 = vpack.c.b16 %v469, %v468
  %v504 = vpack.c.b16 %v471, %v470
  %v505 = vpack.c.b16 %v473, %v472
  %v506 = vpack.c.b16 %v475, %v474
  %v507 = vpack.c.b16 %v477, %v476
  %v508 = vpack.c.b16 %v479, %v478
  %v509 = vpack.c.b16 %v481, %v480
  %v510 = vpack.c.b16 %v483, %v482
  %v511 = vpack.c.b16 %v485, %v484
  %v512 = vpack.c.b16 %v487, %v486
  %v513 = vpack.c.b16 %v489, %v488
  %v514 = vpack.c.b16 %v491, %v490
  %v515 = vpack.c.b16 %v493, %v492
  %v516 = vpack.c.b16 %v495, %v494
  %v517 = vpack.c.b16 %v497, %v496
  %v518 = vpack.c.b16 %v499, %v498
  %v519 = vpack.c.b16 %v501, %v500
  %vm538 = vcmask 261120
  %v540 = vsel %vm538, %v392, 0
  %v543 = vsel %vm538, %v395, 0
  %v546 = vsel %vm538, %v398, 0
  %v549 = vsel %vm538, %v401, 0
  %v552 = vsel %vm538, %v404, 0
  %v555 = vsel %vm538, %v407, 0
  %v558 = vsel %vm538, %v410, 0
  %v561 = vsel %vm538, %v413, 0
  %563 = vmatprep.subr.bf16.mxu0 0
  %564 = vmatpush1.bf16.msra.mxu0 %v502
  %565 = vmatprep.subr.bf16.mxu0 0
  %566 = vmatpush1.bf16.msra.mxu0 %v503
  %567 = vmatprep.subr.bf16.mxu0 0
  %568 = vmatpush1.bf16.msra.mxu0 %v504
  %569 = vmatprep.subr.bf16.mxu0 0
  %570 = vmatpush1.bf16.msra.mxu0 %v505
  %571 = vmatprep.subr.bf16.mxu0 0
  %572 = vmatpush1.bf16.msra.mxu0 %v506
  %573 = vmatprep.subr.bf16.mxu0 0
  %574 = vmatpush1.bf16.msra.mxu0 %v507
  %575 = vmatprep.subr.bf16.mxu0 0
  %576 = vmatpush1.bf16.msra.mxu0 %v508
  %577 = vmatprep.subr.bf16.mxu0 0
  %578 = vmatpush1.bf16.msra.mxu0 %v509
  %579 = vmatprep.subr.bf16.mxu0 0
  %580 = vmatpush1.bf16.msra.mxu0 %v510
  %581 = vmatprep.subr.bf16.mxu0 0
  %582 = vmatpush1.bf16.msra.mxu0 %v511
  %583 = vmatprep.subr.bf16.mxu0 0
  %584 = vmatpush1.bf16.msra.mxu0 %v512
  %585 = vmatprep.subr.bf16.mxu0 0
  %586 = vmatpush1.bf16.msra.mxu0 %v513
  %587 = vmatprep.subr.bf16.mxu0 0
  %588 = vmatpush1.bf16.msra.mxu0 %v514
  %589 = vmatprep.subr.bf16.mxu0 0
  %590 = vmatpush1.bf16.msra.mxu0 %v515
  %591 = vmatprep.subr.bf16.mxu0 0
  %592 = vmatpush1.bf16.msra.mxu0 %v516
  %593 = vmatprep.subr.bf16.mxu0 0
  %594 = vmatpush1.bf16.msra.mxu0 %v517
  %595 = vmatprep.mubr.bf16.mxu0 %v391
  %596 = vmatmul.mubr.bf16.gmra.mrb[0].mxu0 %v390
  %v597 = vpop.f32.mrb[0].mxu0
  %v598 = vadd.f32 %v248, %v597
  %v599 = vpop.f32.mrb[0].mxu0
  %v600 = vpop.f32.mrb[0].mxu0
  %v601 = vadd.f32 %v251, %v600
  %v602 = vpop.f32.mrb[0].mxu0
  %603 = vmatprep.mubr.bf16.mxu0 %v394
  %604 = vmatmul.mubr.bf16.gmra.mrb[0].mxu0 %v393
  %v605 = vpop.f32.mrb[0].mxu0
  %v606 = vadd.f32 %v256, %v605
  %v607 = vpop.f32.mrb[0].mxu0
  %v608 = vpop.f32.mrb[0].mxu0
  %v609 = vadd.f32 %v259, %v608
  %v610 = vpop.f32.mrb[0].mxu0
  %611 = vmatprep.mubr.bf16.mxu0 %v397
  %612 = vmatmul.mubr.bf16.gmra.mrb[0].mxu0 %v396
  %v613 = vpop.f32.mrb[0].mxu0
  %v614 = vadd.f32 %v264, %v613
  %v615 = vpop.f32.mrb[0].mxu0
  %v616 = vpop.f32.mrb[0].mxu0
  %v617 = vadd.f32 %v267, %v616
  %v618 = vpop.f32.mrb[0].mxu0
  %619 = vmatprep.mubr.bf16.mxu0 %v400
  %620 = vmatmul.mubr.bf16.gmra.mrb[0].mxu0 %v399
  %v621 = vpop.f32.mrb[0].mxu0
  %v622 = vadd.f32 %v272, %v621
  %v623 = vpop.f32.mrb[0].mxu0
  %v624 = vpop.f32.mrb[0].mxu0
  %v625 = vadd.f32 %v275, %v624
  %v626 = vpop.f32.mrb[0].mxu0
  %627 = vmatprep.mubr.bf16.mxu0 %v403
  %628 = vmatmul.mubr.bf16.gmra.mrb[0].mxu0 %v402
  %v629 = vpop.f32.mrb[0].mxu0
  %v630 = vadd.f32 %v280, %v629
  %v631 = vpop.f32.mrb[0].mxu0
  %v632 = vpop.f32.mrb[0].mxu0
  %v633 = vadd.f32 %v283, %v632
  %v634 = vpop.f32.mrb[0].mxu0
  %635 = vmatprep.mubr.bf16.mxu0 %v406
  %636 = vmatmul.mubr.bf16.gmra.mrb[0].mxu0 %v405
  %v637 = vpop.f32.mrb[0].mxu0
  %v638 = vadd.f32 %v288, %v637
  %v639 = vpop.f32.mrb[0].mxu0
  %v640 = vpop.f32.mrb[0].mxu0
  %v641 = vadd.f32 %v291, %v640
  %v642 = vpop.f32.mrb[0].mxu0
  %643 = vmatprep.mubr.bf16.mxu0 %v409
  %644 = vmatmul.mubr.bf16.gmra.mrb[0].mxu0 %v408
  %v645 = vpop.f32.mrb[0].mxu0
  %v646 = vadd.f32 %v296, %v645
  %v647 = vpop.f32.mrb[0].mxu0
  %v648 = vpop.f32.mrb[0].mxu0
  %v649 = vadd.f32 %v299, %v648
  %v650 = vpop.f32.mrb[0].mxu0
  %651 = vmatprep.mubr.bf16.mxu0 %v412
  %652 = vmatmul.mubr.bf16.gmra.mrb[0].mxu0 %v411
  %v653 = vpop.f32.mrb[0].mxu0
  %v654 = vadd.f32 %v304, %v653
  %v655 = vpop.f32.mrb[0].mxu0
  %v656 = vpop.f32.mrb[0].mxu0
  %v657 = vadd.f32 %v307, %v656
  %v658 = vpop.f32.mrb[0].mxu0
  %659 = vdwg.mxu0
  %660 = vmatprep.subr.bf16.mxu0 0
  %661 = vmatpush1.bf16.msra.mxu0 %v518
  %662 = vmatprep.subr.bf16.mxu0 0
  %663 = vmatpush1.bf16.msra.mxu0 %v519
  %664 = vmatprep.subr.bf16.mxu0 0
  %665 = vmatpush1.bf16.msra.mxu0 0
  %666 = vmatprep.subr.bf16.mxu0 0
  %667 = vmatpush1.bf16.msra.mxu0 0
  %668 = vmatprep.subr.bf16.mxu0 0
  %669 = vmatpush1.bf16.msra.mxu0 0
  %670 = vmatprep.subr.bf16.mxu0 0
  %671 = vmatpush1.bf16.msra.mxu0 0
  %672 = vmatprep.subr.bf16.mxu0 0
  %673 = vmatpush1.bf16.msra.mxu0 0
  %674 = vmatprep.subr.bf16.mxu0 0
  %675 = vmatpush1.bf16.msra.mxu0 0
  %676 = vmatprep.subr.bf16.mxu0 0
  %677 = vmatpush1.bf16.msra.mxu0 0
  %678 = vmatprep.subr.bf16.mxu0 0
  %679 = vmatpush1.bf16.msra.mxu0 0
  %680 = vmatprep.subr.bf16.mxu0 0
  %681 = vmatpush1.bf16.msra.mxu0 0
  %682 = vmatprep.subr.bf16.mxu0 0
  %683 = vmatpush1.bf16.msra.mxu0 0
  %684 = vmatprep.subr.bf16.mxu0 0
  %685 = vmatpush1.bf16.msra.mxu0 0
  %686 = vmatprep.subr.bf16.mxu0 0
  %687 = vmatpush1.bf16.msra.mxu0 0
  %688 = vmatprep.subr.bf16.mxu0 0
  %689 = vmatpush1.bf16.msra.mxu0 0
  %690 = vmatprep.subr.bf16.mxu0 0
  %691 = vmatpush1.bf16.msra.mxu0 0
  %692 = vmatprep.mubr.bf16.mxu0 0
  %693 = vmatmul.mubr.bf16.gmra.mrb[0].mxu0 %v540
  %v694 = vpop.f32.mrb[0].mxu0
  %v695 = vadd.f32 %v598, %v694
  %v696 = vpop.f32.mrb[0].mxu0
  %v697 = vpop.f32.mrb[0].mxu0
  %v698 = vadd.f32 %v601, %v697
  %v699 = vpop.f32.mrb[0].mxu0
  %700 = vmatprep.mubr.bf16.mxu0 0
  %701 = vmatmul.mubr.bf16.gmra.mrb[0].mxu0 %v543
  %v702 = vpop.f32.mrb[0].mxu0
  %v703 = vadd.f32 %v606, %v702
  %v704 = vpop.f32.mrb[0].mxu0
  %v705 = vpop.f32.mrb[0].mxu0
  %v706 = vadd.f32 %v609, %v705
  %v707 = vpop.f32.mrb[0].mxu0
  %708 = vmatprep.mubr.bf16.mxu0 0
  %709 = vmatmul.mubr.bf16.gmra.mrb[0].mxu0 %v546
  %v710 = vpop.f32.mrb[0].mxu0
  %v711 = vadd.f32 %v614, %v710
  %v712 = vpop.f32.mrb[0].mxu0
  %v713 = vpop.f32.mrb[0].mxu0
  %v714 = vadd.f32 %v617, %v713
  %v715 = vpop.f32.mrb[0].mxu0
  %716 = vmatprep.mubr.bf16.mxu0 0
  %717 = vmatmul.mubr.bf16.gmra.mrb[0].mxu0 %v549
  %v718 = vpop.f32.mrb[0].mxu0
  %v719 = vadd.f32 %v622, %v718
  %v720 = vpop.f32.mrb[0].mxu0
  %v721 = vpop.f32.mrb[0].mxu0
  %v722 = vadd.f32 %v625, %v721
  %v723 = vpop.f32.mrb[0].mxu0
  %724 = vmatprep.mubr.bf16.mxu0 0
  %725 = vmatmul.mubr.bf16.gmra.mrb[0].mxu0 %v552
  %v726 = vpop.f32.mrb[0].mxu0
  %v727 = vadd.f32 %v630, %v726
  %v728 = vpop.f32.mrb[0].mxu0
  %v729 = vpop.f32.mrb[0].mxu0
  %v730 = vadd.f32 %v633, %v729
  %v731 = vpop.f32.mrb[0].mxu0
  %732 = vmatprep.mubr.bf16.mxu0 0
  %733 = vmatmul.mubr.bf16.gmra.mrb[0].mxu0 %v555
  %v734 = vpop.f32.mrb[0].mxu0
  %v735 = vadd.f32 %v638, %v734
  %v736 = vpop.f32.mrb[0].mxu0
  %v737 = vpop.f32.mrb[0].mxu0
  %v738 = vadd.f32 %v641, %v737
  %v739 = vpop.f32.mrb[0].mxu0
  %740 = vmatprep.mubr.bf16.mxu0 0
  %741 = vmatmul.mubr.bf16.gmra.mrb[0].mxu0 %v558
  %v742 = vpop.f32.mrb[0].mxu0
  %v743 = vadd.f32 %v646, %v742
  %v744 = vpop.f32.mrb[0].mxu0
  %v745 = vpop.f32.mrb[0].mxu0
  %v746 = vadd.f32 %v649, %v745
  %v747 = vpop.f32.mrb[0].mxu0
  %748 = vmatprep.mubr.bf16.mxu0 0
  %749 = vmatmul.mubr.bf16.gmra.mrb[0].mxu0 %v561
  %v750 = vpop.f32.mrb[0].mxu0
  %v751 = vadd.f32 %v654, %v750
  %v752 = vpop.f32.mrb[0].mxu0
  %v753 = vpop.f32.mrb[0].mxu0
  %v754 = vadd.f32 %v657, %v753
  %v755 = vpop.f32.mrb[0].mxu0
  %756 = vdwg.mxu0
  %v757 = vld [vmem:[%s4] sm:$0x1]
  %v759 = vlaneseq
  %v760 = vshrl.u32 %v759, 7
  %v761 = vsub.s32 0, %v760
  %v762 = vrot.slane %v757, %v761
  %v764 = vmul.f32 %v695, %v762
  %v765 = vmul.f32 %v698, %v762
  %v766 = vmul.f32 %v703, %v762
  %v767 = vmul.f32 %v706, %v762
  %v768 = vmul.f32 %v711, %v762
  %v769 = vmul.f32 %v714, %v762
  %v770 = vmul.f32 %v719, %v762
  %v771 = vmul.f32 %v722, %v762
  %v772 = vmul.f32 %v727, %v762
  %v773 = vmul.f32 %v730, %v762
  %v774 = vmul.f32 %v735, %v762
  %v775 = vmul.f32 %v738, %v762
  %v776 = vmul.f32 %v743, %v762
  %v777 = vmul.f32 %v746, %v762
  %v778 = vmul.f32 %v751, %v762
  %v779 = vmul.f32 %v754, %v762
  %v780 = vld [vmem:[%s5] sm:$0x1]
  %v782 = vlaneseq
  %v783 = vshrl.u32 %v782, 7
  %v784 = vsub.s32 0, %v783
  %v785 = vrot.slane %v780, %v784
  %v787 = vadd.f32 %v764, %v785
  %v788 = vadd.f32 %v765, %v785
  %v789 = vadd.f32 %v766, %v785
  %v790 = vadd.f32 %v767, %v785
  %v791 = vadd.f32 %v768, %v785
  %v792 = vadd.f32 %v769, %v785
  %v793 = vadd.f32 %v770, %v785
  %v794 = vadd.f32 %v771, %v785
  %v795 = vadd.f32 %v772, %v785
  %v796 = vadd.f32 %v773, %v785
  %v797 = vadd.f32 %v774, %v785
  %v798 = vadd.f32 %v775, %v785
  %v799 = vadd.f32 %v776, %v785
  %v800 = vadd.f32 %v777, %v785
  %v801 = vadd.f32 %v778, %v785
  %v802 = vadd.f32 %v779, %v785
  %v803 = vmax.f32 %v787, 0.0
  %v804 = vmax.f32 %v788, 0.0
  %v805 = vmax.f32 %v789, 0.0
  %v806 = vmax.f32 %v790, 0.0
  %v807 = vmax.f32 %v791, 0.0
  %v808 = vmax.f32 %v792, 0.0
  %v809 = vmax.f32 %v793, 0.0
  %v810 = vmax.f32 %v794, 0.0
  %v811 = vmax.f32 %v795, 0.0
  %v812 = vmax.f32 %v796, 0.0
  %v813 = vmax.f32 %v797, 0.0
  %v814 = vmax.f32 %v798, 0.0
  %v815 = vmax.f32 %v799, 0.0
  %v816 = vmax.f32 %v800, 0.0
  %v817 = vmax.f32 %v801, 0.0
  %v818 = vmax.f32 %v802, 0.0
  %v819 = vpack.c.bf16 %v804, %v803
  %v820 = vpack.c.bf16 %v806, %v805
  %v821 = vpack.c.bf16 %v808, %v807
  %v822 = vpack.c.bf16 %v810, %v809
  %v823 = vpack.c.bf16 %v812, %v811
  %v824 = vpack.c.bf16 %v814, %v813
  %v825 = vpack.c.bf16 %v816, %v815
  %v826 = vpack.c.bf16 %v818, %v817
  %v835 = vunpack.c.l.b16 %v819
  %v836 = vunpack.c.h.b16 %v819
  %v837 = vunpack.c.l.b16 %v820
  %v838 = vunpack.c.h.b16 %v820
  %v839 = vunpack.c.l.b16 %v821
  %v840 = vunpack.c.h.b16 %v821
  %v841 = vunpack.c.l.b16 %v822
  %v842 = vunpack.c.h.b16 %v822
  %v843 = vunpack.c.l.b16 %v823
  %v844 = vunpack.c.h.b16 %v823
  %v845 = vunpack.c.l.b16 %v824
  %v846 = vunpack.c.h.b16 %v824
  %v847 = vunpack.c.l.b16 %v825
  %v848 = vunpack.c.h.b16 %v825
  %v849 = vunpack.c.l.b16 %v826
  %v850 = vunpack.c.h.b16 %v826
  %v851 = vpack.c.b16 %v835, %v835
  %v852 = vpack.c.b16 %v836, %v836
  %v853 = vpack.c.b16 %v837, %v837
  %v854 = vpack.c.b16 %v838, %v838
  %v855 = vpack.c.b16 %v839, %v839
  %v856 = vpack.c.b16 %v840, %v840
  %v857 = vpack.c.b16 %v841, %v841
  %v858 = vpack.c.b16 %v842, %v842
  %v859 = vpack.c.b16 %v843, %v843
  %v860 = vpack.c.b16 %v844, %v844
  %v861 = vpack.c.b16 %v845, %v845
  %v862 = vpack.c.b16 %v846, %v846
  %v863 = vpack.c.b16 %v847, %v847
  %v864 = vpack.c.b16 %v848, %v848
  %v865 = vpack.c.b16 %v849, %v849
  %v866 = vpack.c.b16 %v850, %v850
  %883 = vst [vmem:[%s6] sm:$0xf] %v851
  %884 = vst [vmem:[%s6 + $0x4] sm:$0xf] %v852
  %885 = vst [vmem:[%s6 + $0x8] sm:$0xf] %v853
  %886 = vst [vmem:[%s6 + $0xc] sm:$0xf] %v854
  %887 = vst [vmem:[%s6 + $0x10] sm:$0xf] %v855
  %888 = vst [vmem:[%s6 + $0x14] sm:$0xf] %v856
  %889 = vst [vmem:[%s6 + $0x18] sm:$0xf] %v857
  %890 = vst [vmem:[%s6 + $0x1c] sm:$0xf] %v858
  %891 = vst [vmem:[%s6 + $0x20] sm:$0xf] %v859
  %892 = vst [vmem:[%s6 + $0x24] sm:$0xf] %v860
  %893 = vst [vmem:[%s6 + $0x28] sm:$0xf] %v861
  %894 = vst [vmem:[%s6 + $0x2c] sm:$0xf] %v862
  %895 = vst [vmem:[%s6 + $0x30] sm:$0xf] %v863
  %896 = vst [vmem:[%s6 + $0x34] sm:$0xf] %v864
  %897 = vst [vmem:[%s6 + $0x38] sm:$0xf] %v865
  %898 = vst [vmem:[%s6 + $0x3c] sm:$0xf] %v866
  // Predicated region
  $region26: #{deeplab_forward.22} parent=0 // pred_check
    _
  $region27: #{deeplab_forward.22} parent=0 // pred_check_branch
    %900 = sbr.rel (0) target = $region29
  $region28: #{deeplab_forward.22} parent=0 // pred_region
    _
  $region29: #{deeplab_forward.22} parent=0 // pred_fallthru
    _
  // Predicated region
  $region30: #{deeplab_forward.22} parent=0 // pred_check
    _
  $region31: #{deeplab_forward.22} parent=0 // pred_check_branch
    %902 = sbr.rel (0) target = $region33
  $region32: #{deeplab_forward.22} parent=0 // pred_region
    _
  $region33: #{deeplab_forward.22} parent=0 // pred_fallthru
    _

// kernel: deeplab_forward.25
$region0: #{deeplab_forward.25}
  #allocation0 [shape = 'u32[]', space=smem, size = 0x4, offset = 0x4, fixed_abs, tag = 'smem constant byte address 0x4 - core index']
  #allocation1 [shape = 'u32[144,128]{1,0:T(1,128)}', space=vmem, size = 0x12000, scoped, tag = 'internal scratch']
  %s0 = inlined_call_operand.vmem [shape: bf16[16,8], index: 0, kind: input, shape index: {}]
  %s1 = inlined_call_operand.vmem [shape: bf16[2,8,336], index: 1, kind: input, shape index: {}]
  %s2 = inlined_call_operand.vmem [shape: f32[2,16,336], index: 2, kind: output, shape index: {}]
  %s3 = sld [smem:[#allocation0]]
  $region41: #{deeplab_forward.25} parent=0
    _
  %s5 = ssub.s32 1, %s3
  %s6 = scalar_select 0, %s5, %s3
  loop: start=0, step=1, limit=4
  $region2: #{deeplab_forward.25} parent=0 // loop_pre_header
    _
  $region3: #{deeplab_forward.25} parent=0 // loop_header
    %s8 = sphi 0, %s12
    %p9 = scmp.ge.s32.totalorder %s8, 4
    %s15 = sphi 0, %s34
    %s16 = sphi 0, %s30
    %s17 = sphi 0, %s26
    %s18 = sphi 0, %s15
    %s19 = sphi 0, %s16
    %s20 = sphi 0, %s17
    %s21 = sphi 0, %s18
    %s22 = sphi 0, %s19
    %s23 = sphi 0, %s20
    %s37 = sphi 0, %s39
    %s40 = sphi 0, %s37
    %s41 = sphi 0, %s40
    %s57 = sphi 0, %s41
    %s65 = sphi 0, %s67
    %s68 = sphi 0, %s65
    %s69 = sphi 0, %s68
    %s85 = sphi 0, %s69
    %s95 = sphi 0, %s97
    %s98 = sphi 0, %s95
    %s99 = sphi 0, %s98
    %s115 = sphi 0, %s99
  $region4: #{deeplab_forward.25} parent=0 // loop_header_branch
    %11 = sbr.rel (%p9) target = $region8
  $region5: #{deeplab_forward.25} parent=0 // loop_body
    %s13 = ssub.s32 %s8, 1
    %s14 = ssub.s32 %s8, 2
    %s24 = sadd.s32 1, %s17
    %p25 = scmp.ge.s32.totalorder %s24, 1
    %s26 = scalar_select %p25, 0, %s24
    %s27 = sadd.s32 1, %s16
    %s28 = scalar_select %p25, %s27, %s16
    %p29 = scmp.ge.s32.totalorder %s28, 1
    %s30 = scalar_select %p29, 0, %s28
    %s31 = sadd.s32 1, %s15
    %s32 = scalar_select %p29, %s31, %s15
    %p33 = scmp.ge.s32.totalorder %s32, 2
    %s34 = scalar_select %p33, 0, %s32
    %s35 = ssub.s32 %s16, %s30
    %p36 = scmp.eq.s32.totalorder %s35, 0
    %s38 = sadd.s32 %s37, 1
    %s39 = scalar_select %p36, %s37, %s38
    %p42 = pneg %p36
    %p43 = scmp.eq.s32.totalorder %s8, 1
    %p44 = por %p42, %p43
    %p45 = scmp.ne.s32.totalorder %s37, %s40
    %p46 = scmp.eq.s32.totalorder %s8, 0
    %p47 = por %p45, %p46
    %p48 = scmp.ne.s32.totalorder %s37, %s40
    %p49 = scmp.eq.s32.totalorder %s13, 1
    %p50 = por %p48, %p49
    %p51 = scmp.ne.s32.totalorder %s40, %s41
    %p52 = scmp.eq.s32.totalorder %s13, 0
    %p53 = por %p51, %p52
    %p54 = scmp.ne.s32.totalorder %s40, %s41
    %p55 = scmp.eq.s32.totalorder %s14, 1
    %p56 = por %p54, %p55
    %p58 = scmp.ne.s32.totalorder %s41, %s57
    %p59 = scmp.eq.s32.totalorder %s14, 0
    %p60 = por %p58, %p59
    %s61 = ssub.s32 %s15, %s34
    %s62 = ssub.s32 %s17, %s26
    %s63 = sor.u32 %s61, %s62
    %p64 = scmp.eq.s32.totalorder %s63, 0
    %s66 = sadd.s32 %s65, 1
    %s67 = scalar_select %p64, %s65, %s66
    %p70 = pneg %p64
    %p71 = scmp.eq.s32.totalorder %s8, 1
    %p72 = por %p70, %p71
    %p73 = scmp.ne.s32.totalorder %s65, %s68
    %p74 = scmp.eq.s32.totalorder %s8, 0
    %p75 = por %p73, %p74
    %p76 = scmp.ne.s32.totalorder %s65, %s68
    %p77 = scmp.eq.s32.totalorder %s13, 1
    %p78 = por %p76, %p77
    %p79 = scmp.ne.s32.totalorder %s68, %s69
    %p80 = scmp.eq.s32.totalorder %s13, 0
    %p81 = por %p79, %p80
    %p82 = scmp.ne.s32.totalorder %s68, %s69
    %p83 = scmp.eq.s32.totalorder %s14, 1
    %p84 = por %p82, %p83
    %p86 = scmp.ne.s32.totalorder %s69, %s85
    %p87 = scmp.eq.s32.totalorder %s14, 0
    %p88 = por %p86, %p87
    %s89 = ssub.s32 %s15, %s34
    %s90 = ssub.s32 %s16, %s30
    %s91 = sor.u32 %s89, %s90
    %s92 = ssub.s32 %s17, %s26
    %s93 = sor.u32 %s91, %s92
    %p94 = scmp.eq.s32.totalorder %s93, 0
    %s96 = sadd.s32 %s95, 1
    %s97 = scalar_select %p94, %s95, %s96
    %p100 = pneg %p94
    %p101 = scmp.eq.s32.totalorder %s8, 1
    %p102 = por %p100, %p101
    %p103 = scmp.ne.s32.totalorder %s95, %s98
    %p104 = scmp.eq.s32.totalorder %s8, 0
    %p105 = por %p103, %p104
    %p106 = scmp.ne.s32.totalorder %s95, %s98
    %p107 = scmp.eq.s32.totalorder %s13, 1
    %p108 = por %p106, %p107
    %p109 = scmp.ne.s32.totalorder %s98, %s99
    %p110 = scmp.eq.s32.totalorder %s13, 0
    %p111 = por %p109, %p110
    %p112 = scmp.ne.s32.totalorder %s98, %s99
    %p113 = scmp.eq.s32.totalorder %s14, 1
    %p114 = por %p112, %p113
    %p116 = scmp.ne.s32.totalorder %s99, %s115
    %p117 = scmp.eq.s32.totalorder %s14, 0
    %p118 = por %p116, %p117
    %p119 = scmp.le.s32.totalorder 1, %s8
    %p120 = scmp.lt.s32.totalorder %s8, 3
    %p121 = pnand %p119, %p120
    %p122 = pneg %p121
    // Predicated region
    $region9: #{deeplab_forward.25} parent=5 // pred_check
      _
    $region10: #{deeplab_forward.25} parent=5 // pred_check_branch
      %124 = sbr.rel (%p121) target = $region12
    $region11: #{deeplab_forward.25} parent=5 // pred_region
      %s125 = ssub.s32 %s8, 1
      // Predicated region
      $region13: #{deeplab_forward.25} parent=11 // pred_check
        %p126 = pneg %p53
      $region14: #{deeplab_forward.25} parent=11 // pred_check_branch
        %128 = sbr.rel (%p126) target = $region16
      $region15: #{deeplab_forward.25} parent=11 // pred_region
        %s129 = smul.u32 2, %s19
        %p130 = scmp.lt.s32.totalorder %s129, 1
        %s131 = scalar_select %p130, %s129, 1
        %s132 = smul.addr %s131, 4
        %s133 = scalar_lea.vmem %s0, %s132
        %s134 = smul.u32 2, %s19
      $region16: #{deeplab_forward.25} parent=11 // pred_fallthru
        _
    $region12: #{deeplab_forward.25} parent=5 // pred_fallthru
      _
    %p135 = scmp.lt.s32.totalorder %s8, 2
    // Predicated region
    $region17: #{deeplab_forward.25} parent=5 // pred_check
      %p136 = pneg %p135
    $region18: #{deeplab_forward.25} parent=5 // pred_check_branch
      %138 = sbr.rel (%p136) target = $region20
    $region19: #{deeplab_forward.25} parent=5 // pred_region
      // Predicated region
      $region21: #{deeplab_forward.25} parent=19 // pred_check
        %p139 = pneg %p75
      $region22: #{deeplab_forward.25} parent=19 // pred_check_branch
        %141 = sbr.rel (%p139) target = $region24
      $region23: #{deeplab_forward.25} parent=19 // pred_region
        %s142 = smul.u32 3, %s17
        %p143 = scmp.lt.s32.totalorder %s15, 1
        %s144 = scalar_select %p143, %s15, 1
        %p145 = scmp.lt.s32.totalorder %s142, 2
        %s146 = scalar_select %p145, %s142, 2
        %s147 = smul.addr %s144, 3
        %s148 = sadd.s32 %s146, %s147
        %s149 = smul.addr %s148, 4
        %s150 = scalar_lea.vmem %s1, %s149
        %s151 = smul.u32 3, %s17
      $region24: #{deeplab_forward.25} parent=19 // pred_fallthru
        _
    $region20: #{deeplab_forward.25} parent=5 // pred_fallthru
      _
    %p152 = scmp.le.s32.totalorder 1, %s8
    %p153 = scmp.lt.s32.totalorder %s8, 3
    %p154 = pnand %p152, %p153
    %p155 = pneg %p154
    // Predicated region
    $region25: #{deeplab_forward.25} parent=5 // pred_check
      _
    $region26: #{deeplab_forward.25} parent=5 // pred_check_branch
      %157 = sbr.rel (%p154) target = $region28
    $region27: #{deeplab_forward.25} parent=5 // pred_region
      %s158 = ssub.s32 %s8, 1
      %s159 = smul.u32 2, %s19
      %p160 = scmp.lt.s32.totalorder %s159, 1
      %s161 = scalar_select %p160, %s159, 1
      %s162 = smul.addr %s161, 4
      %s163 = scalar_lea.vmem %s0, %s162
      %p164 = pneg %p53
      %p165 = pneg %p50
      %s166 = smul.u32 3, %s20
      %p167 = scmp.lt.s32.totalorder %s18, 1
      %s168 = scalar_select %p167, %s18, 1
      %p169 = scmp.lt.s32.totalorder %s166, 2
      %s170 = scalar_select %p169, %s166, 2
      %s171 = smul.addr %s168, 3
      %s172 = sadd.s32 %s170, %s171
      %s173 = smul.addr %s172, 4
      %s174 = scalar_lea.vmem %s1, %s173
      %p175 = pneg %p81
      %p176 = pneg %p78
      %p177 = pneg %p111
      %p178 = pneg %p108
      %s179 = smul.u32 2, %s19
      %s180 = smul.u32 3, %s20
      %p181 = scmp.lt.s32.totalorder %s18, 1
      %s182 = scalar_select %p181, %s18, 1
      %p183 = scmp.lt.s32.totalorder %s179, 1
      %s184 = scalar_select %p183, %s179, 1
      %p185 = scmp.lt.s32.totalorder %s180, 2
      %s186 = scalar_select %p185, %s180, 2
      %s187 = smul.addr %s184, 3
      %s188 = sadd.s32 %s186, %s187
      %s189 = smul.addr %s182, 6
      %s190 = sadd.s32 %s188, %s189
      %s191 = smul.addr %s190, 8
      %s192 = scalar_lea.vmem %s2, %s191
      %s193 = smul.u32 2, %s19
      %p194 = scmp.lt.s32.totalorder %s193, 1
      %s195 = scalar_select %p194, %s193, 1
      %s196 = smul.addr %s195, 4
      %s197 = scalar_lea.vmem %s0, %s196
      %s198 = smul.u32 2, %s19
      %s199 = smul.u32 3, %s20
      %p200 = scmp.lt.s32.totalorder %s18, 1
      %s201 = scalar_select %p200, %s18, 1
      %p202 = scmp.lt.s32.totalorder %s199, 2
      %s203 = scalar_select %p202, %s199, 2
      %s204 = smul.addr %s201, 3
      %s205 = sadd.s32 %s203, %s204
      %s206 = smul.addr %s205, 4
      %s207 = scalar_lea.vmem %s1, %s206
      %s208 = smul.u32 3, %s20
      %s209 = smul.u32 2, %s19
      %s210 = smul.u32 3, %s20
      %p211 = scmp.lt.s32.totalorder %s18, 1
      %s212 = scalar_select %p211, %s18, 1
      %p213 = scmp.lt.s32.totalorder %s209, 1
      %s214 = scalar_select %p213, %s209, 1
      %p215 = scmp.lt.s32.totalorder %s210, 2
      %s216 = scalar_select %p215, %s210, 2
      %s217 = smul.addr %s214, 3
      %s218 = sadd.s32 %s216, %s217
      %s219 = smul.addr %s212, 6
      %s220 = sadd.s32 %s218, %s219
      %s221 = smul.addr %s220, 8
      %s222 = scalar_lea.vmem %s2, %s221
      %s223 = smul.u32 2, %s19
      %s224 = smul.u32 3, %s20
      %v226 = vld [vmem:[%s197] sm:$0xf]
      %v227 = vld [vmem:[%s197 + $0x4] sm:$0xf]
      %v228 = vld [vmem:[%s207] sm:$0xff]
      %v229 = vld [vmem:[%s207 + $0x8] sm:$0xf]
      %v232 = vunpack.c.l.b16 %v226
      %v233 = vunpack.c.l.b16 %v227
      %v234 = vpack.c.b16 %v233, %v232
      %v237 = vunpack.c.l.b16 %v228
      %v238 = vunpack.c.h.b16 %v228
      %v239 = vunpack.c.l.b16 %v229
      %v240 = vpack.c.b16 %v237, %v237
      %v241 = vpack.c.b16 %v238, %v238
      %v242 = vpack.c.b16 %v239, %v239
      %vm243 = vcmask 64512
      %v245 = vsel %vm243, %v234, 0
      %vm247 = vcmask 1043456
      %v249 = vsel %vm247, %v240, 0
      %v252 = vsel %vm247, %v241, 0
      %v255 = vsel %vm247, %v242, 0
      %257 = vmatprep.subr.bf16.mxu0 %v252
      %258 = vmatpush1.bf16.msra.mxu0 %v249
      %259 = vmatprep.subr.bf16.mxu0 0
      %260 = vmatpush1.bf16.msra.mxu0 0
      %261 = vmatprep.subr.bf16.mxu0 0
      %262 = vmatpush1.bf16.msra.mxu0 0
      %263 = vmatprep.subr.bf16.mxu0 0
      %264 = vmatpush1.bf16.msra.mxu0 0
      %265 = vmatprep.subr.bf16.mxu0 0
      %266 = vmatpush1.bf16.msra.mxu0 0
      %267 = vmatprep.subr.bf16.mxu0 0
      %268 = vmatpush1.bf16.msra.mxu0 0
      %269 = vmatprep.subr.bf16.mxu0 0
      %270 = vmatpush1.bf16.msra.mxu0 0
      %271 = vmatprep.subr.bf16.mxu0 0
      %272 = vmatpush1.bf16.msra.mxu0 0
      %273 = vmatprep.subr.bf16.mxu0 0
      %274 = vmatpush1.bf16.msra.mxu0 0
      %275 = vmatprep.subr.bf16.mxu0 0
      %276 = vmatpush1.bf16.msra.mxu0 0
      %277 = vmatprep.subr.bf16.mxu0 0
      %278 = vmatpush1.bf16.msra.mxu0 0
      %279 = vmatprep.subr.bf16.mxu0 0
      %280 = vmatpush1.bf16.msra.mxu0 0
      %281 = vmatprep.subr.bf16.mxu0 0
      %282 = vmatpush1.bf16.msra.mxu0 0
      %283 = vmatprep.subr.bf16.mxu0 0
      %284 = vmatpush1.bf16.msra.mxu0 0
      %285 = vmatprep.subr.bf16.mxu0 0
      %286 = vmatpush1.bf16.msra.mxu0 0
      %287 = vmatprep.subr.bf16.mxu0 0
      %288 = vmatpush1.bf16.msra.mxu0 0
      %289 = vmatprep.mubr.bf16.mxu0 0
      %290 = vmatmul.mubr.bf16.gmra.mrb[0].mxu0 %v245
      %v291 = vpop.f32.mrb[0].mxu0
      %v292 = vadd.f32 0.0, %v291
      %v293 = vpop.f32.mrb[0].mxu0
      %v294 = vadd.f32 0.0, %v293
      %v295 = vpop.f32.mrb[0].mxu0
      %v296 = vadd.f32 0.0, %v295
      %v297 = vpop.f32.mrb[0].mxu0
      %v298 = vadd.f32 0.0, %v297
      %299 = vdwg.mxu0
      %300 = vmatprep.subr.bf16.mxu0 0
      %301 = vmatpush1.bf16.msra.mxu0 %v255
      %302 = vmatprep.subr.bf16.mxu0 0
      %303 = vmatpush1.bf16.msra.mxu0 0
      %304 = vmatprep.subr.bf16.mxu0 0
      %305 = vmatpush1.bf16.msra.mxu0 0
      %306 = vmatprep.subr.bf16.mxu0 0
      %307 = vmatpush1.bf16.msra.mxu0 0
      %308 = vmatprep.subr.bf16.mxu0 0
      %309 = vmatpush1.bf16.msra.mxu0 0
      %310 = vmatprep.subr.bf16.mxu0 0
      %311 = vmatpush1.bf16.msra.mxu0 0
      %312 = vmatprep.subr.bf16.mxu0 0
      %313 = vmatpush1.bf16.msra.mxu0 0
      %314 = vmatprep.subr.bf16.mxu0 0
      %315 = vmatpush1.bf16.msra.mxu0 0
      %316 = vmatprep.subr.bf16.mxu0 0
      %317 = vmatpush1.bf16.msra.mxu0 0
      %318 = vmatprep.subr.bf16.mxu0 0
      %319 = vmatpush1.bf16.msra.mxu0 0
      %320 = vmatprep.subr.bf16.mxu0 0
      %321 = vmatpush1.bf16.msra.mxu0 0
      %322 = vmatprep.subr.bf16.mxu0 0
      %323 = vmatpush1.bf16.msra.mxu0 0
      %324 = vmatprep.subr.bf16.mxu0 0
      %325 = vmatpush1.bf16.msra.mxu0 0
      %326 = vmatprep.subr.bf16.mxu0 0
      %327 = vmatpush1.bf16.msra.mxu0 0
      %328 = vmatprep.subr.bf16.mxu0 0
      %329 = vmatpush1.bf16.msra.mxu0 0
      %330 = vmatprep.subr.bf16.mxu0 0
      %331 = vmatpush1.bf16.msra.mxu0 0
      %332 = vmatprep.mubr.bf16.mxu0 0
      %333 = vmatmul.mubr.bf16.gmra.mrb[0].mxu0 %v245
      %v334 = vpop.f32.mrb[0].mxu0
      %v335 = vadd.f32 0.0, %v334
      %v336 = vpop.f32.mrb[0].mxu0
      %v337 = vpop.f32.mrb[0].mxu0
      %v338 = vadd.f32 0.0, %v337
      %v339 = vpop.f32.mrb[0].mxu0
      %340 = vdwg.mxu0
      %341 = vst [vmem:[%s222] sm:$0xff] %v292
      %342 = vst [vmem:[%s222 + $0x8] sm:$0xff] %v294
      %vm343 = vcmask 654336
      %344 = vst.msk [vmem:[%s222 + $0x10] sm:$0xff] %vm343, %v335
      %345 = vst [vmem:[%s222 + $0x18] sm:$0xff] %v296
      %346 = vst [vmem:[%s222 + $0x20] sm:$0xff] %v298
      %347 = vst.msk [vmem:[%s222 + $0x28] sm:$0xff] %vm343, %v338
      %s348 = smul.u32 2, %s19
      %s349 = smul.u32 3, %s20
      %p350 = scmp.lt.s32.totalorder %s18, 1
      %s351 = scalar_select %p350, %s18, 1
      %p352 = scmp.lt.s32.totalorder %s348, 1
      %s353 = scalar_select %p352, %s348, 1
      %p354 = scmp.lt.s32.totalorder %s349, 2
      %s355 = scalar_select %p354, %s349, 2
      %s356 = smul.addr %s353, 3
      %s357 = sadd.s32 %s355, %s356
      %s358 = smul.addr %s351, 6
      %s359 = sadd.s32 %s357, %s358
      %s360 = smul.addr %s359, 8
      %s361 = scalar_lea.vmem %s2, %s360
      // Predicated region
      $region29: #{deeplab_forward.25} parent=27 // pred_check
        %p362 = pneg %p108
      $region30: #{deeplab_forward.25} parent=27 // pred_check_branch
        %364 = sbr.rel (%p362) target = $region32
      $region31: #{deeplab_forward.25} parent=27 // pred_region
        %s365 = smul.u32 2, %s19
        %s366 = smul.u32 3, %s20
      $region32: #{deeplab_forward.25} parent=27 // pred_fallthru
        _
    $region28: #{deeplab_forward.25} parent=5 // pred_fallthru
      _
    %p367 = scmp.le.s32.totalorder 2, %s8
    // Predicated region
    $region33: #{deeplab_forward.25} parent=5 // pred_check
      %p368 = pneg %p367
    $region34: #{deeplab_forward.25} parent=5 // pred_check_branch
      %370 = sbr.rel (%p368) target = $region36
    $region35: #{deeplab_forward.25} parent=5 // pred_region
      %s371 = ssub.s32 %s8, 2
      // Predicated region
      $region37: #{deeplab_forward.25} parent=35 // pred_check
        %p372 = pneg %p114
      $region38: #{deeplab_forward.25} parent=35 // pred_check_branch
        %374 = sbr.rel (%p372) target = $region40
      $region39: #{deeplab_forward.25} parent=35 // pred_region
        %s375 = smul.u32 2, %s22
        %s376 = smul.u32 3, %s23
        %p377 = scmp.lt.s32.totalorder %s21, 1
        %s378 = scalar_select %p377, %s21, 1
        %p379 = scmp.lt.s32.totalorder %s375, 1
        %s380 = scalar_select %p379, %s375, 1
        %p381 = scmp.lt.s32.totalorder %s376, 2
        %s382 = scalar_select %p381, %s376, 2
        %s383 = smul.addr %s380, 3
        %s384 = sadd.s32 %s382, %s383
        %s385 = smul.addr %s378, 6
        %s386 = sadd.s32 %s384, %s385
        %s387 = smul.addr %s386, 8
        %s388 = scalar_lea.vmem %s2, %s387
      $region40: #{deeplab_forward.25} parent=35 // pred_fallthru
        _
    $region36: #{deeplab_forward.25} parent=5 // pred_fallthru
      _
  $region6: #{deeplab_forward.25} parent=0 // loop_footer
    %s12 = sadd.s32 1, %s8
  $region7: #{deeplab_forward.25} parent=0 // loop_footer_branch
    %7 = sbr.rel target = $region3
  $region8: #{deeplab_forward.25} parent=0 // loop_exit
    _

</llo_original>
